<compile_context>
chip_gen: v5e
topology: v5e:2x2
jax: 0.10.0
libtpu: 0.0.40
codegen_flags: <defaults>
</compile_context>

<pallas_src>
import functools
import math

import jax
import jax.numpy as jnp
from jax import lax
from jax.experimental import pallas as pl
from jax.experimental.pallas import tpu as pltpu


# ----------------------------------------------------------------------------
# VMEM budgeting helpers (generation aware)
# ----------------------------------------------------------------------------
def _round_up(x, m):
    return ((x + m - 1) // m) * m


def _default_vmem_limit():
    """Scoped-VMEM budget: ~half of physical VMEM (v5e/v6e: 128 MiB, v7x: 64 MiB)."""
    try:
        cap = int(getattr(pltpu.get_tpu_info(), "vmem_capacity_bytes",
                          64 * 1024 * 1024))
    except Exception:          # no TPU visible (e.g. interpret mode on CPU)
        cap = 64 * 1024 * 1024
    return int(min(max(cap // 2, 32 * 1024 * 1024), 96 * 1024 * 1024))


_VMEM_LIMIT = _default_vmem_limit()
_MAX_HW_TILE = 8192


def _pick_hw_tile(hw, bytes_per_col, budget_bytes):
    """Largest lane-aligned (128) HW tile whose per-step footprint fits the budget."""
    t = max(128, (min(budget_bytes // max(bytes_per_col, 1), _MAX_HW_TILE) // 128) * 128)
    t = min(t, _round_up(hw, 128))
    # shrink if zero-padding waste would exceed ~1/8 of HW
    while t > 128 and (_round_up(hw, t) - hw) * 8 > hw:
        t -= 128
    return t


# ----------------------------------------------------------------------------
# Kernel 1a: fused 1x1 conv (channels-first matmul) + GroupNorm, single HW block
# ----------------------------------------------------------------------------
def _conv1x1_gn_fused_kernel(x_ref, w_ref, b_ref, p_ref, g_ref, be_ref, o_ref, *, eps):
    x = x_ref[0]                                                   # (Cin, HW) bf16
    y = jnp.dot(w_ref[...], x, preferred_element_type=jnp.float32) + b_ref[...]
    sum_c = jnp.sum(y, axis=1, keepdims=True)                      # (Cout, 1)
    sq_c = jnp.sum(y * y, axis=1, keepdims=True)                   # (Cout, 1)
    # one group matmul for both stats: p_ref is the hoisted block-diagonal
    # group-averaging matrix (Cout, Cout) / (gs*HW)
    g2 = jnp.dot(p_ref[...], jnp.concatenate([sum_c, sq_c], axis=1),
                 preferred_element_type=jnp.float32)               # (Cout, 2)
    mean_c = g2[:, 0:1]
    var_c = jnp.maximum(g2[:, 1:2] - mean_c * mean_c, 0.0)         # clamp cancellation
    yn = (y - mean_c) * lax.rsqrt(var_c + eps)
    o_ref[0] = (yn * g_ref[...] + be_ref[...]).astype(o_ref.dtype)


def _conv1x1_gn_fused(xf, w_bf, b, gamma, beta, num_groups, eps, out_dtype, vmem_limit):
    N, Cin, HW = xf.shape
    Cout = w_bf.shape[0]
    gs = Cout // num_groups
    gid = jnp.arange(Cout) // gs
    pmat = (gid[:, None] == gid[None, :]).astype(jnp.float32) / float(gs * HW)
    return pl.pallas_call(
        functools.partial(_conv1x1_gn_fused_kernel, eps=eps),
        out_shape=jax.ShapeDtypeStruct((N, Cout, HW), out_dtype),
        grid=(N,),
        in_specs=[
            pl.BlockSpec((1, Cin, HW), lambda i: (i, 0, 0)),
            pl.BlockSpec((Cout, Cin), lambda i: (0, 0)),
            pl.BlockSpec((Cout, 1), lambda i: (0, 0)),
            pl.BlockSpec((Cout, Cout), lambda i: (0, 0)),
            pl.BlockSpec((Cout, 1), lambda i: (0, 0)),
            pl.BlockSpec((Cout, 1), lambda i: (0, 0)),
        ],
        out_specs=pl.BlockSpec((1, Cout, HW), lambda i: (i, 0, 0)),
        compiler_params=pltpu.CompilerParams(
            dimension_semantics=("parallel",), vmem_limit_bytes=vmem_limit),
    )(xf, w_bf, b.reshape(Cout, 1), pmat,
      gamma.reshape(Cout, 1), beta.reshape(Cout, 1))


# ----------------------------------------------------------------------------
# Kernel 1b: HW-tiled phased conv+GN, grid (N, 2, K); y stays in a VMEM scratch
#            across the K loop (no HBM round trip for the intermediate).
# ----------------------------------------------------------------------------
def _conv_gn_phased_kernel(x_ref, w_ref, b_ref, p_ref, g_ref, be_ref, o_ref,
                           y_buf, sum_acc, sq_acc, scale_sc, shift_sc,
                           *, eps, n_pad, tk):
    phase = pl.program_id(1)
    k = pl.program_id(2)

    @pl.when((phase == 0) & (k == 0))
    def _():
        sum_acc[...] = jnp.zeros_like(sum_acc)
        sq_acc[...] = jnp.zeros_like(sq_acc)

    @pl.when(phase == 0)
    def _():
        y = jnp.dot(w_ref[...], x_ref[0],
                    preferred_element_type=jnp.float32) + b_ref[...]   # (Cout, tk) f32
        sum_acc[...] += jnp.sum(y, axis=1, keepdims=True)
        sq_acc[...] += jnp.sum(y * y, axis=1, keepdims=True)
        off = pl.multiple_of(k * tk, tk)
        y_buf[:, pl.ds(off, tk)] = y.astype(y_buf.dtype)

    @pl.when((phase == 1) & (k == 0))
    def _():
        b = b_ref[...]
        # padded HW columns came from zero-padded x, hence y == bias there;
        # subtract their analytic contribution from the accumulated statistics.
        s = sum_acc[...] - float(n_pad) * b
        q = sq_acc[...] - float(n_pad) * b * b
        g2 = jnp.dot(p_ref[...], jnp.concatenate([s, q], axis=1),
                     preferred_element_type=jnp.float32)               # (Cout, 2)
        mean_c = g2[:, 0:1]
        var_c = jnp.maximum(g2[:, 1:2] - mean_c * mean_c, 0.0)
        inv = lax.rsqrt(var_c + eps)
        scale_sc[...] = g_ref[...] * inv
        shift_sc[...] = be_ref[...] - mean_c * g_ref[...] * inv

    @pl.when(phase == 1)
    def _():
        off = pl.multiple_of(k * tk, tk)
        y = y_buf[:, pl.ds(off, tk)].astype(jnp.float32)
        o_ref[0] = (y * scale_sc[...] + shift_sc[...]).astype(o_ref.dtype)


def _conv1x1_gn_phased(xf, w_bf, b, gamma, beta, num_groups, eps, out_dtype,
                       vmem_limit, force_tile=None):
    N, Cin, HW = xf.shape
    Cout = w_bf.shape[0]
    out_isz = jnp.dtype(out_dtype).itemsize

    # VMEM-aware tile selection: 2x double-buffered x + out tiles, f32 temp,
    # minus the fixed footprint of the resident y scratch and weights.
    per_col = 2 * (Cin * 2 + Cout * out_isz) + Cout * 4
    fixed = Cout * _round_up(HW, 128) * 2 + Cout * Cin * 2 + Cout * Cout * 4
    budget = max(vmem_limit // 2 - fixed, 4 * 128 * per_col)
    # TODO(synk): for extreme HW where the resident y scratch alone exceeds the
    # budget, fall back to a streamed two-pass variant.
    tk = force_tile if force_tile is not None else _pick_hw_tile(HW, per_col, budget)
    hw_pad = _round_up(HW, tk)
    n_pad = hw_pad - HW
    if n_pad:
        xf = jnp.pad(xf, ((0, 0), (0, 0), (0, n_pad)))
    K = hw_pad // tk

    gs = Cout // num_groups
    gid = jnp.arange(Cout) // gs
    pmat = (gid[:, None] == gid[None, :]).astype(jnp.float32) / float(gs * HW)

    out = pl.pallas_call(
        functools.partial(_conv_gn_phased_kernel, eps=eps, n_pad=n_pad, tk=tk),
        out_shape=jax.ShapeDtypeStruct((N, Cout, hw_pad), out_dtype),
        grid=(N, 2, K),
        in_specs=[
            # phase 1 does not consume x: pin its block index so only one
            # (wasted) tile is re-fetched at the phase transition.
            pl.BlockSpec((1, Cin, tk), lambda n, p, k: (n, 0, k * (1 - p))),
            pl.BlockSpec((Cout, Cin), lambda n, p, k: (0, 0)),
            pl.BlockSpec((Cout, 1), lambda n, p, k: (0, 0)),
            pl.BlockSpec((Cout, Cout), lambda n, p, k: (0, 0)),
            pl.BlockSpec((Cout, 1), lambda n, p, k: (0, 0)),
            pl.BlockSpec((Cout, 1), lambda n, p, k: (0, 0)),
        ],
        # phase 0 writes nothing and keeps the output block index constant, so
        # the only HBM writes are the normalized tiles emitted in phase 1.
        out_specs=pl.BlockSpec((1, Cout, tk), lambda n, p, k: (n, 0, p * k)),
        scratch_shapes=[
            pltpu.VMEM((Cout, hw_pad), out_dtype),   # y resident on-chip
            pltpu.VMEM((Cout, 1), jnp.float32),      # sum accumulator
            pltpu.VMEM((Cout, 1), jnp.float32),      # sum-of-squares accumulator
            pltpu.VMEM((Cout, 1), jnp.float32),      # scale = gamma * rsqrt(var+eps)
            pltpu.VMEM((Cout, 1), jnp.float32),      # shift = beta - mean*scale
        ],
        compiler_params=pltpu.CompilerParams(
            dimension_semantics=("parallel", "arbitrary", "arbitrary"),
            vmem_limit_bytes=vmem_limit),
    )(xf, w_bf, b.reshape(Cout, 1), pmat,
      gamma.reshape(Cout, 1), beta.reshape(Cout, 1))
    return out[:, :, :HW] if n_pad else out


def input_proj_gn(x_nchw, w, b, gamma, beta, *, num_groups=32, eps=1e-5,
                  out_dtype=jnp.bfloat16, force_path=None, force_tile=None,
                  vmem_limit=_VMEM_LIMIT):
    """1x1 Conv2d + GroupNorm, channels-first.  (N,Cin,H,W) -> (N,Cout,H*W)."""
    N, Cin, H, W = x_nchw.shape
    Cout = w.shape[0]
    HW = H * W
    # bf16 feature stream (halves the dominant HBM read) + bf16 MXU weights;
    # all accumulation stays f32 inside the kernels.
    xf = x_nchw.reshape(N, Cin, HW).astype(jnp.bfloat16)
    w_bf = w.astype(jnp.bfloat16)
    out_isz = jnp.dtype(out_dtype).itemsize
    fused_bytes = (2 * Cin * HW * 2            # x bf16, double buffered
                   + Cout * HW * 4             # f32 y intermediate
                   + 2 * Cout * HW * out_isz   # out, double buffered
                   + Cout * Cin * 2 + Cout * Cout * 4)
    if force_path is not None:
        path = force_path
    else:
        path = "tiled" if fused_bytes > vmem_limit // 2 else "fused"
    if path == "tiled":
        return _conv1x1_gn_phased(xf, w_bf, b, gamma, beta, num_groups, eps,
                                  out_dtype, vmem_limit, force_tile)
    return _conv1x1_gn_fused(xf, w_bf, b, gamma, beta, num_groups, eps,
                             out_dtype, vmem_limit)


# ----------------------------------------------------------------------------
# Kernel 2: per-object masked mean pooling, HW-tiled reduction with accumulator
# ----------------------------------------------------------------------------
def _masked_mean_kernel(m_ref, f_ref, o_ref, acc_ref, cnt_ref):
    k = pl.program_id(1)

    @pl.when(k == 0)
    def _():
        acc_ref[...] = jnp.zeros_like(acc_ref)
        cnt_ref[...] = jnp.zeros_like(cnt_ref)

    m = m_ref[0]                                            # (Q, tk) bf16 (0/1)
    f = f_ref[0]                                            # (C, tk) bf16
    # TODO(synk): both operands contract on the lane axis; if Mosaic inserts a
    # per-tile vxpose here, feed the feature tile as (tk, C) instead.
    acc_ref[...] += lax.dot_general(m, f, (((1,), (1,)), ((), ())),
                                    preferred_element_type=jnp.float32)   # (Q, C)
    cnt_ref[...] += jnp.sum(m.astype(jnp.float32), axis=1, keepdims=True)

    @pl.when(k == pl.num_programs(1) - 1)
    def _():
        o_ref[0] = (acc_ref[...] / jnp.maximum(cnt_ref[...], 1.0)).astype(o_ref.dtype)


def masked_mean_pool(masks_bqhw, feat_bchw, *, vmem_limit=_VMEM_LIMIT, force_tile=None):
    """masks: (B, Q, HW) 0/1; feat: (B, C, HW) -> (B, Q, C) f32."""
    B, Q, HW = masks_bqhw.shape
    C = feat_bchw.shape[1]
    per_col = 2 * (Q * 2 + C * 2)                 # bf16, double-buffered
    tk = force_tile if force_tile is not None else _pick_hw_tile(HW, per_col, vmem_limit // 2)
    hw_pad = _round_up(HW, tk)
    masks = masks_bqhw.astype(jnp.bfloat16)
    feat = feat_bchw.astype(jnp.bfloat16)
    if hw_pad != HW:   # zero mask columns contribute nothing; count unchanged
        masks = jnp.pad(masks, ((0, 0), (0, 0), (0, hw_pad - HW)))
        feat = jnp.pad(feat, ((0, 0), (0, 0), (0, hw_pad - HW)))
    K = hw_pad // tk
    # TODO(synk): when B == 1, add a C-split parallel axis so both v7x
    # TensorCores get work (needs C/2 to be a multiple of 128).
    return pl.pallas_call(
        _masked_mean_kernel,
        out_shape=jax.ShapeDtypeStruct((B, Q, C), jnp.float32),
        grid=(B, K),
        in_specs=[
            pl.BlockSpec((1, Q, tk), lambda b, k: (b, 0, k)),
            pl.BlockSpec((1, C, tk), lambda b, k: (b, 0, k)),
        ],
        out_specs=pl.BlockSpec((1, Q, C), lambda b, k: (b, 0, 0)),
        scratch_shapes=[pltpu.VMEM((Q, C), jnp.float32),
                        pltpu.VMEM((Q, 1), jnp.float32)],
        compiler_params=pltpu.CompilerParams(
            dimension_semantics=("parallel", "arbitrary"),
            vmem_limit_bytes=vmem_limit),
    )(masks, feat)


# ----------------------------------------------------------------------------
# Kernel 3: plain linear (multiscale_query_proj), rows padded/split into 2 tiles
# ----------------------------------------------------------------------------
def _linear_kernel(x_ref, w_ref, b_ref, o_ref):
    o_ref[...] = (jnp.dot(x_ref[...], w_ref[...], preferred_element_type=jnp.float32)
                  + b_ref[...]).astype(o_ref.dtype)


def linear(x2d, w, b, *, vmem_limit=_VMEM_LIMIT):
    M, Din = x2d.shape
    Dout = w.shape[1]
    Mp = max(_round_up(M, 16), 16)
    tm = Mp // 2                                 # >=2 row tiles (both v7x TCs)
    x_p = x2d.astype(jnp.bfloat16)
    if Mp != M:
        x_p = jnp.pad(x_p, ((0, Mp - M), (0, 0)))
    out = pl.pallas_call(
        _linear_kernel,
        out_shape=jax.ShapeDtypeStruct((Mp, Dout), jnp.float32),
        grid=(Mp // tm,),
        in_specs=[
            pl.BlockSpec((tm, Din), lambda i: (i, 0)),
            pl.BlockSpec((Din, Dout), lambda i: (0, 0)),
            pl.BlockSpec((1, Dout), lambda i: (0, 0)),
        ],
        out_specs=pl.BlockSpec((tm, Dout), lambda i: (i, 0)),
        compiler_params=pltpu.CompilerParams(
            dimension_semantics=("parallel",), vmem_limit_bytes=vmem_limit),
    )(x_p, w.astype(jnp.bfloat16), b.reshape(1, Dout).astype(jnp.float32))
    return out[:M] if Mp != M else out


# ----------------------------------------------------------------------------
# Kernel 4: fused prediction heads; the three hs-consuming matmuls are merged
#           into one wide bf16 matmul, output packed in registers and written
#           with a single lane-dense store [class | box(sigmoid) | vector | pad]
# ----------------------------------------------------------------------------
def _heads_kernel(hs_ref, wh_ref, bh_ref,
                  bw2_ref, bb2_ref, bw3_ref, bb3_ref,
                  vw2_ref, vb2_ref, vw3_ref, vb3_ref,
                  out_ref, *, d, vh, nc, pad):
    h = hs_ref[...]                                              # (tm, D) bf16
    # merged first layer: [box_w1 | vec_w1 | class_w]
    fused = jnp.dot(h, wh_ref[...], preferred_element_type=jnp.float32) + bh_ref[...]
    t = jnp.maximum(fused[:, 0:d], 0.0)
    v = jnp.maximum(fused[:, d:d + vh], 0.0)
    cls = fused[:, d + vh:d + vh + nc]

    def lin(x, w_ref, b_ref):
        return jnp.dot(x.astype(jnp.bfloat16), w_ref[...],
                       preferred_element_type=jnp.float32) + b_ref[...]

    t = jnp.maximum(lin(t, bw2_ref, bb2_ref), 0.0)
    # TODO(synk): reference-point add from the deformable decoder is external;
    # plain sigmoid is applied as in the reference's non-two-stage path.
    box = jax.nn.sigmoid(lin(t, bw3_ref, bb3_ref))
    v = jnp.maximum(lin(v, vw2_ref, vb2_ref), 0.0)
    vec = lin(v, vw3_ref, vb3_ref)

    pieces = [cls, box, vec]
    if pad:
        pieces.append(jnp.zeros((cls.shape[0], pad), jnp.float32))
    out_ref[...] = jnp.concatenate(pieces, axis=-1).astype(out_ref.dtype)


def prediction_heads(hs_flat, params, *, vmem_limit=_VMEM_LIMIT):
    """hs_flat: (L*B*Q, D) -> packed (L*B*Q, P), P = nc+4+nk rounded up to 128*k."""
    R, D = hs_flat.shape
    nc = params["class_w"].shape[1]
    vh = params["vec_w1"].shape[1]
    nk = params["vec_w3"].shape[1]
    width = nc + 4 + nk
    P = _round_up(width, 128)
    pad = P - width

    Rp = max(_round_up(R, 16), 16)
    tm = Rp // 2                                 # >=2 row tiles (both v7x TCs)
    hs_p = hs_flat.astype(jnp.bfloat16)
    if Rp != R:
        hs_p = jnp.pad(hs_p, ((0, Rp - R), (0, 0)))

    bf = lambda a: a.astype(jnp.bfloat16)
    wh = jnp.concatenate([bf(params["box_w1"]), bf(params["vec_w1"]),
                          bf(params["class_w"])], axis=1)          # (D, D+vh+nc)
    bh = jnp.concatenate([params["box_b1"], params["vec_b1"],
                          params["class_b"]]).reshape(1, -1).astype(jnp.float32)
    wide = D + vh + nc

    def wspec(shape):
        return pl.BlockSpec(shape, lambda i: (0, 0))

    packed = pl.pallas_call(
        functools.partial(_heads_kernel, d=D, vh=vh, nc=nc, pad=pad),
        out_shape=jax.ShapeDtypeStruct((Rp, P), jnp.float32),
        grid=(Rp // tm,),
        in_specs=[
            pl.BlockSpec((tm, D), lambda i: (i, 0)),
            wspec((D, wide)), wspec((1, wide)),
            wspec((D, D)), wspec((1, D)),
            wspec((D, 4)), wspec((1, 4)),
            wspec((vh, vh)), wspec((1, vh)),
            wspec((vh, nk)), wspec((1, nk)),
        ],
        out_specs=pl.BlockSpec((tm, P), lambda i: (i, 0)),
        compiler_params=pltpu.CompilerParams(
            dimension_semantics=("parallel",), vmem_limit_bytes=vmem_limit),
    )(
        hs_p, wh, bh,
        bf(params["box_w2"]), params["box_b2"].reshape(1, D),
        bf(params["box_w3"]), params["box_b3"].reshape(1, 4),
        bf(params["vec_w2"]), params["vec_b2"].reshape(1, vh),
        bf(params["vec_w3"]), params["vec_b3"].reshape(1, nk),
    )
    return packed[:R], nc, nk


# ----------------------------------------------------------------------------
# Plain-JAX glue & references
# ----------------------------------------------------------------------------
def xavier_uniform(key, fan_in, fan_out, shape):
    limit = math.sqrt(6.0 / (fan_in + fan_out))
    return jax.random.uniform(key, shape, jnp.float32, -limit, limit)


def median_mask_index(mask_flat_bool):
    """Index of the (count//2)-th True element (torch.where order)."""
    m = mask_flat_bool.astype(jnp.int32)
    cnt = jnp.sum(m)
    half = cnt // 2
    cum = jnp.cumsum(m)
    return jnp.argmax(cum == (half + 1))
    # TODO(synk): empty-mask fallback (median of full-res mask) in the reference
    # is data-dependent control flow; test masks are guaranteed non-empty.


def _conv_gn_reference(x, w, b, gamma, beta, num_groups, eps):
    """Pure-JAX f32 reference for the conv+GN kernels (sanity checks)."""
    N, Cin, H, W = x.shape
    Cout = w.shape[0]
    y = jnp.einsum("nchw,dc->ndhw", x, w) + b[None, :, None, None]
    yg = y.reshape(N, num_groups, -1)
    mean = yg.mean(-1, keepdims=True)
    var = yg.var(-1, keepdims=True)
    yn = ((yg - mean) * lax.rsqrt(var + eps)).reshape(N, Cout, H, W)
    return yn * gamma[None, :, None, None] + beta[None, :, None, None]


def _masked_mean_reference(m, f):
    num = jnp.einsum("bqh,bch->bqc", m.astype(jnp.float32), f.astype(jnp.float32))
    cnt = jnp.maximum(m.astype(jnp.float32).sum(-1)[..., None], 1.0)
    return num / cnt


def _heads_reference(hs, params):
    cls = hs @ params["class_w"] + params["class_b"]
    t = jax.nn.relu(hs @ params["box_w1"] + params["box_b1"])
    t = jax.nn.relu(t @ params["box_w2"] + params["box_b2"])
    box = jax.nn.sigmoid(t @ params["box_w3"] + params["box_b3"])
    v = jax.nn.relu(hs @ params["vec_w1"] + params["vec_b1"])
    v = jax.nn.relu(v @ params["vec_w2"] + params["vec_b2"])
    vec = v @ params["vec_w3"] + params["vec_b3"]
    return cls, box, vec


def solq_forward(feats, pos_embs, instance_masks, params, cfg):
    """feats[l]: (B*S, Cin_l, H_l, W_l); pos_embs[l]: (B*S, hidden, H_l, W_l);
    instance_masks: (B, num_masks, Himg, Wimg) bool."""
    B, S = cfg["B"], cfg["S"]
    hidden = cfg["hidden"]
    max_objs = cfg["num_queries"]
    num_masks = instance_masks.shape[1]
    L = cfg["num_feature_levels"]

    obj_feats_per_level = []
    obj_pos = None
    for l in range(L):
        _, _, H_l, W_l = feats[l].shape
        HW = H_l * W_l

        # 1) input projection: 1x1 conv + GroupNorm(32, hidden) (Pallas)
        src = input_proj_gn(feats[l], params["proj_w"][l], params["proj_b"][l],
                            params["gn_g"][l], params["gn_b"][l],
                            num_groups=32)                     # (B*S, hidden, HW) bf16
        src0 = src.reshape(B, S, hidden, HW)[:, 0]             # (B, hidden, HW)

        # resize instance masks to feature resolution (bilinear; bool == '!=0')
        m_resized = jax.image.resize(
            instance_masks.astype(jnp.float32),
            (B, num_masks, H_l, W_l), method="bilinear") > 0.0
        m_flat = m_resized.reshape(B, num_masks, HW)
        m_full = jnp.concatenate(
            [m_flat, jnp.zeros((B, max_objs - num_masks, HW), bool)],
            axis=1).astype(jnp.bfloat16)                       # bf16 masks

        # 2) per-object masked mean pooling (Pallas, HW-tiled reduction)
        obj_feats_per_level.append(masked_mean_pool(m_full, src0))   # (B, max_objs, hidden)

        if l == 0:
            # positional embedding sampled at the median masked location (glue)
            pos0 = pos_embs[0].reshape(B, S, hidden, HW)[:, 0]        # (B, hidden, HW)
            idx = jax.vmap(jax.vmap(median_mask_index))(m_flat)
            gathered = jax.vmap(
                lambda pf, ix: jnp.take(pf, ix, axis=1).T)(pos0, idx)  # (B, num_masks, hidden)
            pad_pos = jnp.zeros((B, max_objs - num_masks, hidden), jnp.float32)
            obj_pos = jnp.concatenate([gathered, pad_pos], axis=1)

    obj_mask = jnp.concatenate(
        [jnp.zeros((B, num_masks), bool), jnp.ones((B, max_objs - num_masks), bool)], axis=1)

    # 3) multiscale query projection (Pallas linear)
    obj_feats = jnp.concatenate(obj_feats_per_level, axis=2)   # (B, max_objs, hidden*L)
    q2d = obj_feats.reshape(B * max_objs, hidden * L)
    queries = linear(q2d, params["msq_w"], params["msq_b"]).reshape(B, max_objs, hidden)

    # TODO(synk): backbone + deformable transformer are external modules; replaced
    # by a deterministic stand-in producing hs of shape (num_dec_layers, B, Q, hidden).
    num_dec = cfg["num_dec_layers"]
    base = jnp.tanh(queries + 0.1 * obj_pos)
    hs = jnp.stack([base * (1.0 + 0.05 * l) for l in range(num_dec)], axis=0)

    # 4) prediction heads, all decoder levels folded into one matmul row dim (Pallas)
    hs_flat = hs.reshape(num_dec * B * max_objs, hidden)
    packed, nc, nk = prediction_heads(hs_flat, params)
    packed = packed.reshape(num_dec, B, max_objs, -1)
    logits = packed[..., :nc]
    boxes = packed[..., nc:nc + 4]
    vectors = packed[..., nc + 4:nc + 4 + nk]

    return {
        "pred_logits": logits[-1],
        "pred_boxes": boxes[-1],
        "pred_vectors": vectors[-1],
        "aux_outputs": [
            {"pred_logits": logits[i], "pred_boxes": boxes[i], "pred_vectors": vectors[i]}
            for i in range(num_dec - 1)
        ],
        "obj_masks": obj_mask,
    }


# ----------------------------------------------------------------------------
# Deterministic parameter construction (mirrors SOLQ.__init__ initialisation)
# ----------------------------------------------------------------------------
def make_params(key, cfg):
    hidden = cfg["hidden"]
    L = cfg["num_feature_levels"]
    nc = cfg["num_classes"]
    vh = cfg["vector_hidden_dim"]
    nk = cfg["n_keep"]
    keys = jax.random.split(key, 16)
    params = {}

    params["proj_w"], params["proj_b"] = [], []
    params["gn_g"], params["gn_b"] = [], []
    for l, cin in enumerate(cfg["level_channels"]):
        params["proj_w"].append(xavier_uniform(keys[l], cin, hidden, (hidden, cin)))
        params["proj_b"].append(jnp.zeros((hidden,), jnp.float32))
        params["gn_g"].append(jnp.ones((hidden,), jnp.float32))
        params["gn_b"].append(jnp.zeros((hidden,), jnp.float32))

    params["msq_w"] = xavier_uniform(keys[4], hidden * L, hidden, (hidden * L, hidden))
    params["msq_b"] = jnp.zeros((hidden,), jnp.float32)

    bias_value = -math.log((1 - 0.01) / 0.01)
    params["class_w"] = 0.02 * jax.random.normal(keys[5], (hidden, nc), jnp.float32)
    params["class_b"] = jnp.ones((nc,), jnp.float32) * bias_value

    params["box_w1"] = 0.02 * jax.random.normal(keys[6], (hidden, hidden), jnp.float32)
    params["box_b1"] = jnp.zeros((hidden,), jnp.float32)
    params["box_w2"] = 0.02 * jax.random.normal(keys[7], (hidden, hidden), jnp.float32)
    params["box_b2"] = jnp.zeros((hidden,), jnp.float32)
    params["box_w3"] = jnp.zeros((hidden, 4), jnp.float32)
    params["box_b3"] = jnp.zeros((4,), jnp.float32).at[2:].set(-2.0)

    params["vec_w1"] = 0.02 * jax.random.normal(keys[8], (hidden, vh), jnp.float32)
    params["vec_b1"] = jnp.zeros((vh,), jnp.float32)
    params["vec_w2"] = 0.02 * jax.random.normal(keys[9], (vh, vh), jnp.float32)
    params["vec_b2"] = jnp.zeros((vh,), jnp.float32)
    params["vec_w3"] = jnp.zeros((vh, nk), jnp.float32)
    params["vec_b3"] = jnp.zeros((nk,), jnp.float32).at[2:].set(-2.0)
    return params


if __name__ == "__main__":
    cfg = {
        "B": 2, "S": 1,
        "hidden": 32,
        "num_classes": 5,
        "num_queries": 8,
        "num_feature_levels": 2,
        "num_dec_layers": 3,
        "n_keep": 16,
        "vector_hidden_dim": 32,
        "level_channels": [8, 16],
        "level_spatial": [(16, 16), (8, 8)],
        "img_size": (32, 32),
        "num_masks": 3,
    }
    key = jax.random.PRNGKey(0)
    k_feat, k_pos, k_par, k_chk = jax.random.split(key, 4)

    B, S = cfg["B"], cfg["S"]
    feats, pos_embs = [], []
    fkeys = jax.random.split(k_feat, cfg["num_feature_levels"])
    pkeys = jax.random.split(k_pos, cfg["num_feature_levels"])
    for l in range(cfg["num_feature_levels"]):
        cin = cfg["level_channels"][l]
        H, W = cfg["level_spatial"][l]
        feats.append(jax.random.normal(fkeys[l], (B * S, cin, H, W), jnp.float32))
        pos_embs.append(jax.random.normal(pkeys[l], (B * S, cfg["hidden"], H, W), jnp.float32))

    Himg, Wimg = cfg["img_size"]
    inst = jnp.zeros((B, cfg["num_masks"], Himg, Wimg), bool)
    for b in range(B):
        for n in range(cfg["num_masks"]):
            y0, x0 = 4 + 6 * n, 4 + 4 * b
            inst = inst.at[b, n, y0:y0 + 10, x0:x0 + 14].set(True)

    params = make_params(k_par, cfg)

    # ---- full forward ----
    fwd = jax.jit(lambda f, p, m, pr: solq_forward(f, p, m, pr, cfg))
    out = fwd(feats, pos_embs, inst, params)
    jax.block_until_ready(out["pred_logits"])
    jax.block_until_ready(out["pred_boxes"])
    jax.block_until_ready(out["pred_vectors"])

    assert out["pred_logits"].shape == (B, cfg["num_queries"], cfg["num_classes"])
    assert out["pred_boxes"].shape == (B, cfg["num_queries"], 4)
    assert out["pred_vectors"].shape == (B, cfg["num_queries"], cfg["n_keep"])
    assert len(out["aux_outputs"]) == cfg["num_dec_layers"] - 1
    assert not bool(jnp.any(jnp.isnan(out["pred_boxes"])))

    # ---- sanity check A: fused conv+GN vs pure-JAX reference ----
    pw, pb = params["proj_w"][0], params["proj_b"][0]
    gg, gb = params["gn_g"][0], params["gn_b"][0]
    run_fused = jax.jit(functools.partial(input_proj_gn, force_path="fused"))
    run_tiled = jax.jit(functools.partial(input_proj_gn, force_path="tiled", force_tile=128))
    pf = run_fused(feats[0], pw, pb, gg, gb)
    pt = run_tiled(feats[0], pw, pb, gg, gb)        # multi-step phased path (K=2)
    ref = _conv_gn_reference(feats[0], pw, pb, gg, gb, 32, 1e-5)
    pf4 = pf.astype(jnp.float32).reshape(ref.shape)
    pt4 = pt.astype(jnp.float32).reshape(ref.shape)
    assert float(jnp.max(jnp.abs(pf4 - ref))) < 0.2     # bf16 operand tolerance
    assert float(jnp.max(jnp.abs(pt4 - pf4))) < 0.15    # phased path matches fused

    # ---- sanity check B: phased conv+GN on ragged HW (padding + bias correction) ----
    kr = jax.random.split(k_chk, 6)
    x_rag = jax.random.normal(kr[0], (2, 8, 10, 10), jnp.float32)
    pb_r = 0.05 * jax.random.normal(kr[1], (cfg["hidden"],), jnp.float32)
    gg_r = 1.0 + 0.1 * jax.random.normal(kr[2], (cfg["hidden"],), jnp.float32)
    gb_r = 0.05 * jax.random.normal(kr[3], (cfg["hidden"],), jnp.float32)
    run_rag = jax.jit(functools.partial(input_proj_gn, force_path="tiled"))
    p_rag = run_rag(x_rag, pw, pb_r, gg_r, gb_r).astype(jnp.float32)
    ref_rag = _conv_gn_reference(x_rag, pw, pb_r, gg_r, gb_r, 32, 1e-5)
    assert float(jnp.max(jnp.abs(p_rag.reshape(ref_rag.shape) - ref_rag))) < 0.25

    # ---- sanity check C: masked mean pooling (multi-step) ----
    m_chk = (jax.random.uniform(kr[4], (2, 8, 256)) > 0.5).astype(jnp.bfloat16)
    f_chk = jax.random.normal(kr[5], (2, 32, 256), jnp.float32).astype(jnp.bfloat16)
    mm = jax.jit(functools.partial(masked_mean_pool, force_tile=128))(m_chk, f_chk)
    assert float(jnp.max(jnp.abs(mm - _masked_mean_reference(m_chk, f_chk)))) < 0.02

    # ---- sanity check D: fused prediction heads vs pure-JAX reference ----
    hs_chk = 0.5 * jax.random.normal(jax.random.PRNGKey(7), (48, cfg["hidden"]), jnp.float32)
    packed_chk = jax.jit(lambda h: prediction_heads(h, params)[0])(hs_chk)
    cls_r, box_r, vec_r = _heads_reference(hs_chk, params)
    nc, nk = cfg["num_classes"], cfg["n_keep"]
    assert float(jnp.max(jnp.abs(packed_chk[:, :nc] - cls_r))) < 0.05
    assert float(jnp.max(jnp.abs(packed_chk[:, nc:nc + 4] - box_r))) < 0.05
    assert float(jnp.max(jnp.abs(packed_chk[:, nc + 4:nc + 4 + nk] - vec_r))) < 0.05

    print("KERNEL_OK")
</pallas_src>

<mosaic_0001>
module attributes {stable_mosaic.version = 11 : i64} {
  func.func @_masked_mean_kernel(%arg0: i32, %arg1: i32, %arg2: memref<1x8x256xbf16, #tpu.memory_space<vmem>>, %arg3: memref<1x32x256xbf16, #tpu.memory_space<vmem>>, %arg4: memref<1x8x32xf32, #tpu.memory_space<vmem>>, %arg5: memref<8x32xf32, #tpu.memory_space<vmem>>, %arg6: memref<8x1xf32, #tpu.memory_space<vmem>>) attributes {dimension_semantics = [#tpu.dimension_semantics<parallel>, #tpu.dimension_semantics<arbitrary>], iteration_bounds = array<i64: 2, 1>, scalar_prefetch = 0 : i64, scratch_operands = 2 : i64, tpu.core_type = #tpu.core_type<tc>, window_params = [{transform_indices = @transform_0, window_bounds = array<i64: 1, 8, 256>}, {transform_indices = @transform_1, window_bounds = array<i64: 1, 32, 256>}, {transform_indices = @transform_2, window_bounds = array<i64: 1, 8, 32>}]} {
    %c0_i32 = arith.constant 0 : i32
    %0 = arith.cmpi eq, %arg1, %c0_i32 : i32
    %1 = arith.extui %0 : i1 to i32
    %c0_i32_0 = arith.constant 0 : i32
    %2 = arith.cmpi ne, %1, %c0_i32_0 : i32
    scf.if %2 {
      %cst_17 = arith.constant 0.000000e+00 : f32
      %20 = vector.broadcast %cst_17 : f32 to vector<8x32xf32>
      %c0_18 = arith.constant 0 : index
      %c0_19 = arith.constant 0 : index
      %21 = vector.load %arg5[%c0_18, %c0_19] : memref<8x32xf32, #tpu.memory_space<vmem>>, vector<8x32xf32>
      tpu.vector_store %arg5[%c0_18, %c0_19], %20 {strides = array<i32>} : memref<8x32xf32, #tpu.memory_space<vmem>>, vector<8x32xf32>,
      %cst_20 = arith.constant 0.000000e+00 : f32
      %22 = vector.broadcast %cst_20 : f32 to vector<8x1xf32>
      %c0_21 = arith.constant 0 : index
      %c0_22 = arith.constant 0 : index
      %23 = vector.load %arg6[%c0_21, %c0_22] : memref<8x1xf32, #tpu.memory_space<vmem>>, vector<8x1xf32>
      tpu.vector_store %arg6[%c0_21, %c0_22], %22 {strides = array<i32>} : memref<8x1xf32, #tpu.memory_space<vmem>>, vector<8x1xf32>,
    } else {
    }
    %c0 = arith.constant 0 : index
    %c0_1 = arith.constant 0 : index
    %c0_2 = arith.constant 0 : index
    %3 = vector.load %arg2[%c0, %c0_1, %c0_2] : memref<1x8x256xbf16, #tpu.memory_space<vmem>>, vector<1x8x256xbf16>
    %4 = vector.shape_cast %3 : vector<1x8x256xbf16> to vector<8x256xbf16>
    %c0_3 = arith.constant 0 : index
    %c0_4 = arith.constant 0 : index
    %c0_5 = arith.constant 0 : index
    %5 = vector.load %arg3[%c0_3, %c0_4, %c0_5] : memref<1x32x256xbf16, #tpu.memory_space<vmem>>, vector<1x32x256xbf16>
    %6 = vector.shape_cast %5 : vector<1x32x256xbf16> to vector<32x256xbf16>
    %c0_6 = arith.constant 0 : index
    %c0_7 = arith.constant 0 : index
    %7 = vector.load %arg5[%c0_6, %c0_7] : memref<8x32xf32, #tpu.memory_space<vmem>>, vector<8x32xf32>
    %cst = arith.constant dense<0.000000e+00> : vector<8x32xf32>
    %8 = tpu.matmul %4, %6, %cst {dimension_numbers = #tpu.dot_dimension_numbers<[1], [1], [0], [0], [0, 0, 1, 0], [], []>} : vector<8x256xbf16>, vector<32x256xbf16>, vector<8x32xf32> -> vector<8x32xf32>
    %9 = arith.addf %7, %8 : vector<8x32xf32>
    %c0_8 = arith.constant 0 : index
    %c0_9 = arith.constant 0 : index
    %10 = vector.load %arg5[%c0_8, %c0_9] : memref<8x32xf32, #tpu.memory_space<vmem>>, vector<8x32xf32>
    tpu.vector_store %arg5[%c0_8, %c0_9], %9 {strides = array<i32>} : memref<8x32xf32, #tpu.memory_space<vmem>>, vector<8x32xf32>,
    %c0_10 = arith.constant 0 : index
    %c0_11 = arith.constant 0 : index
    %11 = vector.load %arg6[%c0_10, %c0_11] : memref<8x1xf32, #tpu.memory_space<vmem>>, vector<8x1xf32>
    %12 = arith.extf %4 : vector<8x256xbf16> to vector<8x256xf32>
    %cst_12 = arith.constant dense<0.000000e+00> : vector<8xf32>
    %13 = vector.multi_reduction <add>, %12, %cst_12 [1] : vector<8x256xf32> to vector<8xf32>
    %14 = vector.shape_cast %13 : vector<8xf32> to vector<8x1xf32>
    %15 = arith.addf %11, %14 : vector<8x1xf32>
    %c0_13 = arith.constant 0 : index
    %c0_14 = arith.constant 0 : index
    %16 = vector.load %arg6[%c0_13, %c0_14] : memref<8x1xf32, #tpu.memory_space<vmem>>, vector<8x1xf32>
    tpu.vector_store %arg6[%c0_13, %c0_14], %15 {strides = array<i32>} : memref<8x1xf32, #tpu.memory_space<vmem>>, vector<8x1xf32>,
    %c0_i32_15 = arith.constant 0 : i32
    %17 = arith.cmpi eq, %arg1, %c0_i32_15 : i32
    %18 = arith.extui %17 : i1 to i32
    %c0_i32_16 = arith.constant 0 : i32
    %19 = arith.cmpi ne, %18, %c0_i32_16 : i32
    scf.if %19 {
      %c0_17 = arith.constant 0 : index
      %c0_18 = arith.constant 0 : index
      %20 = vector.load %arg5[%c0_17, %c0_18] : memref<8x32xf32, #tpu.memory_space<vmem>>, vector<8x32xf32>
      %c0_19 = arith.constant 0 : index
      %c0_20 = arith.constant 0 : index
      %21 = vector.load %arg6[%c0_19, %c0_20] : memref<8x1xf32, #tpu.memory_space<vmem>>, vector<8x1xf32>
      %cst_21 = arith.constant 1.000000e+00 : f32
      %22 = vector.broadcast %cst_21 : f32 to vector<8x1xf32>
      %23 = arith.maximumf %21, %22 : vector<8x1xf32>
      %24 = vector.broadcast %23 : vector<8x1xf32> to vector<8x32xf32>
      %25 = arith.divf %20, %24 : vector<8x32xf32>
      %c0_22 = arith.constant 0 : index
      %c0_23 = arith.constant 0 : index
      %c0_24 = arith.constant 0 : index
      %26 = vector.load %arg4[%c0_22, %c0_23, %c0_24] : memref<1x8x32xf32, #tpu.memory_space<vmem>>, vector<1x8x32xf32>
      %27 = vector.shape_cast %26 : vector<1x8x32xf32> to vector<8x32xf32>
      %28 = vector.shape_cast %25 : vector<8x32xf32> to vector<1x8x32xf32>
      tpu.vector_store %arg4[%c0_22, %c0_23, %c0_24], %28 {strides = array<i32>} : memref<1x8x32xf32, #tpu.memory_space<vmem>>, vector<1x8x32xf32>,
    } else {
    }
    return
  }
  func.func @transform_0(%arg0: i32, %arg1: i32) -> (i32, i32, i32) {
    %c0_i32 = arith.constant 0 : i32
    %c0_i32_0 = arith.constant 0 : i32
    return %arg0, %c0_i32, %arg1 : i32, i32, i32
  }
  func.func @transform_1(%arg0: i32, %arg1: i32) -> (i32, i32, i32) {
    %c0_i32 = arith.constant 0 : i32
    %c0_i32_0 = arith.constant 0 : i32
    return %arg0, %c0_i32, %arg1 : i32, i32, i32
  }
  func.func @transform_2(%arg0: i32, %arg1: i32) -> (i32, i32, i32) {
    %c0_i32 = arith.constant 0 : i32
    %c0_i32_0 = arith.constant 0 : i32
    %c0_i32_1 = arith.constant 0 : i32
    return %arg0, %c0_i32, %c0_i32_0 : i32, i32, i32
  }
}

module attributes {stable_mosaic.version = 11 : i64} {
  func.func @_conv1x1_gn_fused_kernel(%arg0: i32, %arg1: memref<1x8x256xbf16, #tpu.memory_space<vmem>>, %arg2: memref<32x8xbf16, #tpu.memory_space<vmem>>, %arg3: memref<32x1xf32, #tpu.memory_space<vmem>>, %arg4: memref<32x32xf32, #tpu.memory_space<vmem>>, %arg5: memref<32x1xf32, #tpu.memory_space<vmem>>, %arg6: memref<32x1xf32, #tpu.memory_space<vmem>>, %arg7: memref<1x32x256xbf16, #tpu.memory_space<vmem>>) attributes {dimension_semantics = [#tpu.dimension_semantics<parallel>], iteration_bounds = array<i64: 2>, scalar_prefetch = 0 : i64, scratch_operands = 0 : i64, tpu.core_type = #tpu.core_type<tc>, window_params = [{transform_indices = @transform_0, window_bounds = array<i64: 1, 8, 256>}, {pipeline_mode = #tpu.pipeline_mode<synchronous>, transform_indices = @transform_1, window_bounds = array<i64: 32, 8>}, {pipeline_mode = #tpu.pipeline_mode<synchronous>, transform_indices = @transform_2, window_bounds = array<i64: 32, 1>}, {pipeline_mode = #tpu.pipeline_mode<synchronous>, transform_indices = @transform_3, window_bounds = array<i64: 32, 32>}, {pipeline_mode = #tpu.pipeline_mode<synchronous>, transform_indices = @transform_4, window_bounds = array<i64: 32, 1>}, {pipeline_mode = #tpu.pipeline_mode<synchronous>, transform_indices = @transform_5, window_bounds = array<i64: 32, 1>}, {transform_indices = @transform_6, window_bounds = array<i64: 1, 32, 256>}]} {
    %c0 = arith.constant 0 : index
    %c0_0 = arith.constant 0 : index
    %c0_1 = arith.constant 0 : index
    %0 = vector.load %arg1[%c0, %c0_0, %c0_1] : memref<1x8x256xbf16, #tpu.memory_space<vmem>>, vector<1x8x256xbf16>
    %1 = vector.shape_cast %0 : vector<1x8x256xbf16> to vector<8x256xbf16>
    %c0_2 = arith.constant 0 : index
    %c0_3 = arith.constant 0 : index
    %2 = vector.load %arg2[%c0_2, %c0_3] : memref<32x8xbf16, #tpu.memory_space<vmem>>, vector<32x8xbf16>
    %cst = arith.constant dense<0.000000e+00> : vector<32x256xf32>
    %3 = tpu.matmul %2, %1, %cst {dimension_numbers = #tpu.dot_dimension_numbers<[1], [0], [0], [1], [0, 0, 1, 1], [], []>} : vector<32x8xbf16>, vector<8x256xbf16>, vector<32x256xf32> -> vector<32x256xf32>
    %c0_4 = arith.constant 0 : index
    %c0_5 = arith.constant 0 : index
    %4 = vector.load %arg3[%c0_4, %c0_5] : memref<32x1xf32, #tpu.memory_space<vmem>>, vector<32x1xf32>
    %5 = vector.broadcast %4 : vector<32x1xf32> to vector<32x256xf32>
    %6 = arith.addf %3, %5 : vector<32x256xf32>
    %cst_6 = arith.constant dense<0.000000e+00> : vector<32xf32>
    %7 = vector.multi_reduction <add>, %6, %cst_6 [1] : vector<32x256xf32> to vector<32xf32>
    %8 = vector.shape_cast %7 : vector<32xf32> to vector<32x1xf32>
    %9 = arith.mulf %6, %6 : vector<32x256xf32>
    %cst_7 = arith.constant dense<0.000000e+00> : vector<32xf32>
    %10 = vector.multi_reduction <add>, %9, %cst_7 [1] : vector<32x256xf32> to vector<32xf32>
    %11 = vector.shape_cast %10 : vector<32xf32> to vector<32x1xf32>
    %c0_8 = arith.constant 0 : index
    %c0_9 = arith.constant 0 : index
    %12 = vector.load %arg4[%c0_8, %c0_9] : memref<32x32xf32, #tpu.memory_space<vmem>>, vector<32x32xf32>
    %13 = tpu.concatenate %8, %11 in 1 : vector<32x1xf32>, vector<32x1xf32> -> vector<32x2xf32>
    %cst_10 = arith.constant dense<0.000000e+00> : vector<32x2xf32>
    %14 = tpu.matmul %12, %13, %cst_10 {dimension_numbers = #tpu.dot_dimension_numbers<[1], [0], [0], [1], [0, 0, 1, 1], [], []>} : vector<32x32xf32>, vector<32x2xf32>, vector<32x2xf32> -> vector<32x2xf32>
    %15 = vector.extract_strided_slice %14 {offsets = [0, 0], sizes = [32, 1], strides = [1, 1]} : vector<32x2xf32> to vector<32x1xf32>
    %16 = vector.extract_strided_slice %14 {offsets = [0, 1], sizes = [32, 1], strides = [1, 1]} : vector<32x2xf32> to vector<32x1xf32>
    %17 = arith.mulf %15, %15 : vector<32x1xf32>
    %18 = arith.subf %16, %17 : vector<32x1xf32>
    %cst_11 = arith.constant 0.000000e+00 : f32
    %19 = vector.broadcast %cst_11 : f32 to vector<32x1xf32>
    %20 = arith.maximumf %18, %19 : vector<32x1xf32>
    %21 = vector.broadcast %15 : vector<32x1xf32> to vector<32x256xf32>
    %22 = arith.subf %6, %21 : vector<32x256xf32>
    %cst_12 = arith.constant 9.99999974E-6 : f32
    %23 = vector.broadcast %cst_12 : f32 to vector<32x1xf32>
    %24 = arith.addf %20, %23 : vector<32x1xf32>
    %25 = math.rsqrt %24 : vector<32x1xf32>
    %26 = vector.broadcast %25 : vector<32x1xf32> to vector<32x256xf32>
    %27 = arith.mulf %22, %26 : vector<32x256xf32>
    %c0_13 = arith.constant 0 : index
    %c0_14 = arith.constant 0 : index
    %28 = vector.load %arg5[%c0_13, %c0_14] : memref<32x1xf32, #tpu.memory_space<vmem>>, vector<32x1xf32>
    %29 = vector.broadcast %28 : vector<32x1xf32> to vector<32x256xf32>
    %30 = arith.mulf %27, %29 : vector<32x256xf32>
    %c0_15 = arith.constant 0 : index
    %c0_16 = arith.constant 0 : index
    %31 = vector.load %arg6[%c0_15, %c0_16] : memref<32x1xf32, #tpu.memory_space<vmem>>, vector<32x1xf32>
    %32 = vector.broadcast %31 : vector<32x1xf32> to vector<32x256xf32>
    %33 = arith.addf %30, %32 : vector<32x256xf32>
    %34 = arith.truncf %33 : vector<32x256xf32> to vector<32x256xbf16>
    %c0_17 = arith.constant 0 : index
    %c0_18 = arith.constant 0 : index
    %c0_19 = arith.constant 0 : index
    %35 = vector.load %arg7[%c0_17, %c0_18, %c0_19] : memref<1x32x256xbf16, #tpu.memory_space<vmem>>, vector<1x32x256xbf16>
    %36 = vector.shape_cast %35 : vector<1x32x256xbf16> to vector<32x256xbf16>
    %37 = vector.shape_cast %34 : vector<32x256xbf16> to vector<1x32x256xbf16>
    tpu.vector_store %arg7[%c0_17, %c0_18, %c0_19], %37 {strides = array<i32>} : memref<1x32x256xbf16, #tpu.memory_space<vmem>>, vector<1x32x256xbf16>,
    return
  }
  func.func @transform_0(%arg0: i32) -> (i32, i32, i32) {
    %c0_i32 = arith.constant 0 : i32
    %c0_i32_0 = arith.constant 0 : i32
    %c0_i32_1 = arith.constant 0 : i32
    return %arg0, %c0_i32, %c0_i32_0 : i32, i32, i32
  }
  func.func @transform_1(%arg0: i32) -> (i32, i32) {
    %c0_i32 = arith.constant 0 : i32
    %c0_i32_0 = arith.constant 0 : i32
    %c0_i32_1 = arith.constant 0 : i32
    return %c0_i32, %c0_i32_0 : i32, i32
  }
  func.func @transform_2(%arg0: i32) -> (i32, i32) {
    %c0_i32 = arith.constant 0 : i32
    %c0_i32_0 = arith.constant 0 : i32
    %c0_i32_1 = arith.constant 0 : i32
    return %c0_i32, %c0_i32_0 : i32, i32
  }
  func.func @transform_3(%arg0: i32) -> (i32, i32) {
    %c0_i32 = arith.constant 0 : i32
    %c0_i32_0 = arith.constant 0 : i32
    %c0_i32_1 = arith.constant 0 : i32
    return %c0_i32, %c0_i32_0 : i32, i32
  }
  func.func @transform_4(%arg0: i32) -> (i32, i32) {
    %c0_i32 = arith.constant 0 : i32
    %c0_i32_0 = arith.constant 0 : i32
    %c0_i32_1 = arith.constant 0 : i32
    return %c0_i32, %c0_i32_0 : i32, i32
  }
  func.func @transform_5(%arg0: i32) -> (i32, i32) {
    %c0_i32 = arith.constant 0 : i32
    %c0_i32_0 = arith.constant 0 : i32
    %c0_i32_1 = arith.constant 0 : i32
    return %c0_i32, %c0_i32_0 : i32, i32
  }
  func.func @transform_6(%arg0: i32) -> (i32, i32, i32) {
    %c0_i32 = arith.constant 0 : i32
    %c0_i32_0 = arith.constant 0 : i32
    %c0_i32_1 = arith.constant 0 : i32
    return %arg0, %c0_i32, %c0_i32_0 : i32, i32, i32
  }
}

module attributes {stable_mosaic.version = 11 : i64} {
  func.func @_masked_mean_kernel(%arg0: i32, %arg1: i32, %arg2: memref<1x8x128xbf16, #tpu.memory_space<vmem>>, %arg3: memref<1x32x128xbf16, #tpu.memory_space<vmem>>, %arg4: memref<1x8x32xf32, #tpu.memory_space<vmem>>, %arg5: memref<8x32xf32, #tpu.memory_space<vmem>>, %arg6: memref<8x1xf32, #tpu.memory_space<vmem>>) attributes {dimension_semantics = [#tpu.dimension_semantics<parallel>, #tpu.dimension_semantics<arbitrary>], iteration_bounds = array<i64: 2, 1>, scalar_prefetch = 0 : i64, scratch_operands = 2 : i64, tpu.core_type = #tpu.core_type<tc>, window_params = [{transform_indices = @transform_0, window_bounds = array<i64: 1, 8, 128>}, {transform_indices = @transform_1, window_bounds = array<i64: 1, 32, 128>}, {transform_indices = @transform_2, window_bounds = array<i64: 1, 8, 32>}]} {
    %c0_i32 = arith.constant 0 : i32
    %0 = arith.cmpi eq, %arg1, %c0_i32 : i32
    %1 = arith.extui %0 : i1 to i32
    %c0_i32_0 = arith.constant 0 : i32
    %2 = arith.cmpi ne, %1, %c0_i32_0 : i32
    scf.if %2 {
      %cst_17 = arith.constant 0.000000e+00 : f32
      %20 = vector.broadcast %cst_17 : f32 to vector<8x32xf32>
      %c0_18 = arith.constant 0 : index
      %c0_19 = arith.constant 0 : index
      %21 = vector.load %arg5[%c0_18, %c0_19] : memref<8x32xf32, #tpu.memory_space<vmem>>, vector<8x32xf32>
      tpu.vector_store %arg5[%c0_18, %c0_19], %20 {strides = array<i32>} : memref<8x32xf32, #tpu.memory_space<vmem>>, vector<8x32xf32>,
      %cst_20 = arith.constant 0.000000e+00 : f32
      %22 = vector.broadcast %cst_20 : f32 to vector<8x1xf32>
      %c0_21 = arith.constant 0 : index
      %c0_22 = arith.constant 0 : index
      %23 = vector.load %arg6[%c0_21, %c0_22] : memref<8x1xf32, #tpu.memory_space<vmem>>, vector<8x1xf32>
      tpu.vector_store %arg6[%c0_21, %c0_22], %22 {strides = array<i32>} : memref<8x1xf32, #tpu.memory_space<vmem>>, vector<8x1xf32>,
    } else {
    }
    %c0 = arith.constant 0 : index
    %c0_1 = arith.constant 0 : index
    %c0_2 = arith.constant 0 : index
    %3 = vector.load %arg2[%c0, %c0_1, %c0_2] : memref<1x8x128xbf16, #tpu.memory_space<vmem>>, vector<1x8x128xbf16>
    %4 = vector.shape_cast %3 : vector<1x8x128xbf16> to vector<8x128xbf16>
    %c0_3 = arith.constant 0 : index
    %c0_4 = arith.constant 0 : index
    %c0_5 = arith.constant 0 : index
    %5 = vector.load %arg3[%c0_3, %c0_4, %c0_5] : memref<1x32x128xbf16, #tpu.memory_space<vmem>>, vector<1x32x128xbf16>
    %6 = vector.shape_cast %5 : vector<1x32x128xbf16> to vector<32x128xbf16>
    %c0_6 = arith.constant 0 : index
    %c0_7 = arith.constant 0 : index
    %7 = vector.load %arg5[%c0_6, %c0_7] : memref<8x32xf32, #tpu.memory_space<vmem>>, vector<8x32xf32>
    %cst = arith.constant dense<0.000000e+00> : vector<8x32xf32>
    %8 = tpu.matmul %4, %6, %cst {dimension_numbers = #tpu.dot_dimension_numbers<[1], [1], [0], [0], [0, 0, 1, 0], [], []>} : vector<8x128xbf16>, vector<32x128xbf16>, vector<8x32xf32> -> vector<8x32xf32>
    %9 = arith.addf %7, %8 : vector<8x32xf32>
    %c0_8 = arith.constant 0 : index
    %c0_9 = arith.constant 0 : index
    %10 = vector.load %arg5[%c0_8, %c0_9] : memref<8x32xf32, #tpu.memory_space<vmem>>, vector<8x32xf32>
    tpu.vector_store %arg5[%c0_8, %c0_9], %9 {strides = array<i32>} : memref<8x32xf32, #tpu.memory_space<vmem>>, vector<8x32xf32>,
    %c0_10 = arith.constant 0 : index
    %c0_11 = arith.constant 0 : index
    %11 = vector.load %arg6[%c0_10, %c0_11] : memref<8x1xf32, #tpu.memory_space<vmem>>, vector<8x1xf32>
    %12 = arith.extf %4 : vector<8x128xbf16> to vector<8x128xf32>
    %cst_12 = arith.constant dense<0.000000e+00> : vector<8xf32>
    %13 = vector.multi_reduction <add>, %12, %cst_12 [1] : vector<8x128xf32> to vector<8xf32>
    %14 = vector.shape_cast %13 : vector<8xf32> to vector<8x1xf32>
    %15 = arith.addf %11, %14 : vector<8x1xf32>
    %c0_13 = arith.constant 0 : index
    %c0_14 = arith.constant 0 : index
    %16 = vector.load %arg6[%c0_13, %c0_14] : memref<8x1xf32, #tpu.memory_space<vmem>>, vector<8x1xf32>
    tpu.vector_store %arg6[%c0_13, %c0_14], %15 {strides = array<i32>} : memref<8x1xf32, #tpu.memory_space<vmem>>, vector<8x1xf32>,
    %c0_i32_15 = arith.constant 0 : i32
    %17 = arith.cmpi eq, %arg1, %c0_i32_15 : i32
    %18 = arith.extui %17 : i1 to i32
    %c0_i32_16 = arith.constant 0 : i32
    %19 = arith.cmpi ne, %18, %c0_i32_16 : i32
    scf.if %19 {
      %c0_17 = arith.constant 0 : index
      %c0_18 = arith.constant 0 : index
      %20 = vector.load %arg5[%c0_17, %c0_18] : memref<8x32xf32, #tpu.memory_space<vmem>>, vector<8x32xf32>
      %c0_19 = arith.constant 0 : index
      %c0_20 = arith.constant 0 : index
      %21 = vector.load %arg6[%c0_19, %c0_20] : memref<8x1xf32, #tpu.memory_space<vmem>>, vector<8x1xf32>
      %cst_21 = arith.constant 1.000000e+00 : f32
      %22 = vector.broadcast %cst_21 : f32 to vector<8x1xf32>
      %23 = arith.maximumf %21, %22 : vector<8x1xf32>
      %24 = vector.broadcast %23 : vector<8x1xf32> to vector<8x32xf32>
      %25 = arith.divf %20, %24 : vector<8x32xf32>
      %c0_22 = arith.constant 0 : index
      %c0_23 = arith.constant 0 : index
      %c0_24 = arith.constant 0 : index
      %26 = vector.load %arg4[%c0_22, %c0_23, %c0_24] : memref<1x8x32xf32, #tpu.memory_space<vmem>>, vector<1x8x32xf32>
      %27 = vector.shape_cast %26 : vector<1x8x32xf32> to vector<8x32xf32>
      %28 = vector.shape_cast %25 : vector<8x32xf32> to vector<1x8x32xf32>
      tpu.vector_store %arg4[%c0_22, %c0_23, %c0_24], %28 {strides = array<i32>} : memref<1x8x32xf32, #tpu.memory_space<vmem>>, vector<1x8x32xf32>,
    } else {
    }
    return
  }
  func.func @transform_0(%arg0: i32, %arg1: i32) -> (i32, i32, i32) {
    %c0_i32 = arith.constant 0 : i32
    %c0_i32_0 = arith.constant 0 : i32
    return %arg0, %c0_i32, %arg1 : i32, i32, i32
  }
  func.func @transform_1(%arg0: i32, %arg1: i32) -> (i32, i32, i32) {
    %c0_i32 = arith.constant 0 : i32
    %c0_i32_0 = arith.constant 0 : i32
    return %arg0, %c0_i32, %arg1 : i32, i32, i32
  }
  func.func @transform_2(%arg0: i32, %arg1: i32) -> (i32, i32, i32) {
    %c0_i32 = arith.constant 0 : i32
    %c0_i32_0 = arith.constant 0 : i32
    %c0_i32_1 = arith.constant 0 : i32
    return %arg0, %c0_i32, %c0_i32_0 : i32, i32, i32
  }
}

module attributes {stable_mosaic.version = 11 : i64} {
  func.func @_conv1x1_gn_fused_kernel(%arg0: i32, %arg1: memref<1x16x64xbf16, #tpu.memory_space<vmem>>, %arg2: memref<32x16xbf16, #tpu.memory_space<vmem>>, %arg3: memref<32x1xf32, #tpu.memory_space<vmem>>, %arg4: memref<32x32xf32, #tpu.memory_space<vmem>>, %arg5: memref<32x1xf32, #tpu.memory_space<vmem>>, %arg6: memref<32x1xf32, #tpu.memory_space<vmem>>, %arg7: memref<1x32x64xbf16, #tpu.memory_space<vmem>>) attributes {dimension_semantics = [#tpu.dimension_semantics<parallel>], iteration_bounds = array<i64: 2>, scalar_prefetch = 0 : i64, scratch_operands = 0 : i64, tpu.core_type = #tpu.core_type<tc>, window_params = [{transform_indices = @transform_0, window_bounds = array<i64: 1, 16, 64>}, {pipeline_mode = #tpu.pipeline_mode<synchronous>, transform_indices = @transform_1, window_bounds = array<i64: 32, 16>}, {pipeline_mode = #tpu.pipeline_mode<synchronous>, transform_indices = @transform_2, window_bounds = array<i64: 32, 1>}, {pipeline_mode = #tpu.pipeline_mode<synchronous>, transform_indices = @transform_3, window_bounds = array<i64: 32, 32>}, {pipeline_mode = #tpu.pipeline_mode<synchronous>, transform_indices = @transform_4, window_bounds = array<i64: 32, 1>}, {pipeline_mode = #tpu.pipeline_mode<synchronous>, transform_indices = @transform_5, window_bounds = array<i64: 32, 1>}, {transform_indices = @transform_6, window_bounds = array<i64: 1, 32, 64>}]} {
    %c0 = arith.constant 0 : index
    %c0_0 = arith.constant 0 : index
    %c0_1 = arith.constant 0 : index
    %0 = vector.load %arg1[%c0, %c0_0, %c0_1] : memref<1x16x64xbf16, #tpu.memory_space<vmem>>, vector<1x16x64xbf16>
    %1 = vector.shape_cast %0 : vector<1x16x64xbf16> to vector<16x64xbf16>
    %c0_2 = arith.constant 0 : index
    %c0_3 = arith.constant 0 : index
    %2 = vector.load %arg2[%c0_2, %c0_3] : memref<32x16xbf16, #tpu.memory_space<vmem>>, vector<32x16xbf16>
    %cst = arith.constant dense<0.000000e+00> : vector<32x64xf32>
    %3 = tpu.matmul %2, %1, %cst {dimension_numbers = #tpu.dot_dimension_numbers<[1], [0], [0], [1], [0, 0, 1, 1], [], []>} : vector<32x16xbf16>, vector<16x64xbf16>, vector<32x64xf32> -> vector<32x64xf32>
    %c0_4 = arith.constant 0 : index
    %c0_5 = arith.constant 0 : index
    %4 = vector.load %arg3[%c0_4, %c0_5] : memref<32x1xf32, #tpu.memory_space<vmem>>, vector<32x1xf32>
    %5 = vector.broadcast %4 : vector<32x1xf32> to vector<32x64xf32>
    %6 = arith.addf %3, %5 : vector<32x64xf32>
    %cst_6 = arith.constant dense<0.000000e+00> : vector<32xf32>
    %7 = vector.multi_reduction <add>, %6, %cst_6 [1] : vector<32x64xf32> to vector<32xf32>
    %8 = vector.shape_cast %7 : vector<32xf32> to vector<32x1xf32>
    %9 = arith.mulf %6, %6 : vector<32x64xf32>
    %cst_7 = arith.constant dense<0.000000e+00> : vector<32xf32>
    %10 = vector.multi_reduction <add>, %9, %cst_7 [1] : vector<32x64xf32> to vector<32xf32>
    %11 = vector.shape_cast %10 : vector<32xf32> to vector<32x1xf32>
    %c0_8 = arith.constant 0 : index
    %c0_9 = arith.constant 0 : index
    %12 = vector.load %arg4[%c0_8, %c0_9] : memref<32x32xf32, #tpu.memory_space<vmem>>, vector<32x32xf32>
    %13 = tpu.concatenate %8, %11 in 1 : vector<32x1xf32>, vector<32x1xf32> -> vector<32x2xf32>
    %cst_10 = arith.constant dense<0.000000e+00> : vector<32x2xf32>
    %14 = tpu.matmul %12, %13, %cst_10 {dimension_numbers = #tpu.dot_dimension_numbers<[1], [0], [0], [1], [0, 0, 1, 1], [], []>} : vector<32x32xf32>, vector<32x2xf32>, vector<32x2xf32> -> vector<32x2xf32>
    %15 = vector.extract_strided_slice %14 {offsets = [0, 0], sizes = [32, 1], strides = [1, 1]} : vector<32x2xf32> to vector<32x1xf32>
    %16 = vector.extract_strided_slice %14 {offsets = [0, 1], sizes = [32, 1], strides = [1, 1]} : vector<32x2xf32> to vector<32x1xf32>
    %17 = arith.mulf %15, %15 : vector<32x1xf32>
    %18 = arith.subf %16, %17 : vector<32x1xf32>
    %cst_11 = arith.constant 0.000000e+00 : f32
    %19 = vector.broadcast %cst_11 : f32 to vector<32x1xf32>
    %20 = arith.maximumf %18, %19 : vector<32x1xf32>
    %21 = vector.broadcast %15 : vector<32x1xf32> to vector<32x64xf32>
    %22 = arith.subf %6, %21 : vector<32x64xf32>
    %cst_12 = arith.constant 9.99999974E-6 : f32
    %23 = vector.broadcast %cst_12 : f32 to vector<32x1xf32>
    %24 = arith.addf %20, %23 : vector<32x1xf32>
    %25 = math.rsqrt %24 : vector<32x1xf32>
    %26 = vector.broadcast %25 : vector<32x1xf32> to vector<32x64xf32>
    %27 = arith.mulf %22, %26 : vector<32x64xf32>
    %c0_13 = arith.constant 0 : index
    %c0_14 = arith.constant 0 : index
    %28 = vector.load %arg5[%c0_13, %c0_14] : memref<32x1xf32, #tpu.memory_space<vmem>>, vector<32x1xf32>
    %29 = vector.broadcast %28 : vector<32x1xf32> to vector<32x64xf32>
    %30 = arith.mulf %27, %29 : vector<32x64xf32>
    %c0_15 = arith.constant 0 : index
    %c0_16 = arith.constant 0 : index
    %31 = vector.load %arg6[%c0_15, %c0_16] : memref<32x1xf32, #tpu.memory_space<vmem>>, vector<32x1xf32>
    %32 = vector.broadcast %31 : vector<32x1xf32> to vector<32x64xf32>
    %33 = arith.addf %30, %32 : vector<32x64xf32>
    %34 = arith.truncf %33 : vector<32x64xf32> to vector<32x64xbf16>
    %c0_17 = arith.constant 0 : index
    %c0_18 = arith.constant 0 : index
    %c0_19 = arith.constant 0 : index
    %35 = vector.load %arg7[%c0_17, %c0_18, %c0_19] : memref<1x32x64xbf16, #tpu.memory_space<vmem>>, vector<1x32x64xbf16>
    %36 = vector.shape_cast %35 : vector<1x32x64xbf16> to vector<32x64xbf16>
    %37 = vector.shape_cast %34 : vector<32x64xbf16> to vector<1x32x64xbf16>
    tpu.vector_store %arg7[%c0_17, %c0_18, %c0_19], %37 {strides = array<i32>} : memref<1x32x64xbf16, #tpu.memory_space<vmem>>, vector<1x32x64xbf16>,
    return
  }
  func.func @transform_0(%arg0: i32) -> (i32, i32, i32) {
    %c0_i32 = arith.constant 0 : i32
    %c0_i32_0 = arith.constant 0 : i32
    %c0_i32_1 = arith.constant 0 : i32
    return %arg0, %c0_i32, %c0_i32_0 : i32, i32, i32
  }
  func.func @transform_1(%arg0: i32) -> (i32, i32) {
    %c0_i32 = arith.constant 0 : i32
    %c0_i32_0 = arith.constant 0 : i32
    %c0_i32_1 = arith.constant 0 : i32
    return %c0_i32, %c0_i32_0 : i32, i32
  }
  func.func @transform_2(%arg0: i32) -> (i32, i32) {
    %c0_i32 = arith.constant 0 : i32
    %c0_i32_0 = arith.constant 0 : i32
    %c0_i32_1 = arith.constant 0 : i32
    return %c0_i32, %c0_i32_0 : i32, i32
  }
  func.func @transform_3(%arg0: i32) -> (i32, i32) {
    %c0_i32 = arith.constant 0 : i32
    %c0_i32_0 = arith.constant 0 : i32
    %c0_i32_1 = arith.constant 0 : i32
    return %c0_i32, %c0_i32_0 : i32, i32
  }
  func.func @transform_4(%arg0: i32) -> (i32, i32) {
    %c0_i32 = arith.constant 0 : i32
    %c0_i32_0 = arith.constant 0 : i32
    %c0_i32_1 = arith.constant 0 : i32
    return %c0_i32, %c0_i32_0 : i32, i32
  }
  func.func @transform_5(%arg0: i32) -> (i32, i32) {
    %c0_i32 = arith.constant 0 : i32
    %c0_i32_0 = arith.constant 0 : i32
    %c0_i32_1 = arith.constant 0 : i32
    return %c0_i32, %c0_i32_0 : i32, i32
  }
  func.func @transform_6(%arg0: i32) -> (i32, i32, i32) {
    %c0_i32 = arith.constant 0 : i32
    %c0_i32_0 = arith.constant 0 : i32
    %c0_i32_1 = arith.constant 0 : i32
    return %arg0, %c0_i32, %c0_i32_0 : i32, i32, i32
  }
}

module attributes {stable_mosaic.version = 11 : i64} {
  func.func @_linear_kernel(%arg0: i32, %arg1: memref<8x64xbf16, #tpu.memory_space<vmem>>, %arg2: memref<64x32xbf16, #tpu.memory_space<vmem>>, %arg3: memref<1x32xf32, #tpu.memory_space<vmem>>, %arg4: memref<8x32xf32, #tpu.memory_space<vmem>>) attributes {dimension_semantics = [#tpu.dimension_semantics<parallel>], iteration_bounds = array<i64: 2>, scalar_prefetch = 0 : i64, scratch_operands = 0 : i64, tpu.core_type = #tpu.core_type<tc>, window_params = [{transform_indices = @transform_0, window_bounds = array<i64: 8, 64>}, {pipeline_mode = #tpu.pipeline_mode<synchronous>, transform_indices = @transform_1, window_bounds = array<i64: 64, 32>}, {pipeline_mode = #tpu.pipeline_mode<synchronous>, transform_indices = @transform_2, window_bounds = array<i64: 1, 32>}, {transform_indices = @transform_3, window_bounds = array<i64: 8, 32>}]} {
    %c0 = arith.constant 0 : index
    %c0_0 = arith.constant 0 : index
    %0 = vector.load %arg1[%c0, %c0_0] : memref<8x64xbf16, #tpu.memory_space<vmem>>, vector<8x64xbf16>
    %c0_1 = arith.constant 0 : index
    %c0_2 = arith.constant 0 : index
    %1 = vector.load %arg2[%c0_1, %c0_2] : memref<64x32xbf16, #tpu.memory_space<vmem>>, vector<64x32xbf16>
    %cst = arith.constant dense<0.000000e+00> : vector<8x32xf32>
    %2 = tpu.matmul %0, %1, %cst {dimension_numbers = #tpu.dot_dimension_numbers<[1], [0], [0], [1], [0, 0, 1, 1], [], []>} : vector<8x64xbf16>, vector<64x32xbf16>, vector<8x32xf32> -> vector<8x32xf32>
    %c0_3 = arith.constant 0 : index
    %c0_4 = arith.constant 0 : index
    %3 = vector.load %arg3[%c0_3, %c0_4] : memref<1x32xf32, #tpu.memory_space<vmem>>, vector<1x32xf32>
    %4 = vector.broadcast %3 : vector<1x32xf32> to vector<8x32xf32>
    %5 = arith.addf %2, %4 : vector<8x32xf32>
    %c0_5 = arith.constant 0 : index
    %c0_6 = arith.constant 0 : index
    %6 = vector.load %arg4[%c0_5, %c0_6] : memref<8x32xf32, #tpu.memory_space<vmem>>, vector<8x32xf32>
    tpu.vector_store %arg4[%c0_5, %c0_6], %5 {strides = array<i32>} : memref<8x32xf32, #tpu.memory_space<vmem>>, vector<8x32xf32>,
    return
  }
  func.func @transform_0(%arg0: i32) -> (i32, i32) {
    %c0_i32 = arith.constant 0 : i32
    %c0_i32_0 = arith.constant 0 : i32
    return %arg0, %c0_i32 : i32, i32
  }
  func.func @transform_1(%arg0: i32) -> (i32, i32) {
    %c0_i32 = arith.constant 0 : i32
    %c0_i32_0 = arith.constant 0 : i32
    %c0_i32_1 = arith.constant 0 : i32
    return %c0_i32, %c0_i32_0 : i32, i32
  }
  func.func @transform_2(%arg0: i32) -> (i32, i32) {
    %c0_i32 = arith.constant 0 : i32
    %c0_i32_0 = arith.constant 0 : i32
    %c0_i32_1 = arith.constant 0 : i32
    return %c0_i32, %c0_i32_0 : i32, i32
  }
  func.func @transform_3(%arg0: i32) -> (i32, i32) {
    %c0_i32 = arith.constant 0 : i32
    %c0_i32_0 = arith.constant 0 : i32
    return %arg0, %c0_i32 : i32, i32
  }
}

module attributes {stable_mosaic.version = 11 : i64} {
  func.func @_heads_kernel(%arg0: i32, %arg1: memref<24x32xbf16, #tpu.memory_space<vmem>>, %arg2: memref<32x69xbf16, #tpu.memory_space<vmem>>, %arg3: memref<1x69xf32, #tpu.memory_space<vmem>>, %arg4: memref<32x32xbf16, #tpu.memory_space<vmem>>, %arg5: memref<1x32xf32, #tpu.memory_space<vmem>>, %arg6: memref<32x4xbf16, #tpu.memory_space<vmem>>, %arg7: memref<1x4xf32, #tpu.memory_space<vmem>>, %arg8: memref<32x32xbf16, #tpu.memory_space<vmem>>, %arg9: memref<1x32xf32, #tpu.memory_space<vmem>>, %arg10: memref<32x16xbf16, #tpu.memory_space<vmem>>, %arg11: memref<1x16xf32, #tpu.memory_space<vmem>>, %arg12: memref<24x128xf32, #tpu.memory_space<vmem>>) attributes {dimension_semantics = [#tpu.dimension_semantics<parallel>], iteration_bounds = array<i64: 2>, scalar_prefetch = 0 : i64, scratch_operands = 0 : i64, tpu.core_type = #tpu.core_type<tc>, window_params = [{transform_indices = @transform_0, window_bounds = array<i64: 24, 32>}, {pipeline_mode = #tpu.pipeline_mode<synchronous>, transform_indices = @transform_1, window_bounds = array<i64: 32, 69>}, {pipeline_mode = #tpu.pipeline_mode<synchronous>, transform_indices = @transform_2, window_bounds = array<i64: 1, 69>}, {pipeline_mode = #tpu.pipeline_mode<synchronous>, transform_indices = @transform_3, window_bounds = array<i64: 32, 32>}, {pipeline_mode = #tpu.pipeline_mode<synchronous>, transform_indices = @transform_4, window_bounds = array<i64: 1, 32>}, {pipeline_mode = #tpu.pipeline_mode<synchronous>, transform_indices = @transform_5, window_bounds = array<i64: 32, 4>}, {pipeline_mode = #tpu.pipeline_mode<synchronous>, transform_indices = @transform_6, window_bounds = array<i64: 1, 4>}, {pipeline_mode = #tpu.pipeline_mode<synchronous>, transform_indices = @transform_7, window_bounds = array<i64: 32, 32>}, {pipeline_mode = #tpu.pipeline_mode<synchronous>, transform_indices = @transform_8, window_bounds = array<i64: 1, 32>}, {pipeline_mode = #tpu.pipeline_mode<synchronous>, transform_indices = @transform_9, window_bounds = array<i64: 32, 16>}, {pipeline_mode = #tpu.pipeline_mode<synchronous>, transform_indices = @transform_10, window_bounds = array<i64: 1, 16>}, {transform_indices = @transform_11, window_bounds = array<i64: 24, 128>}]} {
    %c0 = arith.constant 0 : index
    %c0_0 = arith.constant 0 : index
    %0 = vector.load %arg1[%c0, %c0_0] : memref<24x32xbf16, #tpu.memory_space<vmem>>, vector<24x32xbf16>
    %c0_1 = arith.constant 0 : index
    %c0_2 = arith.constant 0 : index
    %1 = vector.load %arg2[%c0_1, %c0_2] : memref<32x69xbf16, #tpu.memory_space<vmem>>, vector<32x69xbf16>
    %cst = arith.constant dense<0.000000e+00> : vector<24x69xf32>
    %2 = tpu.matmul %0, %1, %cst {dimension_numbers = #tpu.dot_dimension_numbers<[1], [0], [0], [1], [0, 0, 1, 1], [], []>} : vector<24x32xbf16>, vector<32x69xbf16>, vector<24x69xf32> -> vector<24x69xf32>
    %c0_3 = arith.constant 0 : index
    %c0_4 = arith.constant 0 : index
    %3 = vector.load %arg3[%c0_3, %c0_4] : memref<1x69xf32, #tpu.memory_space<vmem>>, vector<1x69xf32>
    %4 = vector.broadcast %3 : vector<1x69xf32> to vector<24x69xf32>
    %5 = arith.addf %2, %4 : vector<24x69xf32>
    %6 = vector.extract_strided_slice %5 {offsets = [0, 0], sizes = [24, 32], strides = [1, 1]} : vector<24x69xf32> to vector<24x32xf32>
    %cst_5 = arith.constant 0.000000e+00 : f32
    %7 = vector.broadcast %cst_5 : f32 to vector<24x32xf32>
    %8 = arith.maximumf %6, %7 : vector<24x32xf32>
    %9 = vector.extract_strided_slice %5 {offsets = [0, 32], sizes = [24, 32], strides = [1, 1]} : vector<24x69xf32> to vector<24x32xf32>
    %cst_6 = arith.constant 0.000000e+00 : f32
    %10 = vector.broadcast %cst_6 : f32 to vector<24x32xf32>
    %11 = arith.maximumf %9, %10 : vector<24x32xf32>
    %12 = vector.extract_strided_slice %5 {offsets = [0, 64], sizes = [24, 5], strides = [1, 1]} : vector<24x69xf32> to vector<24x5xf32>
    %13 = arith.truncf %8 : vector<24x32xf32> to vector<24x32xbf16>
    %c0_7 = arith.constant 0 : index
    %c0_8 = arith.constant 0 : index
    %14 = vector.load %arg4[%c0_7, %c0_8] : memref<32x32xbf16, #tpu.memory_space<vmem>>, vector<32x32xbf16>
    %cst_9 = arith.constant dense<0.000000e+00> : vector<24x32xf32>
    %15 = tpu.matmul %13, %14, %cst_9 {dimension_numbers = #tpu.dot_dimension_numbers<[1], [0], [0], [1], [0, 0, 1, 1], [], []>} : vector<24x32xbf16>, vector<32x32xbf16>, vector<24x32xf32> -> vector<24x32xf32>
    %c0_10 = arith.constant 0 : index
    %c0_11 = arith.constant 0 : index
    %16 = vector.load %arg5[%c0_10, %c0_11] : memref<1x32xf32, #tpu.memory_space<vmem>>, vector<1x32xf32>
    %17 = vector.broadcast %16 : vector<1x32xf32> to vector<24x32xf32>
    %18 = arith.addf %15, %17 : vector<24x32xf32>
    %cst_12 = arith.constant 0.000000e+00 : f32
    %19 = vector.broadcast %cst_12 : f32 to vector<24x32xf32>
    %20 = arith.maximumf %18, %19 : vector<24x32xf32>
    %21 = arith.truncf %20 : vector<24x32xf32> to vector<24x32xbf16>
    %c0_13 = arith.constant 0 : index
    %c0_14 = arith.constant 0 : index
    %22 = vector.load %arg6[%c0_13, %c0_14] : memref<32x4xbf16, #tpu.memory_space<vmem>>, vector<32x4xbf16>
    %cst_15 = arith.constant dense<0.000000e+00> : vector<24x4xf32>
    %23 = tpu.matmul %21, %22, %cst_15 {dimension_numbers = #tpu.dot_dimension_numbers<[1], [0], [0], [1], [0, 0, 1, 1], [], []>} : vector<24x32xbf16>, vector<32x4xbf16>, vector<24x4xf32> -> vector<24x4xf32>
    %c0_16 = arith.constant 0 : index
    %c0_17 = arith.constant 0 : index
    %24 = vector.load %arg7[%c0_16, %c0_17] : memref<1x4xf32, #tpu.memory_space<vmem>>, vector<1x4xf32>
    %25 = vector.broadcast %24 : vector<1x4xf32> to vector<24x4xf32>
    %26 = arith.addf %23, %25 : vector<24x4xf32>
    %27 = arith.negf %26 : vector<24x4xf32>
    %28 = math.exp %27 : vector<24x4xf32>
    %cst_18 = arith.constant 1.000000e+00 : f32
    %29 = vector.broadcast %cst_18 : f32 to vector<24x4xf32>
    %30 = arith.addf %29, %28 : vector<24x4xf32>
    %31 = arith.divf %29, %30 : vector<24x4xf32>
    %32 = arith.truncf %11 : vector<24x32xf32> to vector<24x32xbf16>
    %c0_19 = arith.constant 0 : index
    %c0_20 = arith.constant 0 : index
    %33 = vector.load %arg8[%c0_19, %c0_20] : memref<32x32xbf16, #tpu.memory_space<vmem>>, vector<32x32xbf16>
    %cst_21 = arith.constant dense<0.000000e+00> : vector<24x32xf32>
    %34 = tpu.matmul %32, %33, %cst_21 {dimension_numbers = #tpu.dot_dimension_numbers<[1], [0], [0], [1], [0, 0, 1, 1], [], []>} : vector<24x32xbf16>, vector<32x32xbf16>, vector<24x32xf32> -> vector<24x32xf32>
    %c0_22 = arith.constant 0 : index
    %c0_23 = arith.constant 0 : index
    %35 = vector.load %arg9[%c0_22, %c0_23] : memref<1x32xf32, #tpu.memory_space<vmem>>, vector<1x32xf32>
    %36 = vector.broadcast %35 : vector<1x32xf32> to vector<24x32xf32>
    %37 = arith.addf %34, %36 : vector<24x32xf32>
    %cst_24 = arith.constant 0.000000e+00 : f32
    %38 = vector.broadcast %cst_24 : f32 to vector<24x32xf32>
    %39 = arith.maximumf %37, %38 : vector<24x32xf32>
    %40 = arith.truncf %39 : vector<24x32xf32> to vector<24x32xbf16>
    %c0_25 = arith.constant 0 : index
    %c0_26 = arith.constant 0 : index
    %41 = vector.load %arg10[%c0_25, %c0_26] : memref<32x16xbf16, #tpu.memory_space<vmem>>, vector<32x16xbf16>
    %cst_27 = arith.constant dense<0.000000e+00> : vector<24x16xf32>
    %42 = tpu.matmul %40, %41, %cst_27 {dimension_numbers = #tpu.dot_dimension_numbers<[1], [0], [0], [1], [0, 0, 1, 1], [], []>} : vector<24x32xbf16>, vector<32x16xbf16>, vector<24x16xf32> -> vector<24x16xf32>
    %c0_28 = arith.constant 0 : index
    %c0_29 = arith.constant 0 : index
    %43 = vector.load %arg11[%c0_28, %c0_29] : memref<1x16xf32, #tpu.memory_space<vmem>>, vector<1x16xf32>
    %44 = vector.broadcast %43 : vector<1x16xf32> to vector<24x16xf32>
    %45 = arith.addf %42, %44 : vector<24x16xf32>
    %cst_30 = arith.constant 0.000000e+00 : f32
    %46 = vector.broadcast %cst_30 : f32 to vector<24x103xf32>
    %47 = tpu.concatenate %12, %31, %45, %46 in 1 : vector<24x5xf32>, vector<24x4xf32>, vector<24x16xf32>, vector<24x103xf32> -> vector<24x128xf32>
    %c0_31 = arith.constant 0 : index
    %c0_32 = arith.constant 0 : index
    %48 = vector.load %arg12[%c0_31, %c0_32] : memref<24x128xf32, #tpu.memory_space<vmem>>, vector<24x128xf32>
    tpu.vector_store %arg12[%c0_31, %c0_32], %47 {strides = array<i32>} : memref<24x128xf32, #tpu.memory_space<vmem>>, vector<24x128xf32>,
    return
  }
  func.func @transform_0(%arg0: i32) -> (i32, i32) {
    %c0_i32 = arith.constant 0 : i32
    %c0_i32_0 = arith.constant 0 : i32
    return %arg0, %c0_i32 : i32, i32
  }
  func.func @transform_1(%arg0: i32) -> (i32, i32) {
    %c0_i32 = arith.constant 0 : i32
    %c0_i32_0 = arith.constant 0 : i32
    %c0_i32_1 = arith.constant 0 : i32
    return %c0_i32, %c0_i32_0 : i32, i32
  }
  func.func @transform_2(%arg0: i32) -> (i32, i32) {
    %c0_i32 = arith.constant 0 : i32
    %c0_i32_0 = arith.constant 0 : i32
    %c0_i32_1 = arith.constant 0 : i32
    return %c0_i32, %c0_i32_0 : i32, i32
  }
  func.func @transform_3(%arg0: i32) -> (i32, i32) {
    %c0_i32 = arith.constant 0 : i32
    %c0_i32_0 = arith.constant 0 : i32
    %c0_i32_1 = arith.constant 0 : i32
    return %c0_i32, %c0_i32_0 : i32, i32
  }
  func.func @transform_4(%arg0: i32) -> (i32, i32) {
    %c0_i32 = arith.constant 0 : i32
    %c0_i32_0 = arith.constant 0 : i32
    %c0_i32_1 = arith.constant 0 : i32
    return %c0_i32, %c0_i32_0 : i32, i32
  }
  func.func @transform_5(%arg0: i32) -> (i32, i32) {
    %c0_i32 = arith.constant 0 : i32
    %c0_i32_0 = arith.constant 0 : i32
    %c0_i32_1 = arith.constant 0 : i32
    return %c0_i32, %c0_i32_0 : i32, i32
  }
  func.func @transform_6(%arg0: i32) -> (i32, i32) {
    %c0_i32 = arith.constant 0 : i32
    %c0_i32_0 = arith.constant 0 : i32
    %c0_i32_1 = arith.constant 0 : i32
    return %c0_i32, %c0_i32_0 : i32, i32
  }
  func.func @transform_7(%arg0: i32) -> (i32, i32) {
    %c0_i32 = arith.constant 0 : i32
    %c0_i32_0 = arith.constant 0 : i32
    %c0_i32_1 = arith.constant 0 : i32
    return %c0_i32, %c0_i32_0 : i32, i32
  }
  func.func @transform_8(%arg0: i32) -> (i32, i32) {
    %c0_i32 = arith.constant 0 : i32
    %c0_i32_0 = arith.constant 0 : i32
    %c0_i32_1 = arith.constant 0 : i32
    return %c0_i32, %c0_i32_0 : i32, i32
  }
  func.func @transform_9(%arg0: i32) -> (i32, i32) {
    %c0_i32 = arith.constant 0 : i32
    %c0_i32_0 = arith.constant 0 : i32
    %c0_i32_1 = arith.constant 0 : i32
    return %c0_i32, %c0_i32_0 : i32, i32
  }
  func.func @transform_10(%arg0: i32) -> (i32, i32) {
    %c0_i32 = arith.constant 0 : i32
    %c0_i32_0 = arith.constant 0 : i32
    %c0_i32_1 = arith.constant 0 : i32
    return %c0_i32, %c0_i32_0 : i32, i32
  }
  func.func @transform_11(%arg0: i32) -> (i32, i32) {
    %c0_i32 = arith.constant 0 : i32
    %c0_i32_0 = arith.constant 0 : i32
    return %arg0, %c0_i32 : i32, i32
  }
}

</mosaic_0001>

<llo_original>
// kernel: _lambda_.6
$region0: #{_lambda_.6}
  #allocation0 [shape = 'u32[]', space=smem, size = 0x4, offset = 0x4, fixed_abs, tag = 'smem constant byte address 0x4 - core index']
  #allocation1 [shape = 'u32[72,128]{1,0:T(1,128)}', space=vmem, size = 0x9000, scoped, tag = 'internal scratch']
  %s0 = inlined_call_operand.vmem [shape: bf16[2,8,256], index: 0, kind: input, shape index: {}]
  %s1 = inlined_call_operand.vmem [shape: bf16[32,8], index: 1, kind: input, shape index: {}]
  %s2 = inlined_call_operand.vmem [shape: f32[32,1], index: 2, kind: input, shape index: {}]
  %s3 = inlined_call_operand.vmem [shape: f32[32,32], index: 3, kind: input, shape index: {}]
  %s4 = inlined_call_operand.vmem [shape: f32[32,1], index: 4, kind: input, shape index: {}]
  %s5 = inlined_call_operand.vmem [shape: f32[32,1], index: 5, kind: input, shape index: {}]
  %s6 = inlined_call_operand.vmem [shape: bf16[2,32,256], index: 6, kind: output, shape index: {}]
  %s7 = sld [smem:[#allocation0]]
  $region57: #{_lambda_.6} parent=0
    _
  %s9 = ssub.s32 1, %s7
  %s10 = scalar_select 0, %s9, %s7
  loop: start=0, step=1, limit=4
  $region2: #{_lambda_.6} parent=0 // loop_pre_header
    _
  $region3: #{_lambda_.6} parent=0 // loop_header
    %s12 = sphi 0, %s16
    %p13 = scmp.ge.s32.totalorder %s12, 4
    %s22 = sphi 0, %s24
    %s25 = sphi 0, %s22
    %s26 = sphi 0, %s25
    %s42 = sphi 0, %s26
    %s46 = sphi 0, %s46
    %s48 = sphi 0, %s46
    %s49 = sphi 0, %s48
    %s63 = sphi 0, %s49
    %s67 = sphi 0, %s67
    %s69 = sphi 0, %s67
    %s70 = sphi 0, %s69
    %s84 = sphi 0, %s70
    %s88 = sphi 0, %s88
    %s90 = sphi 0, %s88
    %s91 = sphi 0, %s90
    %s105 = sphi 0, %s91
    %s109 = sphi 0, %s109
    %s111 = sphi 0, %s109
    %s112 = sphi 0, %s111
    %s126 = sphi 0, %s112
    %s130 = sphi 0, %s130
    %s132 = sphi 0, %s130
    %s133 = sphi 0, %s132
    %s147 = sphi 0, %s133
    %s153 = sphi 0, %s155
    %s156 = sphi 0, %s153
    %s157 = sphi 0, %s156
    %s173 = sphi 0, %s157
  $region4: #{_lambda_.6} parent=0 // loop_header_branch
    %15 = sbr.rel (%p13) target = $region8
  $region5: #{_lambda_.6} parent=0 // loop_body
    %s17 = ssub.s32 %s12, 1
    %s18 = ssub.s32 %s12, 2
    %s19 = sadd.s32 %s12, 1
    %s20 = ssub.s32 %s12, %s19
    %p21 = scmp.eq.s32.totalorder %s20, 0
    %s23 = sadd.s32 %s22, 1
    %s24 = scalar_select %p21, %s22, %s23
    %p27 = pneg %p21
    %p28 = scmp.eq.s32.totalorder %s12, 1
    %p29 = por %p27, %p28
    %p30 = scmp.ne.s32.totalorder %s22, %s25
    %p31 = scmp.eq.s32.totalorder %s12, 0
    %p32 = por %p30, %p31
    %p33 = scmp.ne.s32.totalorder %s22, %s25
    %p34 = scmp.eq.s32.totalorder %s17, 1
    %p35 = por %p33, %p34
    %p36 = scmp.ne.s32.totalorder %s25, %s26
    %p37 = scmp.eq.s32.totalorder %s17, 0
    %p38 = por %p36, %p37
    %p39 = scmp.ne.s32.totalorder %s25, %s26
    %p40 = scmp.eq.s32.totalorder %s18, 1
    %p41 = por %p39, %p40
    %p43 = scmp.ne.s32.totalorder %s26, %s42
    %p44 = scmp.eq.s32.totalorder %s18, 0
    %p45 = por %p43, %p44
    %s47 = sadd.s32 %s46, 1
    %p50 = scmp.eq.s32.totalorder %s12, 1
    %p51 = scmp.ne.s32.totalorder %s46, %s48
    %p52 = scmp.eq.s32.totalorder %s12, 0
    %p53 = por %p51, %p52
    %p54 = scmp.ne.s32.totalorder %s46, %s48
    %p55 = scmp.eq.s32.totalorder %s17, 1
    %p56 = por %p54, %p55
    %p57 = scmp.ne.s32.totalorder %s48, %s49
    %p58 = scmp.eq.s32.totalorder %s17, 0
    %p59 = por %p57, %p58
    %p60 = scmp.ne.s32.totalorder %s48, %s49
    %p61 = scmp.eq.s32.totalorder %s18, 1
    %p62 = por %p60, %p61
    %p64 = scmp.ne.s32.totalorder %s49, %s63
    %p65 = scmp.eq.s32.totalorder %s18, 0
    %p66 = por %p64, %p65
    %s68 = sadd.s32 %s67, 1
    %p71 = scmp.eq.s32.totalorder %s12, 1
    %p72 = scmp.ne.s32.totalorder %s67, %s69
    %p73 = scmp.eq.s32.totalorder %s12, 0
    %p74 = por %p72, %p73
    %p75 = scmp.ne.s32.totalorder %s67, %s69
    %p76 = scmp.eq.s32.totalorder %s17, 1
    %p77 = por %p75, %p76
    %p78 = scmp.ne.s32.totalorder %s69, %s70
    %p79 = scmp.eq.s32.totalorder %s17, 0
    %p80 = por %p78, %p79
    %p81 = scmp.ne.s32.totalorder %s69, %s70
    %p82 = scmp.eq.s32.totalorder %s18, 1
    %p83 = por %p81, %p82
    %p85 = scmp.ne.s32.totalorder %s70, %s84
    %p86 = scmp.eq.s32.totalorder %s18, 0
    %p87 = por %p85, %p86
    %s89 = sadd.s32 %s88, 1
    %p92 = scmp.eq.s32.totalorder %s12, 1
    %p93 = scmp.ne.s32.totalorder %s88, %s90
    %p94 = scmp.eq.s32.totalorder %s12, 0
    %p95 = por %p93, %p94
    %p96 = scmp.ne.s32.totalorder %s88, %s90
    %p97 = scmp.eq.s32.totalorder %s17, 1
    %p98 = por %p96, %p97
    %p99 = scmp.ne.s32.totalorder %s90, %s91
    %p100 = scmp.eq.s32.totalorder %s17, 0
    %p101 = por %p99, %p100
    %p102 = scmp.ne.s32.totalorder %s90, %s91
    %p103 = scmp.eq.s32.totalorder %s18, 1
    %p104 = por %p102, %p103
    %p106 = scmp.ne.s32.totalorder %s91, %s105
    %p107 = scmp.eq.s32.totalorder %s18, 0
    %p108 = por %p106, %p107
    %s110 = sadd.s32 %s109, 1
    %p113 = scmp.eq.s32.totalorder %s12, 1
    %p114 = scmp.ne.s32.totalorder %s109, %s111
    %p115 = scmp.eq.s32.totalorder %s12, 0
    %p116 = por %p114, %p115
    %p117 = scmp.ne.s32.totalorder %s109, %s111
    %p118 = scmp.eq.s32.totalorder %s17, 1
    %p119 = por %p117, %p118
    %p120 = scmp.ne.s32.totalorder %s111, %s112
    %p121 = scmp.eq.s32.totalorder %s17, 0
    %p122 = por %p120, %p121
    %p123 = scmp.ne.s32.totalorder %s111, %s112
    %p124 = scmp.eq.s32.totalorder %s18, 1
    %p125 = por %p123, %p124
    %p127 = scmp.ne.s32.totalorder %s112, %s126
    %p128 = scmp.eq.s32.totalorder %s18, 0
    %p129 = por %p127, %p128
    %s131 = sadd.s32 %s130, 1
    %p134 = scmp.eq.s32.totalorder %s12, 1
    %p135 = scmp.ne.s32.totalorder %s130, %s132
    %p136 = scmp.eq.s32.totalorder %s12, 0
    %p137 = por %p135, %p136
    %p138 = scmp.ne.s32.totalorder %s130, %s132
    %p139 = scmp.eq.s32.totalorder %s17, 1
    %p140 = por %p138, %p139
    %p141 = scmp.ne.s32.totalorder %s132, %s133
    %p142 = scmp.eq.s32.totalorder %s17, 0
    %p143 = por %p141, %p142
    %p144 = scmp.ne.s32.totalorder %s132, %s133
    %p145 = scmp.eq.s32.totalorder %s18, 1
    %p146 = por %p144, %p145
    %p148 = scmp.ne.s32.totalorder %s133, %s147
    %p149 = scmp.eq.s32.totalorder %s18, 0
    %p150 = por %p148, %p149
    %s151 = ssub.s32 %s12, %s19
    %p152 = scmp.eq.s32.totalorder %s151, 0
    %s154 = sadd.s32 %s153, 1
    %s155 = scalar_select %p152, %s153, %s154
    %p158 = pneg %p152
    %p159 = scmp.eq.s32.totalorder %s12, 1
    %p160 = por %p158, %p159
    %p161 = scmp.ne.s32.totalorder %s153, %s156
    %p162 = scmp.eq.s32.totalorder %s12, 0
    %p163 = por %p161, %p162
    %p164 = scmp.ne.s32.totalorder %s153, %s156
    %p165 = scmp.eq.s32.totalorder %s17, 1
    %p166 = por %p164, %p165
    %p167 = scmp.ne.s32.totalorder %s156, %s157
    %p168 = scmp.eq.s32.totalorder %s17, 0
    %p169 = por %p167, %p168
    %p170 = scmp.ne.s32.totalorder %s156, %s157
    %p171 = scmp.eq.s32.totalorder %s18, 1
    %p172 = por %p170, %p171
    %p174 = scmp.ne.s32.totalorder %s157, %s173
    %p175 = scmp.eq.s32.totalorder %s18, 0
    %p176 = por %p174, %p175
    %p177 = scmp.le.s32.totalorder 1, %s12
    %p178 = scmp.lt.s32.totalorder %s12, 3
    %p179 = pnand %p177, %p178
    %p180 = pneg %p179
    // Predicated region
    $region9: #{_lambda_.6} parent=5 // pred_check
      _
    $region10: #{_lambda_.6} parent=5 // pred_check_branch
      %182 = sbr.rel (%p179) target = $region12
    $region11: #{_lambda_.6} parent=5 // pred_region
      %s183 = ssub.s32 %s12, 1
      // Predicated region
      $region13: #{_lambda_.6} parent=11 // pred_check
        %p184 = pneg %p59
      $region14: #{_lambda_.6} parent=11 // pred_check_branch
        %186 = sbr.rel (%p184) target = $region16
      $region15: #{_lambda_.6} parent=11 // pred_region
        _
      $region16: #{_lambda_.6} parent=11 // pred_fallthru
        _
      // Predicated region
      $region17: #{_lambda_.6} parent=11 // pred_check
        %p187 = pneg %p80
      $region18: #{_lambda_.6} parent=11 // pred_check_branch
        %189 = sbr.rel (%p187) target = $region20
      $region19: #{_lambda_.6} parent=11 // pred_region
        _
      $region20: #{_lambda_.6} parent=11 // pred_fallthru
        _
      // Predicated region
      $region21: #{_lambda_.6} parent=11 // pred_check
        %p190 = pneg %p101
      $region22: #{_lambda_.6} parent=11 // pred_check_branch
        %192 = sbr.rel (%p190) target = $region24
      $region23: #{_lambda_.6} parent=11 // pred_region
        _
      $region24: #{_lambda_.6} parent=11 // pred_fallthru
        _
      // Predicated region
      $region25: #{_lambda_.6} parent=11 // pred_check
        %p193 = pneg %p122
      $region26: #{_lambda_.6} parent=11 // pred_check_branch
        %195 = sbr.rel (%p193) target = $region28
      $region27: #{_lambda_.6} parent=11 // pred_region
        _
      $region28: #{_lambda_.6} parent=11 // pred_fallthru
        _
      // Predicated region
      $region29: #{_lambda_.6} parent=11 // pred_check
        %p196 = pneg %p143
      $region30: #{_lambda_.6} parent=11 // pred_check_branch
        %198 = sbr.rel (%p196) target = $region32
      $region31: #{_lambda_.6} parent=11 // pred_region
        _
      $region32: #{_lambda_.6} parent=11 // pred_fallthru
        _
    $region12: #{_lambda_.6} parent=5 // pred_fallthru
      _
    %p199 = scmp.lt.s32.totalorder %s12, 2
    // Predicated region
    $region33: #{_lambda_.6} parent=5 // pred_check
      %p200 = pneg %p199
    $region34: #{_lambda_.6} parent=5 // pred_check_branch
      %202 = sbr.rel (%p200) target = $region36
    $region35: #{_lambda_.6} parent=5 // pred_region
      // Predicated region
      $region37: #{_lambda_.6} parent=35 // pred_check
        %p203 = pneg %p32
      $region38: #{_lambda_.6} parent=35 // pred_check_branch
        %205 = sbr.rel (%p203) target = $region40
      $region39: #{_lambda_.6} parent=35 // pred_region
        %p206 = scmp.lt.s32.totalorder %s12, 1
        %s207 = scalar_select %p206, %s12, 1
        %s208 = smul.addr %s207, 2
        %s209 = smul.addr %s208, 4
        %s210 = scalar_lea.vmem %s0, %s209
      $region40: #{_lambda_.6} parent=35 // pred_fallthru
        _
    $region36: #{_lambda_.6} parent=5 // pred_fallthru
      _
    %p211 = scmp.le.s32.totalorder 1, %s12
    %p212 = scmp.lt.s32.totalorder %s12, 3
    %p213 = pnand %p211, %p212
    %p214 = pneg %p213
    // Predicated region
    $region41: #{_lambda_.6} parent=5 // pred_check
      _
    $region42: #{_lambda_.6} parent=5 // pred_check_branch
      %216 = sbr.rel (%p213) target = $region44
    $region43: #{_lambda_.6} parent=5 // pred_region
      %s217 = ssub.s32 %s12, 1
      %p218 = scmp.lt.s32.totalorder %s17, 1
      %s219 = scalar_select %p218, %s17, 1
      %s220 = smul.addr %s219, 2
      %s221 = smul.addr %s220, 4
      %s222 = scalar_lea.vmem %s0, %s221
      %p223 = pneg %p38
      %p224 = pneg %p35
      %p225 = pneg %p59
      %p226 = pneg %p56
      %p227 = pneg %p80
      %p228 = pneg %p77
      %p229 = pneg %p101
      %p230 = pneg %p98
      %p231 = pneg %p122
      %p232 = pneg %p119
      %p233 = pneg %p143
      %p234 = pneg %p140
      %p235 = pneg %p169
      %p236 = pneg %p166
      %p237 = scmp.lt.s32.totalorder %s17, 1
      %s238 = scalar_select %p237, %s17, 1
      %s239 = smul.addr %s238, 8
      %s240 = smul.addr %s239, 4
      %s241 = scalar_lea.vmem %s6, %s240
      %p242 = scmp.lt.s32.totalorder %s17, 1
      %s243 = scalar_select %p242, %s17, 1
      %s244 = smul.addr %s243, 2
      %s245 = smul.addr %s244, 4
      %s246 = scalar_lea.vmem %s0, %s245
      %p247 = scmp.lt.s32.totalorder %s17, 1
      %s248 = scalar_select %p247, %s17, 1
      %s249 = smul.addr %s248, 8
      %s250 = smul.addr %s249, 4
      %s251 = scalar_lea.vmem %s6, %s250
      %v253 = vld [vmem:[%s246] sm:$0xff]
      %v254 = vld [vmem:[%s1] sm:$0xf]
      %v255 = vld [vmem:[%s1 + $0x4] sm:$0xf]
      %v256 = vld [vmem:[%s1 + $0x8] sm:$0xf]
      %v257 = vld [vmem:[%s1 + $0xc] sm:$0xf]
      %v258 = vld [vmem:[%s2] sm:$0xff]
      %v259 = vld [vmem:[%s2 + $0x8] sm:$0xff]
      %v260 = vld [vmem:[%s2 + $0x10] sm:$0xff]
      %v261 = vld [vmem:[%s2 + $0x18] sm:$0xff]
      %263 = vset.pattern.permute.xlu0 0
      %264 = vperm.xlu0 %263, %v258
      %v265 = vpop.permute.xlu0 %264
      %268 = vset.pattern.permute.xlu0 0
      %269 = vperm.xlu0 %268, %v259
      %v270 = vpop.permute.xlu0 %269
      %273 = vset.pattern.permute.xlu0 0
      %274 = vperm.xlu0 %273, %v260
      %v275 = vpop.permute.xlu0 %274
      %278 = vset.pattern.permute.xlu0 0
      %279 = vperm.xlu0 %278, %v261
      %v280 = vpop.permute.xlu0 %279
      %v286 = vunpack.c.l.b16 %v254
      %v287 = vunpack.c.l.b16 %v255
      %v288 = vunpack.c.l.b16 %v256
      %v289 = vunpack.c.l.b16 %v257
      %v290 = vpack.c.b16 %v287, %v286
      %v291 = vpack.c.b16 %v289, %v288
      %v293 = vunpack.c.l.b16 %v253
      %v294 = vunpack.c.h.b16 %v253
      %v295 = vpack.c.b16 %v293, %v293
      %v296 = vpack.c.b16 %v294, %v294
      %vm297 = vcmask 64512
      %v299 = vsel %vm297, %v290, 0
      %v302 = vsel %vm297, %v291, 0
      %vm304 = vcmask 1043456
      %v306 = vsel %vm304, %v295, 0
      %v309 = vsel %vm304, %v296, 0
      %311 = vmatpush.bf16.msra.mxu0 0
      %312 = vmatpush.bf16.msra.mxu0 0
      %313 = vmatpush.bf16.msra.mxu0 0
      %314 = vmatpush.bf16.msra.mxu0 0
      %315 = vmatpush.bf16.msra.mxu0 0
      %316 = vmatpush.bf16.msra.mxu0 0
      %317 = vmatpush.bf16.msra.mxu0 0
      %318 = vmatpush.bf16.msra.mxu0 %v306
      %319 = vmatmul.bf16.gmra.mxu0 %v299
      %v320 = vpop.f32.mrf.mxu0
      %v321 = vadd.f32 %v265, %v320
      %v322 = vpop.f32.mrf.mxu0
      %v323 = vadd.f32 %v270, %v322
      %324 = vmatmul.bf16.gmra.mxu0 %v302
      %v325 = vpop.f32.mrf.mxu0
      %v326 = vadd.f32 %v275, %v325
      %v327 = vpop.f32.mrf.mxu0
      %v328 = vadd.f32 %v280, %v327
      %329 = vdwg.mxu0
      %330 = vmatpush.bf16.msra.mxu0 0
      %331 = vmatpush.bf16.msra.mxu0 0
      %332 = vmatpush.bf16.msra.mxu0 0
      %333 = vmatpush.bf16.msra.mxu0 0
      %334 = vmatpush.bf16.msra.mxu0 0
      %335 = vmatpush.bf16.msra.mxu0 0
      %336 = vmatpush.bf16.msra.mxu0 0
      %337 = vmatpush.bf16.msra.mxu0 %v309
      %338 = vmatmul.bf16.gmra.mxu0 %v299
      %v339 = vpop.f32.mrf.mxu0
      %v340 = vadd.f32 %v265, %v339
      %v341 = vpop.f32.mrf.mxu0
      %v342 = vadd.f32 %v270, %v341
      %343 = vmatmul.bf16.gmra.mxu0 %v302
      %v344 = vpop.f32.mrf.mxu0
      %v345 = vadd.f32 %v275, %v344
      %v346 = vpop.f32.mrf.mxu0
      %v347 = vadd.f32 %v280, %v346
      %348 = vdwg.mxu0
      %v349 = vadd.f32 %v321, %v340
      %350 = vadd.xlane.f32.xlu0 %v349
      %v351 = vpop.xlane.xlu0 %350
      %v352 = vadd.f32 %v323, %v342
      %353 = vadd.xlane.f32.xlu0 %v352
      %v354 = vpop.xlane.xlu0 %353
      %v355 = vadd.f32 %v326, %v345
      %356 = vadd.xlane.f32.xlu0 %v355
      %v357 = vpop.xlane.xlu0 %356
      %v358 = vadd.f32 %v328, %v347
      %359 = vadd.xlane.f32.xlu0 %v358
      %v360 = vpop.xlane.xlu0 %359
      %v361 = vmul.f32 %v321, %v321
      %v362 = vmul.f32 %v340, %v340
      %v363 = vmul.f32 %v323, %v323
      %v364 = vmul.f32 %v342, %v342
      %v365 = vmul.f32 %v326, %v326
      %v366 = vmul.f32 %v345, %v345
      %v367 = vmul.f32 %v328, %v328
      %v368 = vmul.f32 %v347, %v347
      %v369 = vadd.f32 %v361, %v362
      %370 = vadd.xlane.f32.xlu0 %v369
      %v371 = vpop.xlane.xlu0 %370
      %v372 = vadd.f32 %v363, %v364
      %373 = vadd.xlane.f32.xlu0 %v372
      %v374 = vpop.xlane.xlu0 %373
      %v375 = vadd.f32 %v365, %v366
      %376 = vadd.xlane.f32.xlu0 %v375
      %v377 = vpop.xlane.xlu0 %376
      %v378 = vadd.f32 %v367, %v368
      %379 = vadd.xlane.f32.xlu0 %v378
      %v380 = vpop.xlane.xlu0 %379
      %v381 = vld [vmem:[%s3] sm:$0xff]
      %v382 = vld [vmem:[%s3 + $0x8] sm:$0xff]
      %v383 = vld [vmem:[%s3 + $0x10] sm:$0xff]
      %v384 = vld [vmem:[%s3 + $0x18] sm:$0xff]
      %vm385 = vcmask 7168
      %v386 = vsel %vm385, %v351, %v371
      %v387 = vsel %vm385, %v354, %v374
      %v388 = vsel %vm385, %v357, %v377
      %v389 = vsel %vm385, %v360, %v380
      %vm390 = vcmask 261120
      %v392 = vsel %vm390, %v381, 0
      %v395 = vsel %vm390, %v382, 0
      %v398 = vsel %vm390, %v383, 0
      %v401 = vsel %vm390, %v384, 0
      %403 = vmatpush.msra.mxu0 0.0
      %404 = vmatpush.msra.mxu0 0.0
      %405 = vmatpush.msra.mxu0 0.0
      %406 = vmatpush.msra.mxu0 0.0
      %407 = vmatpush.msra.mxu0 0.0
      %408 = vmatpush.msra.mxu0 0.0
      %409 = vmatpush.msra.mxu0 0.0
      %410 = vmatpush.msra.mxu0 0.0
      %411 = vmatpush.msra.mxu0 0.0
      %412 = vmatpush.msra.mxu0 0.0
      %413 = vmatpush.msra.mxu0 0.0
      %414 = vmatpush.msra.mxu0 0.0
      %415 = vmatpush.msra.mxu0 %v389
      %416 = vmatpush.msra.mxu0 %v388
      %417 = vmatpush.msra.mxu0 %v387
      %418 = vmatpush.msra.mxu0 %v386
      %419 = vmatmul.f32.gmra.mxu0 %v392
      %v420 = vpop.f32.mrf.mxu0
      %v421 = vadd.f32 0.0, %v420
      %422 = vmatmul.f32.gmra.mxu0 %v395
      %v423 = vpop.f32.mrf.mxu0
      %v424 = vadd.f32 0.0, %v423
      %425 = vmatmul.f32.gmra.mxu0 %v398
      %v426 = vpop.f32.mrf.mxu0
      %v427 = vadd.f32 0.0, %v426
      %428 = vmatmul.f32.gmra.mxu0 %v401
      %v429 = vpop.f32.mrf.mxu0
      %v430 = vadd.f32 0.0, %v429
      %431 = vdwg.mxu0
      %v432 = vmul.f32 %v421, %v421
      %v433 = vmul.f32 %v424, %v424
      %v434 = vmul.f32 %v427, %v427
      %v435 = vmul.f32 %v430, %v430
      %440 = vrot.lane.b32.xlu0 %v432, 1
      %v441 = vpop.permute.xlu0 %440
      %442 = vrot.lane.b32.xlu0 %v433, 1
      %v443 = vpop.permute.xlu0 %442
      %444 = vrot.lane.b32.xlu0 %v434, 1
      %v445 = vpop.permute.xlu0 %444
      %446 = vrot.lane.b32.xlu0 %v435, 1
      %v447 = vpop.permute.xlu0 %446
      %v452 = vsub.f32 %v421, %v441
      %v453 = vsub.f32 %v424, %v443
      %v454 = vsub.f32 %v427, %v445
      %v455 = vsub.f32 %v430, %v447
      %v456 = vmax.f32 %v452, 0.0
      %v457 = vmax.f32 %v453, 0.0
      %v458 = vmax.f32 %v454, 0.0
      %v459 = vmax.f32 %v455, 0.0
      %461 = vset.pattern.permute.xlu0 0
      %462 = vperm.xlu0 %461, %v421
      %v463 = vpop.permute.xlu0 %462
      %466 = vset.pattern.permute.xlu0 0
      %467 = vperm.xlu0 %466, %v424
      %v468 = vpop.permute.xlu0 %467
      %471 = vset.pattern.permute.xlu0 0
      %472 = vperm.xlu0 %471, %v427
      %v473 = vpop.permute.xlu0 %472
      %476 = vset.pattern.permute.xlu0 0
      %477 = vperm.xlu0 %476, %v430
      %v478 = vpop.permute.xlu0 %477
      %v480 = vsub.f32 %v321, %v463
      %v481 = vsub.f32 %v340, %v463
      %v482 = vsub.f32 %v323, %v468
      %v483 = vsub.f32 %v342, %v468
      %v484 = vsub.f32 %v326, %v473
      %v485 = vsub.f32 %v345, %v473
      %v486 = vsub.f32 %v328, %v478
      %v487 = vsub.f32 %v347, %v478
      %v488 = vadd.f32 %v456, 1e-05
      %v489 = vadd.f32 %v457, 1e-05
      %v490 = vadd.f32 %v458, 1e-05
      %v491 = vadd.f32 %v459, 1e-05
      %v492 = vrsqrt.pop %v488
      %v493 = vmul.f32 %v492, %v488
      %v494 = vmul.f32 %v493, %v492
      %v495 = vmul.f32 0.5, %v494
      %v496 = vsub.f32 1.5, %v495
      %v497 = vmul.f32 %v492, %v496
      %vm498 = vweird.f32 %v488
      %vm499 = vweird.f32 %v492
      %vm500 = vmor %vm498, %vm499
      %v501 = vsel %vm500, %v492, %v497
      %v502 = vrsqrt.pop %v489
      %v503 = vmul.f32 %v502, %v489
      %v504 = vmul.f32 %v503, %v502
      %v505 = vmul.f32 0.5, %v504
      %v506 = vsub.f32 1.5, %v505
      %v507 = vmul.f32 %v502, %v506
      %vm508 = vweird.f32 %v489
      %vm509 = vweird.f32 %v502
      %vm510 = vmor %vm508, %vm509
      %v511 = vsel %vm510, %v502, %v507
      %v512 = vrsqrt.pop %v490
      %v513 = vmul.f32 %v512, %v490
      %v514 = vmul.f32 %v513, %v512
      %v515 = vmul.f32 0.5, %v514
      %v516 = vsub.f32 1.5, %v515
      %v517 = vmul.f32 %v512, %v516
      %vm518 = vweird.f32 %v490
      %vm519 = vweird.f32 %v512
      %vm520 = vmor %vm518, %vm519
      %v521 = vsel %vm520, %v512, %v517
      %v522 = vrsqrt.pop %v491
      %v523 = vmul.f32 %v522, %v491
      %v524 = vmul.f32 %v523, %v522
      %v525 = vmul.f32 0.5, %v524
      %v526 = vsub.f32 1.5, %v525
      %v527 = vmul.f32 %v522, %v526
      %vm528 = vweird.f32 %v491
      %vm529 = vweird.f32 %v522
      %vm530 = vmor %vm528, %vm529
      %v531 = vsel %vm530, %v522, %v527
      %533 = vset.pattern.permute.xlu0 1
      %534 = vperm.xlu0 %533, %v501
      %v535 = vpop.permute.xlu0 %534
      %538 = vset.pattern.permute.xlu0 1
      %539 = vperm.xlu0 %538, %v511
      %v540 = vpop.permute.xlu0 %539
      %543 = vset.pattern.permute.xlu0 1
      %544 = vperm.xlu0 %543, %v521
      %v545 = vpop.permute.xlu0 %544
      %548 = vset.pattern.permute.xlu0 1
      %549 = vperm.xlu0 %548, %v531
      %v550 = vpop.permute.xlu0 %549
      %v552 = vmul.f32 %v480, %v535
      %v553 = vmul.f32 %v481, %v535
      %v554 = vmul.f32 %v482, %v540
      %v555 = vmul.f32 %v483, %v540
      %v556 = vmul.f32 %v484, %v545
      %v557 = vmul.f32 %v485, %v545
      %v558 = vmul.f32 %v486, %v550
      %v559 = vmul.f32 %v487, %v550
      %v560 = vld [vmem:[%s4] sm:$0xff]
      %v561 = vld [vmem:[%s4 + $0x8] sm:$0xff]
      %v562 = vld [vmem:[%s4 + $0x10] sm:$0xff]
      %v563 = vld [vmem:[%s4 + $0x18] sm:$0xff]
      %565 = vset.pattern.permute.xlu0 0
      %566 = vperm.xlu0 %565, %v560
      %v567 = vpop.permute.xlu0 %566
      %570 = vset.pattern.permute.xlu0 0
      %571 = vperm.xlu0 %570, %v561
      %v572 = vpop.permute.xlu0 %571
      %575 = vset.pattern.permute.xlu0 0
      %576 = vperm.xlu0 %575, %v562
      %v577 = vpop.permute.xlu0 %576
      %580 = vset.pattern.permute.xlu0 0
      %581 = vperm.xlu0 %580, %v563
      %v582 = vpop.permute.xlu0 %581
      %v584 = vmul.f32 %v552, %v567
      %v585 = vmul.f32 %v553, %v567
      %v586 = vmul.f32 %v554, %v572
      %v587 = vmul.f32 %v555, %v572
      %v588 = vmul.f32 %v556, %v577
      %v589 = vmul.f32 %v557, %v577
      %v590 = vmul.f32 %v558, %v582
      %v591 = vmul.f32 %v559, %v582
      %v592 = vld [vmem:[%s5] sm:$0xff]
      %v593 = vld [vmem:[%s5 + $0x8] sm:$0xff]
      %v594 = vld [vmem:[%s5 + $0x10] sm:$0xff]
      %v595 = vld [vmem:[%s5 + $0x18] sm:$0xff]
      %597 = vset.pattern.permute.xlu0 0
      %598 = vperm.xlu0 %597, %v592
      %v599 = vpop.permute.xlu0 %598
      %602 = vset.pattern.permute.xlu0 0
      %603 = vperm.xlu0 %602, %v593
      %v604 = vpop.permute.xlu0 %603
      %607 = vset.pattern.permute.xlu0 0
      %608 = vperm.xlu0 %607, %v594
      %v609 = vpop.permute.xlu0 %608
      %612 = vset.pattern.permute.xlu0 0
      %613 = vperm.xlu0 %612, %v595
      %v614 = vpop.permute.xlu0 %613
      %v616 = vadd.f32 %v584, %v599
      %v617 = vadd.f32 %v585, %v599
      %v618 = vadd.f32 %v586, %v604
      %v619 = vadd.f32 %v587, %v604
      %v620 = vadd.f32 %v588, %v609
      %v621 = vadd.f32 %v589, %v609
      %v622 = vadd.f32 %v590, %v614
      %v623 = vadd.f32 %v591, %v614
      %v624 = vpack.c.bf16 %v617, %v616
      %v625 = vpack.c.bf16 %v619, %v618
      %v626 = vpack.c.bf16 %v621, %v620
      %v627 = vpack.c.bf16 %v623, %v622
      %628 = vst [vmem:[%s251] sm:$0xff] %v624
      %629 = vst [vmem:[%s251 + $0x8] sm:$0xff] %v625
      %630 = vst [vmem:[%s251 + $0x10] sm:$0xff] %v626
      %631 = vst [vmem:[%s251 + $0x18] sm:$0xff] %v627
      %p632 = scmp.lt.s32.totalorder %s17, 1
      %s633 = scalar_select %p632, %s17, 1
      %s634 = smul.addr %s633, 8
      %s635 = smul.addr %s634, 4
      %s636 = scalar_lea.vmem %s6, %s635
      // Predicated region
      $region45: #{_lambda_.6} parent=43 // pred_check
        %p637 = pneg %p166
      $region46: #{_lambda_.6} parent=43 // pred_check_branch
        %639 = sbr.rel (%p637) target = $region48
      $region47: #{_lambda_.6} parent=43 // pred_region
        _
      $region48: #{_lambda_.6} parent=43 // pred_fallthru
        _
    $region44: #{_lambda_.6} parent=5 // pred_fallthru
      _
    %p640 = scmp.le.s32.totalorder 2, %s12
    // Predicated region
    $region49: #{_lambda_.6} parent=5 // pred_check
      %p641 = pneg %p640
    $region50: #{_lambda_.6} parent=5 // pred_check_branch
      %643 = sbr.rel (%p641) target = $region52
    $region51: #{_lambda_.6} parent=5 // pred_region
      %s644 = ssub.s32 %s12, 2
      // Predicated region
      $region53: #{_lambda_.6} parent=51 // pred_check
        %p645 = pneg %p172
      $region54: #{_lambda_.6} parent=51 // pred_check_branch
        %647 = sbr.rel (%p645) target = $region56
      $region55: #{_lambda_.6} parent=51 // pred_region
        %p648 = scmp.lt.s32.totalorder %s18, 1
        %s649 = scalar_select %p648, %s18, 1
        %s650 = smul.addr %s649, 8
        %s651 = smul.addr %s650, 4
        %s652 = scalar_lea.vmem %s6, %s651
      $region56: #{_lambda_.6} parent=51 // pred_fallthru
        _
    $region52: #{_lambda_.6} parent=5 // pred_fallthru
      _
  $region6: #{_lambda_.6} parent=0 // loop_footer
    %s16 = sadd.s32 1, %s12
  $region7: #{_lambda_.6} parent=0 // loop_footer_branch
    %11 = sbr.rel target = $region3
  $region8: #{_lambda_.6} parent=0 // loop_exit
    _

// kernel: _lambda_.7
$region0: #{_lambda_.7}
  #allocation0 [shape = 'u32[]', space=smem, size = 0x4, offset = 0x4, fixed_abs, tag = 'smem constant byte address 0x4 - core index']
  #allocation1 [shape = 'u32[72,128]{1,0:T(1,128)}', space=vmem, size = 0x9000, scoped, tag = 'internal scratch']
  #allocation2 [shape = 'f32[8,32]{1,0:T(8,128)}', space=vmem, size = 0x1000, scoped, tag = 'scratch operand']
  #allocation3 [shape = 'f32[8,1]{1,0:T(8,128)}', space=vmem, size = 0x1000, scoped, tag = 'scratch operand']
  %s0 = inlined_call_operand.vmem [shape: bf16[2,8,256], index: 0, kind: input, shape index: {}]
  %s1 = inlined_call_operand.vmem [shape: bf16[2,32,256], index: 1, kind: input, shape index: {}]
  %s2 = inlined_call_operand.vmem [shape: f32[2,8,32], index: 2, kind: output, shape index: {}]
  %s3 = sld [smem:[#allocation0]]
  $region49: #{_lambda_.7} parent=0
    _
  %s5 = ssub.s32 1, %s3
  %s6 = scalar_select 0, %s5, %s3
  loop: start=0, step=1, limit=4
  $region2: #{_lambda_.7} parent=0 // loop_pre_header
    _
  $region3: #{_lambda_.7} parent=0 // loop_header
    %s8 = sphi 0, %s12
    %p9 = scmp.ge.s32.totalorder %s8, 4
    %s15 = sphi 0, %s27
    %s16 = sphi 0, %s23
    %s17 = sphi 0, %s15
    %s18 = sphi 0, %s16
    %s19 = sphi 0, %s17
    %s20 = sphi 0, %s18
    %s32 = sphi 0, %s34
    %s35 = sphi 0, %s32
    %s36 = sphi 0, %s35
    %s52 = sphi 0, %s36
    %s60 = sphi 0, %s62
    %s63 = sphi 0, %s60
    %s64 = sphi 0, %s63
    %s80 = sphi 0, %s64
    %s86 = sphi 0, %s88
    %s89 = sphi 0, %s86
    %s90 = sphi 0, %s89
    %s106 = sphi 0, %s90
  $region4: #{_lambda_.7} parent=0 // loop_header_branch
    %11 = sbr.rel (%p9) target = $region8
  $region5: #{_lambda_.7} parent=0 // loop_body
    %s13 = ssub.s32 %s8, 1
    %s14 = ssub.s32 %s8, 2
    %s21 = sadd.s32 1, %s16
    %p22 = scmp.ge.s32.totalorder %s21, 1
    %s23 = scalar_select %p22, 0, %s21
    %s24 = sadd.s32 1, %s15
    %s25 = scalar_select %p22, %s24, %s15
    %p26 = scmp.ge.s32.totalorder %s25, 2
    %s27 = scalar_select %p26, 0, %s25
    %s28 = ssub.s32 %s15, %s27
    %s29 = ssub.s32 %s16, %s23
    %s30 = sor.u32 %s28, %s29
    %p31 = scmp.eq.s32.totalorder %s30, 0
    %s33 = sadd.s32 %s32, 1
    %s34 = scalar_select %p31, %s32, %s33
    %p37 = pneg %p31
    %p38 = scmp.eq.s32.totalorder %s8, 1
    %p39 = por %p37, %p38
    %p40 = scmp.ne.s32.totalorder %s32, %s35
    %p41 = scmp.eq.s32.totalorder %s8, 0
    %p42 = por %p40, %p41
    %p43 = scmp.ne.s32.totalorder %s32, %s35
    %p44 = scmp.eq.s32.totalorder %s13, 1
    %p45 = por %p43, %p44
    %p46 = scmp.ne.s32.totalorder %s35, %s36
    %p47 = scmp.eq.s32.totalorder %s13, 0
    %p48 = por %p46, %p47
    %p49 = scmp.ne.s32.totalorder %s35, %s36
    %p50 = scmp.eq.s32.totalorder %s14, 1
    %p51 = por %p49, %p50
    %p53 = scmp.ne.s32.totalorder %s36, %s52
    %p54 = scmp.eq.s32.totalorder %s14, 0
    %p55 = por %p53, %p54
    %s56 = ssub.s32 %s15, %s27
    %s57 = ssub.s32 %s16, %s23
    %s58 = sor.u32 %s56, %s57
    %p59 = scmp.eq.s32.totalorder %s58, 0
    %s61 = sadd.s32 %s60, 1
    %s62 = scalar_select %p59, %s60, %s61
    %p65 = pneg %p59
    %p66 = scmp.eq.s32.totalorder %s8, 1
    %p67 = por %p65, %p66
    %p68 = scmp.ne.s32.totalorder %s60, %s63
    %p69 = scmp.eq.s32.totalorder %s8, 0
    %p70 = por %p68, %p69
    %p71 = scmp.ne.s32.totalorder %s60, %s63
    %p72 = scmp.eq.s32.totalorder %s13, 1
    %p73 = por %p71, %p72
    %p74 = scmp.ne.s32.totalorder %s63, %s64
    %p75 = scmp.eq.s32.totalorder %s13, 0
    %p76 = por %p74, %p75
    %p77 = scmp.ne.s32.totalorder %s63, %s64
    %p78 = scmp.eq.s32.totalorder %s14, 1
    %p79 = por %p77, %p78
    %p81 = scmp.ne.s32.totalorder %s64, %s80
    %p82 = scmp.eq.s32.totalorder %s14, 0
    %p83 = por %p81, %p82
    %s84 = ssub.s32 %s15, %s27
    %p85 = scmp.eq.s32.totalorder %s84, 0
    %s87 = sadd.s32 %s86, 1
    %s88 = scalar_select %p85, %s86, %s87
    %p91 = pneg %p85
    %p92 = scmp.eq.s32.totalorder %s8, 1
    %p93 = por %p91, %p92
    %p94 = scmp.ne.s32.totalorder %s86, %s89
    %p95 = scmp.eq.s32.totalorder %s8, 0
    %p96 = por %p94, %p95
    %p97 = scmp.ne.s32.totalorder %s86, %s89
    %p98 = scmp.eq.s32.totalorder %s13, 1
    %p99 = por %p97, %p98
    %p100 = scmp.ne.s32.totalorder %s89, %s90
    %p101 = scmp.eq.s32.totalorder %s13, 0
    %p102 = por %p100, %p101
    %p103 = scmp.ne.s32.totalorder %s89, %s90
    %p104 = scmp.eq.s32.totalorder %s14, 1
    %p105 = por %p103, %p104
    %p107 = scmp.ne.s32.totalorder %s90, %s106
    %p108 = scmp.eq.s32.totalorder %s14, 0
    %p109 = por %p107, %p108
    %p110 = scmp.le.s32.totalorder 1, %s8
    %p111 = scmp.lt.s32.totalorder %s8, 3
    %p112 = pnand %p110, %p111
    %p113 = pneg %p112
    // Predicated region
    $region9: #{_lambda_.7} parent=5 // pred_check
      _
    $region10: #{_lambda_.7} parent=5 // pred_check_branch
      %115 = sbr.rel (%p112) target = $region12
    $region11: #{_lambda_.7} parent=5 // pred_region
      %s116 = ssub.s32 %s8, 1
    $region12: #{_lambda_.7} parent=5 // pred_fallthru
      _
    %p117 = scmp.lt.s32.totalorder %s8, 2
    // Predicated region
    $region13: #{_lambda_.7} parent=5 // pred_check
      %p118 = pneg %p117
    $region14: #{_lambda_.7} parent=5 // pred_check_branch
      %120 = sbr.rel (%p118) target = $region16
    $region15: #{_lambda_.7} parent=5 // pred_region
      // Predicated region
      $region17: #{_lambda_.7} parent=15 // pred_check
        %p121 = pneg %p42
      $region18: #{_lambda_.7} parent=15 // pred_check_branch
        %123 = sbr.rel (%p121) target = $region20
      $region19: #{_lambda_.7} parent=15 // pred_region
        %s124 = smul.u32 2, %s16
        %p125 = scmp.lt.s32.totalorder %s15, 1
        %s126 = scalar_select %p125, %s15, 1
        %p127 = scmp.lt.s32.totalorder %s124, 1
        %s128 = scalar_select %p127, %s124, 1
        %s129 = smul.addr %s126, 2
        %s130 = sadd.s32 %s128, %s129
        %s131 = smul.addr %s130, 4
        %s132 = scalar_lea.vmem %s0, %s131
        %s133 = smul.u32 2, %s16
      $region20: #{_lambda_.7} parent=15 // pred_fallthru
        _
      // Predicated region
      $region21: #{_lambda_.7} parent=15 // pred_check
        %p134 = pneg %p70
      $region22: #{_lambda_.7} parent=15 // pred_check_branch
        %136 = sbr.rel (%p134) target = $region24
      $region23: #{_lambda_.7} parent=15 // pred_region
        %s137 = smul.u32 2, %s16
        %p138 = scmp.lt.s32.totalorder %s15, 1
        %s139 = scalar_select %p138, %s15, 1
        %p140 = scmp.lt.s32.totalorder %s137, 1
        %s141 = scalar_select %p140, %s137, 1
        %s142 = smul.addr %s139, 8
        %s143 = sadd.s32 %s141, %s142
        %s144 = smul.addr %s143, 4
        %s145 = scalar_lea.vmem %s1, %s144
        %s146 = smul.u32 2, %s16
      $region24: #{_lambda_.7} parent=15 // pred_fallthru
        _
    $region16: #{_lambda_.7} parent=5 // pred_fallthru
      _
    %p147 = scmp.le.s32.totalorder 1, %s8
    %p148 = scmp.lt.s32.totalorder %s8, 3
    %p149 = pnand %p147, %p148
    %p150 = pneg %p149
    // Predicated region
    $region25: #{_lambda_.7} parent=5 // pred_check
      _
    $region26: #{_lambda_.7} parent=5 // pred_check_branch
      %152 = sbr.rel (%p149) target = $region28
    $region27: #{_lambda_.7} parent=5 // pred_region
      %s153 = ssub.s32 %s8, 1
      %s154 = smul.u32 2, %s18
      %p155 = scmp.lt.s32.totalorder %s17, 1
      %s156 = scalar_select %p155, %s17, 1
      %p157 = scmp.lt.s32.totalorder %s154, 1
      %s158 = scalar_select %p157, %s154, 1
      %s159 = smul.addr %s156, 2
      %s160 = sadd.s32 %s158, %s159
      %s161 = smul.addr %s160, 4
      %s162 = scalar_lea.vmem %s0, %s161
      %p163 = pneg %p48
      %p164 = pneg %p45
      %s165 = smul.u32 2, %s18
      %p166 = scmp.lt.s32.totalorder %s17, 1
      %s167 = scalar_select %p166, %s17, 1
      %p168 = scmp.lt.s32.totalorder %s165, 1
      %s169 = scalar_select %p168, %s165, 1
      %s170 = smul.addr %s167, 8
      %s171 = sadd.s32 %s169, %s170
      %s172 = smul.addr %s171, 4
      %s173 = scalar_lea.vmem %s1, %s172
      %p174 = pneg %p76
      %p175 = pneg %p73
      %p176 = pneg %p102
      %p177 = pneg %p99
      %p178 = scmp.lt.s32.totalorder %s17, 1
      %s179 = scalar_select %p178, %s17, 1
      %s180 = smul.addr %s179, 8
      %s181 = scalar_lea.vmem %s2, %s180
      %s182 = smul.u32 2, %s18
      %p183 = scmp.lt.s32.totalorder %s17, 1
      %s184 = scalar_select %p183, %s17, 1
      %p185 = scmp.lt.s32.totalorder %s182, 1
      %s186 = scalar_select %p185, %s182, 1
      %s187 = smul.addr %s184, 2
      %s188 = sadd.s32 %s186, %s187
      %s189 = smul.addr %s188, 4
      %s190 = scalar_lea.vmem %s0, %s189
      %s191 = smul.u32 2, %s18
      %s192 = smul.u32 2, %s18
      %p193 = scmp.lt.s32.totalorder %s17, 1
      %s194 = scalar_select %p193, %s17, 1
      %p195 = scmp.lt.s32.totalorder %s192, 1
      %s196 = scalar_select %p195, %s192, 1
      %s197 = smul.addr %s194, 8
      %s198 = sadd.s32 %s196, %s197
      %s199 = smul.addr %s198, 4
      %s200 = scalar_lea.vmem %s1, %s199
      %s201 = smul.u32 2, %s18
      %p202 = scmp.lt.s32.totalorder %s17, 1
      %s203 = scalar_select %p202, %s17, 1
      %s204 = smul.addr %s203, 8
      %s205 = scalar_lea.vmem %s2, %s204
      %p207 = scmp.eq.s32.totalorder %s18, 0
      // Predicated region
      $region29: #{_lambda_.7} parent=27 // pred_check
        %p208 = pneg %p207
      $region30: #{_lambda_.7} parent=27 // pred_check_branch
        %210 = sbr.rel (%p208) target = $region32
      $region31: #{_lambda_.7} parent=27 // pred_region
        %vm211 = vcmask 261120
        %212 = vst.msk [vmem:[#allocation2] sm:$0xff] %vm211, 0.0
        %vm213 = vcmask 7168
        %214 = vst.msk [vmem:[#allocation3] sm:$0xff] %vm213, 0.0
      $region32: #{_lambda_.7} parent=27 // pred_fallthru
        _
      %v215 = vld [vmem:[%s190] sm:$0xff]
      %v216 = vld [vmem:[%s200] sm:$0xff]
      %v217 = vld [vmem:[%s200 + $0x8] sm:$0xff]
      %v218 = vld [vmem:[%s200 + $0x10] sm:$0xff]
      %v219 = vld [vmem:[%s200 + $0x18] sm:$0xff]
      %v220 = vld [vmem:[#allocation2] sm:$0xff]
      %v222 = vunpack.c.l.b16 %v215
      %v223 = vunpack.c.h.b16 %v215
      %v224 = vpack.c.b16 %v222, %v222
      %v225 = vpack.c.b16 %v223, %v223
      %v232 = vunpack.c.l.b16 %v216
      %v233 = vunpack.c.h.b16 %v216
      %v234 = vunpack.c.l.b16 %v217
      %v235 = vunpack.c.h.b16 %v217
      %v236 = vunpack.c.l.b16 %v218
      %v237 = vunpack.c.h.b16 %v218
      %v238 = vunpack.c.l.b16 %v219
      %v239 = vunpack.c.h.b16 %v219
      %v240 = vpack.c.b16 %v234, %v232
      %v241 = vpack.c.b16 %v235, %v233
      %v242 = vpack.c.b16 %v238, %v236
      %v243 = vpack.c.b16 %v239, %v237
      %248 = vmatpush.bf16.xpose.msra.mxu0 0
      %249 = vmatpush.bf16.xpose.msra.mxu0 0
      %250 = vmatpush.bf16.xpose.msra.mxu0 0
      %251 = vmatpush.bf16.xpose.msra.mxu0 0
      %252 = vmatpush.bf16.xpose.msra.mxu0 0
      %253 = vmatpush.bf16.xpose.msra.mxu0 0
      %254 = vmatpush.bf16.xpose.msra.mxu0 %v242
      %255 = vmatpush.bf16.xpose.msra.mxu0 %v240
      %256 = vmatmul.bf16.gmra.mxu0 %v224
      %v257 = vpop.f32.mrf.mxu0
      %v258 = vadd.f32 0.0, %v257
      %v259 = vpop.f32.mrf.mxu0
      %260 = vdwg.mxu0
      %261 = vmatpush.bf16.xpose.msra.mxu0 0
      %262 = vmatpush.bf16.xpose.msra.mxu0 0
      %263 = vmatpush.bf16.xpose.msra.mxu0 0
      %264 = vmatpush.bf16.xpose.msra.mxu0 0
      %265 = vmatpush.bf16.xpose.msra.mxu0 0
      %266 = vmatpush.bf16.xpose.msra.mxu0 0
      %267 = vmatpush.bf16.xpose.msra.mxu0 %v243
      %268 = vmatpush.bf16.xpose.msra.mxu0 %v241
      %269 = vmatmul.bf16.gmra.mxu0 %v225
      %v270 = vpop.f32.mrf.mxu0
      %v271 = vadd.f32 %v258, %v270
      %v272 = vpop.f32.mrf.mxu0
      %273 = vdwg.mxu0
      %v274 = vadd.f32 %v220, %v271
      %vm275 = vcmask 261120
      %276 = vst.msk [vmem:[#allocation2] sm:$0xff] %vm275, %v274
      %v277 = vld [vmem:[#allocation3] sm:$0xff]
      %v278 = vunpack.c.l.bf16 %v215
      %v279 = vunpack.c.h.bf16 %v215
      %v280 = vadd.f32 %v278, %v279
      %281 = vadd.xlane.f32.xlu0 %v280
      %v282 = vpop.xlane.xlu0 %281
      %v283 = vadd.f32 %v277, %v282
      %vm284 = vcmask 7168
      %285 = vst.msk [vmem:[#allocation3] sm:$0xff] %vm284, %v283
      // Predicated region
      $region33: #{_lambda_.7} parent=27 // pred_check
        %p286 = pneg %p207
      $region34: #{_lambda_.7} parent=27 // pred_check_branch
        %288 = sbr.rel (%p286) target = $region36
      $region35: #{_lambda_.7} parent=27 // pred_region
        %v289 = vld [vmem:[#allocation2] sm:$0xff]
        %v290 = vld [vmem:[#allocation3] sm:$0xff]
        %v291 = vmax.f32 %v290, 1.0
        %293 = vset.pattern.permute.xlu0 0
        %294 = vperm.xlu0 %293, %v291
        %v295 = vpop.permute.xlu0 %294
        %v297 = vrcp.pop %v295
        %v298 = vmul.f32 %v295, %v297
        %v299 = vsub.f32 1.0, %v298
        %v300 = vmul.f32 %v297, %v299
        %v301 = vadd.f32 %v297, %v300
        %vm302 = vweird.f32 %v295
        %vm303 = vweird.f32 %v297
        %vm304 = vmor %vm302, %vm303
        %v305 = vsel %vm304, %v297, %v301
        %v306 = vand.u32 2147483647, %v295
        %vm307 = vcmp.eq.f32.partialorder %v306, 8.507059e+37
        %v308 = vand.u32 %v295, 2147483648
        %v309 = vor.u32 1.1754944e-38, %v308
        %v310 = vsel %vm307, %v309, %v305
        %v311 = vmul.f32 %v289, %v310
        %312 = vst.msk [vmem:[%s205] sm:$0xff] %vm275, %v311
      $region36: #{_lambda_.7} parent=27 // pred_fallthru
        _
      %p313 = scmp.lt.s32.totalorder %s17, 1
      %s314 = scalar_select %p313, %s17, 1
      %s315 = smul.addr %s314, 8
      %s316 = scalar_lea.vmem %s2, %s315
      // Predicated region
      $region37: #{_lambda_.7} parent=27 // pred_check
        %p317 = pneg %p99
      $region38: #{_lambda_.7} parent=27 // pred_check_branch
        %319 = sbr.rel (%p317) target = $region40
      $region39: #{_lambda_.7} parent=27 // pred_region
        _
      $region40: #{_lambda_.7} parent=27 // pred_fallthru
        _
    $region28: #{_lambda_.7} parent=5 // pred_fallthru
      _
    %p320 = scmp.le.s32.totalorder 2, %s8
    // Predicated region
    $region41: #{_lambda_.7} parent=5 // pred_check
      %p321 = pneg %p320
    $region42: #{_lambda_.7} parent=5 // pred_check_branch
      %323 = sbr.rel (%p321) target = $region44
    $region43: #{_lambda_.7} parent=5 // pred_region
      %s324 = ssub.s32 %s8, 2
      // Predicated region
      $region45: #{_lambda_.7} parent=43 // pred_check
        %p325 = pneg %p105
      $region46: #{_lambda_.7} parent=43 // pred_check_branch
        %327 = sbr.rel (%p325) target = $region48
      $region47: #{_lambda_.7} parent=43 // pred_region
        %p328 = scmp.lt.s32.totalorder %s19, 1
        %s329 = scalar_select %p328, %s19, 1
        %s330 = smul.addr %s329, 8
        %s331 = scalar_lea.vmem %s2, %s330
      $region48: #{_lambda_.7} parent=43 // pred_fallthru
        _
    $region44: #{_lambda_.7} parent=5 // pred_fallthru
      _
  $region6: #{_lambda_.7} parent=0 // loop_footer
    %s12 = sadd.s32 1, %s8
  $region7: #{_lambda_.7} parent=0 // loop_footer_branch
    %7 = sbr.rel target = $region3
  $region8: #{_lambda_.7} parent=0 // loop_exit
    _

// kernel: _lambda_.9
$region0: #{_lambda_.9}
  #allocation0 [shape = 'u32[]', space=smem, size = 0x4, offset = 0x4, fixed_abs, tag = 'smem constant byte address 0x4 - core index']
  #allocation1 [shape = 'u32[72,128]{1,0:T(1,128)}', space=vmem, size = 0x9000, scoped, tag = 'internal scratch']
  #allocation2 [shape = 'f32[8,32]{1,0:T(8,128)}', space=vmem, size = 0x1000, scoped, tag = 'scratch operand']
  #allocation3 [shape = 'f32[8,1]{1,0:T(8,128)}', space=vmem, size = 0x1000, scoped, tag = 'scratch operand']
  %s0 = inlined_call_operand.vmem [shape: bf16[2,8,128], index: 0, kind: input, shape index: {}]
  %s1 = inlined_call_operand.vmem [shape: bf16[2,32,128], index: 1, kind: input, shape index: {}]
  %s2 = inlined_call_operand.vmem [shape: f32[2,8,32], index: 2, kind: output, shape index: {}]
  %s3 = sld [smem:[#allocation0]]
  $region49: #{_lambda_.9} parent=0
    _
  %s5 = ssub.s32 1, %s3
  %s6 = scalar_select 0, %s5, %s3
  loop: start=0, step=1, limit=4
  $region2: #{_lambda_.9} parent=0 // loop_pre_header
    _
  $region3: #{_lambda_.9} parent=0 // loop_header
    %s8 = sphi 0, %s12
    %p9 = scmp.ge.s32.totalorder %s8, 4
    %s15 = sphi 0, %s27
    %s16 = sphi 0, %s23
    %s17 = sphi 0, %s15
    %s18 = sphi 0, %s16
    %s19 = sphi 0, %s17
    %s20 = sphi 0, %s18
    %s32 = sphi 0, %s34
    %s35 = sphi 0, %s32
    %s36 = sphi 0, %s35
    %s52 = sphi 0, %s36
    %s60 = sphi 0, %s62
    %s63 = sphi 0, %s60
    %s64 = sphi 0, %s63
    %s80 = sphi 0, %s64
    %s86 = sphi 0, %s88
    %s89 = sphi 0, %s86
    %s90 = sphi 0, %s89
    %s106 = sphi 0, %s90
  $region4: #{_lambda_.9} parent=0 // loop_header_branch
    %11 = sbr.rel (%p9) target = $region8
  $region5: #{_lambda_.9} parent=0 // loop_body
    %s13 = ssub.s32 %s8, 1
    %s14 = ssub.s32 %s8, 2
    %s21 = sadd.s32 1, %s16
    %p22 = scmp.ge.s32.totalorder %s21, 1
    %s23 = scalar_select %p22, 0, %s21
    %s24 = sadd.s32 1, %s15
    %s25 = scalar_select %p22, %s24, %s15
    %p26 = scmp.ge.s32.totalorder %s25, 2
    %s27 = scalar_select %p26, 0, %s25
    %s28 = ssub.s32 %s15, %s27
    %s29 = ssub.s32 %s16, %s23
    %s30 = sor.u32 %s28, %s29
    %p31 = scmp.eq.s32.totalorder %s30, 0
    %s33 = sadd.s32 %s32, 1
    %s34 = scalar_select %p31, %s32, %s33
    %p37 = pneg %p31
    %p38 = scmp.eq.s32.totalorder %s8, 1
    %p39 = por %p37, %p38
    %p40 = scmp.ne.s32.totalorder %s32, %s35
    %p41 = scmp.eq.s32.totalorder %s8, 0
    %p42 = por %p40, %p41
    %p43 = scmp.ne.s32.totalorder %s32, %s35
    %p44 = scmp.eq.s32.totalorder %s13, 1
    %p45 = por %p43, %p44
    %p46 = scmp.ne.s32.totalorder %s35, %s36
    %p47 = scmp.eq.s32.totalorder %s13, 0
    %p48 = por %p46, %p47
    %p49 = scmp.ne.s32.totalorder %s35, %s36
    %p50 = scmp.eq.s32.totalorder %s14, 1
    %p51 = por %p49, %p50
    %p53 = scmp.ne.s32.totalorder %s36, %s52
    %p54 = scmp.eq.s32.totalorder %s14, 0
    %p55 = por %p53, %p54
    %s56 = ssub.s32 %s15, %s27
    %s57 = ssub.s32 %s16, %s23
    %s58 = sor.u32 %s56, %s57
    %p59 = scmp.eq.s32.totalorder %s58, 0
    %s61 = sadd.s32 %s60, 1
    %s62 = scalar_select %p59, %s60, %s61
    %p65 = pneg %p59
    %p66 = scmp.eq.s32.totalorder %s8, 1
    %p67 = por %p65, %p66
    %p68 = scmp.ne.s32.totalorder %s60, %s63
    %p69 = scmp.eq.s32.totalorder %s8, 0
    %p70 = por %p68, %p69
    %p71 = scmp.ne.s32.totalorder %s60, %s63
    %p72 = scmp.eq.s32.totalorder %s13, 1
    %p73 = por %p71, %p72
    %p74 = scmp.ne.s32.totalorder %s63, %s64
    %p75 = scmp.eq.s32.totalorder %s13, 0
    %p76 = por %p74, %p75
    %p77 = scmp.ne.s32.totalorder %s63, %s64
    %p78 = scmp.eq.s32.totalorder %s14, 1
    %p79 = por %p77, %p78
    %p81 = scmp.ne.s32.totalorder %s64, %s80
    %p82 = scmp.eq.s32.totalorder %s14, 0
    %p83 = por %p81, %p82
    %s84 = ssub.s32 %s15, %s27
    %p85 = scmp.eq.s32.totalorder %s84, 0
    %s87 = sadd.s32 %s86, 1
    %s88 = scalar_select %p85, %s86, %s87
    %p91 = pneg %p85
    %p92 = scmp.eq.s32.totalorder %s8, 1
    %p93 = por %p91, %p92
    %p94 = scmp.ne.s32.totalorder %s86, %s89
    %p95 = scmp.eq.s32.totalorder %s8, 0
    %p96 = por %p94, %p95
    %p97 = scmp.ne.s32.totalorder %s86, %s89
    %p98 = scmp.eq.s32.totalorder %s13, 1
    %p99 = por %p97, %p98
    %p100 = scmp.ne.s32.totalorder %s89, %s90
    %p101 = scmp.eq.s32.totalorder %s13, 0
    %p102 = por %p100, %p101
    %p103 = scmp.ne.s32.totalorder %s89, %s90
    %p104 = scmp.eq.s32.totalorder %s14, 1
    %p105 = por %p103, %p104
    %p107 = scmp.ne.s32.totalorder %s90, %s106
    %p108 = scmp.eq.s32.totalorder %s14, 0
    %p109 = por %p107, %p108
    %p110 = scmp.le.s32.totalorder 1, %s8
    %p111 = scmp.lt.s32.totalorder %s8, 3
    %p112 = pnand %p110, %p111
    %p113 = pneg %p112
    // Predicated region
    $region9: #{_lambda_.9} parent=5 // pred_check
      _
    $region10: #{_lambda_.9} parent=5 // pred_check_branch
      %115 = sbr.rel (%p112) target = $region12
    $region11: #{_lambda_.9} parent=5 // pred_region
      %s116 = ssub.s32 %s8, 1
    $region12: #{_lambda_.9} parent=5 // pred_fallthru
      _
    %p117 = scmp.lt.s32.totalorder %s8, 2
    // Predicated region
    $region13: #{_lambda_.9} parent=5 // pred_check
      %p118 = pneg %p117
    $region14: #{_lambda_.9} parent=5 // pred_check_branch
      %120 = sbr.rel (%p118) target = $region16
    $region15: #{_lambda_.9} parent=5 // pred_region
      // Predicated region
      $region17: #{_lambda_.9} parent=15 // pred_check
        %p121 = pneg %p42
      $region18: #{_lambda_.9} parent=15 // pred_check_branch
        %123 = sbr.rel (%p121) target = $region20
      $region19: #{_lambda_.9} parent=15 // pred_region
        %p124 = scmp.lt.s32.totalorder %s15, 1
        %s125 = scalar_select %p124, %s15, 1
        %p126 = scmp.lt.s32.totalorder %s16, 0
        %s127 = scalar_select %p126, %s16, 0
        %s128 = sadd.s32 %s127, %s125
        %s129 = smul.addr %s128, 4
        %s130 = scalar_lea.vmem %s0, %s129
      $region20: #{_lambda_.9} parent=15 // pred_fallthru
        _
      // Predicated region
      $region21: #{_lambda_.9} parent=15 // pred_check
        %p131 = pneg %p70
      $region22: #{_lambda_.9} parent=15 // pred_check_branch
        %133 = sbr.rel (%p131) target = $region24
      $region23: #{_lambda_.9} parent=15 // pred_region
        %p134 = scmp.lt.s32.totalorder %s15, 1
        %s135 = scalar_select %p134, %s15, 1
        %p136 = scmp.lt.s32.totalorder %s16, 0
        %s137 = scalar_select %p136, %s16, 0
        %s138 = smul.addr %s135, 4
        %s139 = sadd.s32 %s137, %s138
        %s140 = smul.addr %s139, 4
        %s141 = scalar_lea.vmem %s1, %s140
      $region24: #{_lambda_.9} parent=15 // pred_fallthru
        _
    $region16: #{_lambda_.9} parent=5 // pred_fallthru
      _
    %p142 = scmp.le.s32.totalorder 1, %s8
    %p143 = scmp.lt.s32.totalorder %s8, 3
    %p144 = pnand %p142, %p143
    %p145 = pneg %p144
    // Predicated region
    $region25: #{_lambda_.9} parent=5 // pred_check
      _
    $region26: #{_lambda_.9} parent=5 // pred_check_branch
      %147 = sbr.rel (%p144) target = $region28
    $region27: #{_lambda_.9} parent=5 // pred_region
      %s148 = ssub.s32 %s8, 1
      %p149 = scmp.lt.s32.totalorder %s17, 1
      %s150 = scalar_select %p149, %s17, 1
      %p151 = scmp.lt.s32.totalorder %s18, 0
      %s152 = scalar_select %p151, %s18, 0
      %s153 = sadd.s32 %s152, %s150
      %s154 = smul.addr %s153, 4
      %s155 = scalar_lea.vmem %s0, %s154
      %p156 = pneg %p48
      %p157 = pneg %p45
      %p158 = scmp.lt.s32.totalorder %s17, 1
      %s159 = scalar_select %p158, %s17, 1
      %p160 = scmp.lt.s32.totalorder %s18, 0
      %s161 = scalar_select %p160, %s18, 0
      %s162 = smul.addr %s159, 4
      %s163 = sadd.s32 %s161, %s162
      %s164 = smul.addr %s163, 4
      %s165 = scalar_lea.vmem %s1, %s164
      %p166 = pneg %p76
      %p167 = pneg %p73
      %p168 = pneg %p102
      %p169 = pneg %p99
      %p170 = scmp.lt.s32.totalorder %s17, 1
      %s171 = scalar_select %p170, %s17, 1
      %s172 = smul.addr %s171, 8
      %s173 = scalar_lea.vmem %s2, %s172
      %p174 = scmp.lt.s32.totalorder %s17, 1
      %s175 = scalar_select %p174, %s17, 1
      %p176 = scmp.lt.s32.totalorder %s18, 0
      %s177 = scalar_select %p176, %s18, 0
      %s178 = sadd.s32 %s177, %s175
      %s179 = smul.addr %s178, 4
      %s180 = scalar_lea.vmem %s0, %s179
      %p181 = scmp.lt.s32.totalorder %s17, 1
      %s182 = scalar_select %p181, %s17, 1
      %p183 = scmp.lt.s32.totalorder %s18, 0
      %s184 = scalar_select %p183, %s18, 0
      %s185 = smul.addr %s182, 4
      %s186 = sadd.s32 %s184, %s185
      %s187 = smul.addr %s186, 4
      %s188 = scalar_lea.vmem %s1, %s187
      %p189 = scmp.lt.s32.totalorder %s17, 1
      %s190 = scalar_select %p189, %s17, 1
      %s191 = smul.addr %s190, 8
      %s192 = scalar_lea.vmem %s2, %s191
      %p194 = scmp.eq.s32.totalorder %s18, 0
      // Predicated region
      $region29: #{_lambda_.9} parent=27 // pred_check
        %p195 = pneg %p194
      $region30: #{_lambda_.9} parent=27 // pred_check_branch
        %197 = sbr.rel (%p195) target = $region32
      $region31: #{_lambda_.9} parent=27 // pred_region
        %vm198 = vcmask 261120
        %199 = vst.msk [vmem:[#allocation2] sm:$0xff] %vm198, 0.0
        %vm200 = vcmask 7168
        %201 = vst.msk [vmem:[#allocation3] sm:$0xff] %vm200, 0.0
      $region32: #{_lambda_.9} parent=27 // pred_fallthru
        _
      %v202 = vld [vmem:[%s180] sm:$0xf]
      %v203 = vld [vmem:[%s188] sm:$0xf]
      %v204 = vld [vmem:[%s188 + $0x4] sm:$0xf]
      %v205 = vld [vmem:[%s188 + $0x8] sm:$0xf]
      %v206 = vld [vmem:[%s188 + $0xc] sm:$0xf]
      %v207 = vld [vmem:[#allocation2] sm:$0xff]
      %v212 = vunpack.c.l.b16 %v203
      %v213 = vunpack.c.l.b16 %v204
      %v214 = vunpack.c.l.b16 %v205
      %v215 = vunpack.c.l.b16 %v206
      %v216 = vpack.c.b16 %v213, %v212
      %v217 = vpack.c.b16 %v215, %v214
      %220 = vmatpush.bf16.xpose.msra.mxu0 0
      %221 = vmatpush.bf16.xpose.msra.mxu0 0
      %222 = vmatpush.bf16.xpose.msra.mxu0 0
      %223 = vmatpush.bf16.xpose.msra.mxu0 0
      %224 = vmatpush.bf16.xpose.msra.mxu0 0
      %225 = vmatpush.bf16.xpose.msra.mxu0 0
      %226 = vmatpush.bf16.xpose.msra.mxu0 %v217
      %227 = vmatpush.bf16.xpose.msra.mxu0 %v216
      %228 = vmatmul.bf16.gmra.mxu0 %v202
      %v229 = vpop.f32.mrf.mxu0
      %v230 = vadd.f32 0.0, %v229
      %v231 = vpop.f32.mrf.mxu0
      %232 = vdwg.mxu0
      %v233 = vadd.f32 %v207, %v230
      %vm234 = vcmask 261120
      %235 = vst.msk [vmem:[#allocation2] sm:$0xff] %vm234, %v233
      %v236 = vld [vmem:[#allocation3] sm:$0xff]
      %v237 = vunpack.c.l.bf16 %v202
      %238 = vadd.xlane.f32.xlu0 %v237
      %v239 = vpop.xlane.xlu0 %238
      %v240 = vadd.f32 %v236, %v239
      %vm241 = vcmask 7168
      %242 = vst.msk [vmem:[#allocation3] sm:$0xff] %vm241, %v240
      // Predicated region
      $region33: #{_lambda_.9} parent=27 // pred_check
        %p243 = pneg %p194
      $region34: #{_lambda_.9} parent=27 // pred_check_branch
        %245 = sbr.rel (%p243) target = $region36
      $region35: #{_lambda_.9} parent=27 // pred_region
        %v246 = vld [vmem:[#allocation2] sm:$0xff]
        %v247 = vld [vmem:[#allocation3] sm:$0xff]
        %v248 = vmax.f32 %v247, 1.0
        %250 = vset.pattern.permute.xlu0 0
        %251 = vperm.xlu0 %250, %v248
        %v252 = vpop.permute.xlu0 %251
        %v254 = vrcp.pop %v252
        %v255 = vmul.f32 %v252, %v254
        %v256 = vsub.f32 1.0, %v255
        %v257 = vmul.f32 %v254, %v256
        %v258 = vadd.f32 %v254, %v257
        %vm259 = vweird.f32 %v252
        %vm260 = vweird.f32 %v254
        %vm261 = vmor %vm259, %vm260
        %v262 = vsel %vm261, %v254, %v258
        %v263 = vand.u32 2147483647, %v252
        %vm264 = vcmp.eq.f32.partialorder %v263, 8.507059e+37
        %v265 = vand.u32 %v252, 2147483648
        %v266 = vor.u32 1.1754944e-38, %v265
        %v267 = vsel %vm264, %v266, %v262
        %v268 = vmul.f32 %v246, %v267
        %269 = vst.msk [vmem:[%s192] sm:$0xff] %vm234, %v268
      $region36: #{_lambda_.9} parent=27 // pred_fallthru
        _
      %p270 = scmp.lt.s32.totalorder %s17, 1
      %s271 = scalar_select %p270, %s17, 1
      %s272 = smul.addr %s271, 8
      %s273 = scalar_lea.vmem %s2, %s272
      // Predicated region
      $region37: #{_lambda_.9} parent=27 // pred_check
        %p274 = pneg %p99
      $region38: #{_lambda_.9} parent=27 // pred_check_branch
        %276 = sbr.rel (%p274) target = $region40
      $region39: #{_lambda_.9} parent=27 // pred_region
        _
      $region40: #{_lambda_.9} parent=27 // pred_fallthru
        _
    $region28: #{_lambda_.9} parent=5 // pred_fallthru
      _
    %p277 = scmp.le.s32.totalorder 2, %s8
    // Predicated region
    $region41: #{_lambda_.9} parent=5 // pred_check
      %p278 = pneg %p277
    $region42: #{_lambda_.9} parent=5 // pred_check_branch
      %280 = sbr.rel (%p278) target = $region44
    $region43: #{_lambda_.9} parent=5 // pred_region
      %s281 = ssub.s32 %s8, 2
      // Predicated region
      $region45: #{_lambda_.9} parent=43 // pred_check
        %p282 = pneg %p105
      $region46: #{_lambda_.9} parent=43 // pred_check_branch
        %284 = sbr.rel (%p282) target = $region48
      $region47: #{_lambda_.9} parent=43 // pred_region
        %p285 = scmp.lt.s32.totalorder %s19, 1
        %s286 = scalar_select %p285, %s19, 1
        %s287 = smul.addr %s286, 8
        %s288 = scalar_lea.vmem %s2, %s287
      $region48: #{_lambda_.9} parent=43 // pred_fallthru
        _
    $region44: #{_lambda_.9} parent=5 // pred_fallthru
      _
  $region6: #{_lambda_.9} parent=0 // loop_footer
    %s12 = sadd.s32 1, %s8
  $region7: #{_lambda_.9} parent=0 // loop_footer_branch
    %7 = sbr.rel target = $region3
  $region8: #{_lambda_.9} parent=0 // loop_exit
    _

// kernel: _lambda_.8
$region0: #{_lambda_.8}
  #allocation0 [shape = 'u32[]', space=smem, size = 0x4, offset = 0x4, fixed_abs, tag = 'smem constant byte address 0x4 - core index']
  #allocation1 [shape = 'u32[72,128]{1,0:T(1,128)}', space=vmem, size = 0x9000, scoped, tag = 'internal scratch']
  %s0 = inlined_call_operand.vmem [shape: bf16[2,16,64], index: 0, kind: input, shape index: {}]
  %s1 = inlined_call_operand.vmem [shape: bf16[32,16], index: 1, kind: input, shape index: {}]
  %s2 = inlined_call_operand.vmem [shape: f32[32,1], index: 2, kind: input, shape index: {}]
  %s3 = inlined_call_operand.vmem [shape: f32[32,32], index: 3, kind: input, shape index: {}]
  %s4 = inlined_call_operand.vmem [shape: f32[32,1], index: 4, kind: input, shape index: {}]
  %s5 = inlined_call_operand.vmem [shape: f32[32,1], index: 5, kind: input, shape index: {}]
  %s6 = inlined_call_operand.vmem [shape: bf16[2,32,64], index: 6, kind: output, shape index: {}]
  %s7 = sld [smem:[#allocation0]]
  $region57: #{_lambda_.8} parent=0
    _
  %s9 = ssub.s32 1, %s7
  %s10 = scalar_select 0, %s9, %s7
  loop: start=0, step=1, limit=4
  $region2: #{_lambda_.8} parent=0 // loop_pre_header
    _
  $region3: #{_lambda_.8} parent=0 // loop_header
    %s12 = sphi 0, %s16
    %p13 = scmp.ge.s32.totalorder %s12, 4
    %s22 = sphi 0, %s24
    %s25 = sphi 0, %s22
    %s26 = sphi 0, %s25
    %s42 = sphi 0, %s26
    %s46 = sphi 0, %s46
    %s48 = sphi 0, %s46
    %s49 = sphi 0, %s48
    %s63 = sphi 0, %s49
    %s67 = sphi 0, %s67
    %s69 = sphi 0, %s67
    %s70 = sphi 0, %s69
    %s84 = sphi 0, %s70
    %s88 = sphi 0, %s88
    %s90 = sphi 0, %s88
    %s91 = sphi 0, %s90
    %s105 = sphi 0, %s91
    %s109 = sphi 0, %s109
    %s111 = sphi 0, %s109
    %s112 = sphi 0, %s111
    %s126 = sphi 0, %s112
    %s130 = sphi 0, %s130
    %s132 = sphi 0, %s130
    %s133 = sphi 0, %s132
    %s147 = sphi 0, %s133
    %s153 = sphi 0, %s155
    %s156 = sphi 0, %s153
    %s157 = sphi 0, %s156
    %s173 = sphi 0, %s157
  $region4: #{_lambda_.8} parent=0 // loop_header_branch
    %15 = sbr.rel (%p13) target = $region8
  $region5: #{_lambda_.8} parent=0 // loop_body
    %s17 = ssub.s32 %s12, 1
    %s18 = ssub.s32 %s12, 2
    %s19 = sadd.s32 %s12, 1
    %s20 = ssub.s32 %s12, %s19
    %p21 = scmp.eq.s32.totalorder %s20, 0
    %s23 = sadd.s32 %s22, 1
    %s24 = scalar_select %p21, %s22, %s23
    %p27 = pneg %p21
    %p28 = scmp.eq.s32.totalorder %s12, 1
    %p29 = por %p27, %p28
    %p30 = scmp.ne.s32.totalorder %s22, %s25
    %p31 = scmp.eq.s32.totalorder %s12, 0
    %p32 = por %p30, %p31
    %p33 = scmp.ne.s32.totalorder %s22, %s25
    %p34 = scmp.eq.s32.totalorder %s17, 1
    %p35 = por %p33, %p34
    %p36 = scmp.ne.s32.totalorder %s25, %s26
    %p37 = scmp.eq.s32.totalorder %s17, 0
    %p38 = por %p36, %p37
    %p39 = scmp.ne.s32.totalorder %s25, %s26
    %p40 = scmp.eq.s32.totalorder %s18, 1
    %p41 = por %p39, %p40
    %p43 = scmp.ne.s32.totalorder %s26, %s42
    %p44 = scmp.eq.s32.totalorder %s18, 0
    %p45 = por %p43, %p44
    %s47 = sadd.s32 %s46, 1
    %p50 = scmp.eq.s32.totalorder %s12, 1
    %p51 = scmp.ne.s32.totalorder %s46, %s48
    %p52 = scmp.eq.s32.totalorder %s12, 0
    %p53 = por %p51, %p52
    %p54 = scmp.ne.s32.totalorder %s46, %s48
    %p55 = scmp.eq.s32.totalorder %s17, 1
    %p56 = por %p54, %p55
    %p57 = scmp.ne.s32.totalorder %s48, %s49
    %p58 = scmp.eq.s32.totalorder %s17, 0
    %p59 = por %p57, %p58
    %p60 = scmp.ne.s32.totalorder %s48, %s49
    %p61 = scmp.eq.s32.totalorder %s18, 1
    %p62 = por %p60, %p61
    %p64 = scmp.ne.s32.totalorder %s49, %s63
    %p65 = scmp.eq.s32.totalorder %s18, 0
    %p66 = por %p64, %p65
    %s68 = sadd.s32 %s67, 1
    %p71 = scmp.eq.s32.totalorder %s12, 1
    %p72 = scmp.ne.s32.totalorder %s67, %s69
    %p73 = scmp.eq.s32.totalorder %s12, 0
    %p74 = por %p72, %p73
    %p75 = scmp.ne.s32.totalorder %s67, %s69
    %p76 = scmp.eq.s32.totalorder %s17, 1
    %p77 = por %p75, %p76
    %p78 = scmp.ne.s32.totalorder %s69, %s70
    %p79 = scmp.eq.s32.totalorder %s17, 0
    %p80 = por %p78, %p79
    %p81 = scmp.ne.s32.totalorder %s69, %s70
    %p82 = scmp.eq.s32.totalorder %s18, 1
    %p83 = por %p81, %p82
    %p85 = scmp.ne.s32.totalorder %s70, %s84
    %p86 = scmp.eq.s32.totalorder %s18, 0
    %p87 = por %p85, %p86
    %s89 = sadd.s32 %s88, 1
    %p92 = scmp.eq.s32.totalorder %s12, 1
    %p93 = scmp.ne.s32.totalorder %s88, %s90
    %p94 = scmp.eq.s32.totalorder %s12, 0
    %p95 = por %p93, %p94
    %p96 = scmp.ne.s32.totalorder %s88, %s90
    %p97 = scmp.eq.s32.totalorder %s17, 1
    %p98 = por %p96, %p97
    %p99 = scmp.ne.s32.totalorder %s90, %s91
    %p100 = scmp.eq.s32.totalorder %s17, 0
    %p101 = por %p99, %p100
    %p102 = scmp.ne.s32.totalorder %s90, %s91
    %p103 = scmp.eq.s32.totalorder %s18, 1
    %p104 = por %p102, %p103
    %p106 = scmp.ne.s32.totalorder %s91, %s105
    %p107 = scmp.eq.s32.totalorder %s18, 0
    %p108 = por %p106, %p107
    %s110 = sadd.s32 %s109, 1
    %p113 = scmp.eq.s32.totalorder %s12, 1
    %p114 = scmp.ne.s32.totalorder %s109, %s111
    %p115 = scmp.eq.s32.totalorder %s12, 0
    %p116 = por %p114, %p115
    %p117 = scmp.ne.s32.totalorder %s109, %s111
    %p118 = scmp.eq.s32.totalorder %s17, 1
    %p119 = por %p117, %p118
    %p120 = scmp.ne.s32.totalorder %s111, %s112
    %p121 = scmp.eq.s32.totalorder %s17, 0
    %p122 = por %p120, %p121
    %p123 = scmp.ne.s32.totalorder %s111, %s112
    %p124 = scmp.eq.s32.totalorder %s18, 1
    %p125 = por %p123, %p124
    %p127 = scmp.ne.s32.totalorder %s112, %s126
    %p128 = scmp.eq.s32.totalorder %s18, 0
    %p129 = por %p127, %p128
    %s131 = sadd.s32 %s130, 1
    %p134 = scmp.eq.s32.totalorder %s12, 1
    %p135 = scmp.ne.s32.totalorder %s130, %s132
    %p136 = scmp.eq.s32.totalorder %s12, 0
    %p137 = por %p135, %p136
    %p138 = scmp.ne.s32.totalorder %s130, %s132
    %p139 = scmp.eq.s32.totalorder %s17, 1
    %p140 = por %p138, %p139
    %p141 = scmp.ne.s32.totalorder %s132, %s133
    %p142 = scmp.eq.s32.totalorder %s17, 0
    %p143 = por %p141, %p142
    %p144 = scmp.ne.s32.totalorder %s132, %s133
    %p145 = scmp.eq.s32.totalorder %s18, 1
    %p146 = por %p144, %p145
    %p148 = scmp.ne.s32.totalorder %s133, %s147
    %p149 = scmp.eq.s32.totalorder %s18, 0
    %p150 = por %p148, %p149
    %s151 = ssub.s32 %s12, %s19
    %p152 = scmp.eq.s32.totalorder %s151, 0
    %s154 = sadd.s32 %s153, 1
    %s155 = scalar_select %p152, %s153, %s154
    %p158 = pneg %p152
    %p159 = scmp.eq.s32.totalorder %s12, 1
    %p160 = por %p158, %p159
    %p161 = scmp.ne.s32.totalorder %s153, %s156
    %p162 = scmp.eq.s32.totalorder %s12, 0
    %p163 = por %p161, %p162
    %p164 = scmp.ne.s32.totalorder %s153, %s156
    %p165 = scmp.eq.s32.totalorder %s17, 1
    %p166 = por %p164, %p165
    %p167 = scmp.ne.s32.totalorder %s156, %s157
    %p168 = scmp.eq.s32.totalorder %s17, 0
    %p169 = por %p167, %p168
    %p170 = scmp.ne.s32.totalorder %s156, %s157
    %p171 = scmp.eq.s32.totalorder %s18, 1
    %p172 = por %p170, %p171
    %p174 = scmp.ne.s32.totalorder %s157, %s173
    %p175 = scmp.eq.s32.totalorder %s18, 0
    %p176 = por %p174, %p175
    %p177 = scmp.le.s32.totalorder 1, %s12
    %p178 = scmp.lt.s32.totalorder %s12, 3
    %p179 = pnand %p177, %p178
    %p180 = pneg %p179
    // Predicated region
    $region9: #{_lambda_.8} parent=5 // pred_check
      _
    $region10: #{_lambda_.8} parent=5 // pred_check_branch
      %182 = sbr.rel (%p179) target = $region12
    $region11: #{_lambda_.8} parent=5 // pred_region
      %s183 = ssub.s32 %s12, 1
      // Predicated region
      $region13: #{_lambda_.8} parent=11 // pred_check
        %p184 = pneg %p59
      $region14: #{_lambda_.8} parent=11 // pred_check_branch
        %186 = sbr.rel (%p184) target = $region16
      $region15: #{_lambda_.8} parent=11 // pred_region
        _
      $region16: #{_lambda_.8} parent=11 // pred_fallthru
        _
      // Predicated region
      $region17: #{_lambda_.8} parent=11 // pred_check
        %p187 = pneg %p80
      $region18: #{_lambda_.8} parent=11 // pred_check_branch
        %189 = sbr.rel (%p187) target = $region20
      $region19: #{_lambda_.8} parent=11 // pred_region
        _
      $region20: #{_lambda_.8} parent=11 // pred_fallthru
        _
      // Predicated region
      $region21: #{_lambda_.8} parent=11 // pred_check
        %p190 = pneg %p101
      $region22: #{_lambda_.8} parent=11 // pred_check_branch
        %192 = sbr.rel (%p190) target = $region24
      $region23: #{_lambda_.8} parent=11 // pred_region
        _
      $region24: #{_lambda_.8} parent=11 // pred_fallthru
        _
      // Predicated region
      $region25: #{_lambda_.8} parent=11 // pred_check
        %p193 = pneg %p122
      $region26: #{_lambda_.8} parent=11 // pred_check_branch
        %195 = sbr.rel (%p193) target = $region28
      $region27: #{_lambda_.8} parent=11 // pred_region
        _
      $region28: #{_lambda_.8} parent=11 // pred_fallthru
        _
      // Predicated region
      $region29: #{_lambda_.8} parent=11 // pred_check
        %p196 = pneg %p143
      $region30: #{_lambda_.8} parent=11 // pred_check_branch
        %198 = sbr.rel (%p196) target = $region32
      $region31: #{_lambda_.8} parent=11 // pred_region
        _
      $region32: #{_lambda_.8} parent=11 // pred_fallthru
        _
    $region12: #{_lambda_.8} parent=5 // pred_fallthru
      _
    %p199 = scmp.lt.s32.totalorder %s12, 2
    // Predicated region
    $region33: #{_lambda_.8} parent=5 // pred_check
      %p200 = pneg %p199
    $region34: #{_lambda_.8} parent=5 // pred_check_branch
      %202 = sbr.rel (%p200) target = $region36
    $region35: #{_lambda_.8} parent=5 // pred_region
      // Predicated region
      $region37: #{_lambda_.8} parent=35 // pred_check
        %p203 = pneg %p32
      $region38: #{_lambda_.8} parent=35 // pred_check_branch
        %205 = sbr.rel (%p203) target = $region40
      $region39: #{_lambda_.8} parent=35 // pred_region
        %p206 = scmp.lt.s32.totalorder %s12, 1
        %s207 = scalar_select %p206, %s12, 1
        %s208 = smul.addr %s207, 2
        %s209 = smul.addr %s208, 4
        %s210 = scalar_lea.vmem %s0, %s209
      $region40: #{_lambda_.8} parent=35 // pred_fallthru
        _
    $region36: #{_lambda_.8} parent=5 // pred_fallthru
      _
    %p211 = scmp.le.s32.totalorder 1, %s12
    %p212 = scmp.lt.s32.totalorder %s12, 3
    %p213 = pnand %p211, %p212
    %p214 = pneg %p213
    // Predicated region
    $region41: #{_lambda_.8} parent=5 // pred_check
      _
    $region42: #{_lambda_.8} parent=5 // pred_check_branch
      %216 = sbr.rel (%p213) target = $region44
    $region43: #{_lambda_.8} parent=5 // pred_region
      %s217 = ssub.s32 %s12, 1
      %p218 = scmp.lt.s32.totalorder %s17, 1
      %s219 = scalar_select %p218, %s17, 1
      %s220 = smul.addr %s219, 2
      %s221 = smul.addr %s220, 4
      %s222 = scalar_lea.vmem %s0, %s221
      %p223 = pneg %p38
      %p224 = pneg %p35
      %p225 = pneg %p59
      %p226 = pneg %p56
      %p227 = pneg %p80
      %p228 = pneg %p77
      %p229 = pneg %p101
      %p230 = pneg %p98
      %p231 = pneg %p122
      %p232 = pneg %p119
      %p233 = pneg %p143
      %p234 = pneg %p140
      %p235 = pneg %p169
      %p236 = pneg %p166
      %p237 = scmp.lt.s32.totalorder %s17, 1
      %s238 = scalar_select %p237, %s17, 1
      %s239 = smul.addr %s238, 4
      %s240 = smul.addr %s239, 4
      %s241 = scalar_lea.vmem %s6, %s240
      %p242 = scmp.lt.s32.totalorder %s17, 1
      %s243 = scalar_select %p242, %s17, 1
      %s244 = smul.addr %s243, 2
      %s245 = smul.addr %s244, 4
      %s246 = scalar_lea.vmem %s0, %s245
      %p247 = scmp.lt.s32.totalorder %s17, 1
      %s248 = scalar_select %p247, %s17, 1
      %s249 = smul.addr %s248, 4
      %s250 = smul.addr %s249, 4
      %s251 = scalar_lea.vmem %s6, %s250
      %v253 = vld [vmem:[%s246] sm:$0xf]
      %v254 = vld [vmem:[%s246 + $0x4] sm:$0xf]
      %v255 = vld [vmem:[%s1] sm:$0xf]
      %v256 = vld [vmem:[%s1 + $0x4] sm:$0xf]
      %v257 = vld [vmem:[%s1 + $0x8] sm:$0xf]
      %v258 = vld [vmem:[%s1 + $0xc] sm:$0xf]
      %v259 = vld [vmem:[%s2] sm:$0xff]
      %v260 = vld [vmem:[%s2 + $0x8] sm:$0xff]
      %v261 = vld [vmem:[%s2 + $0x10] sm:$0xff]
      %v262 = vld [vmem:[%s2 + $0x18] sm:$0xff]
      %264 = vset.pattern.permute.xlu0 0
      %265 = vperm.xlu0 %264, %v259
      %v266 = vpop.permute.xlu0 %265
      %269 = vset.pattern.permute.xlu0 0
      %270 = vperm.xlu0 %269, %v260
      %v271 = vpop.permute.xlu0 %270
      %274 = vset.pattern.permute.xlu0 0
      %275 = vperm.xlu0 %274, %v261
      %v276 = vpop.permute.xlu0 %275
      %279 = vset.pattern.permute.xlu0 0
      %280 = vperm.xlu0 %279, %v262
      %v281 = vpop.permute.xlu0 %280
      %v287 = vunpack.c.l.b16 %v255
      %v288 = vunpack.c.l.b16 %v256
      %v289 = vunpack.c.l.b16 %v257
      %v290 = vunpack.c.l.b16 %v258
      %v291 = vpack.c.b16 %v288, %v287
      %v292 = vpack.c.b16 %v290, %v289
      %v295 = vunpack.c.l.b16 %v253
      %v296 = vunpack.c.l.b16 %v254
      %v297 = vpack.c.b16 %v296, %v295
      %vm299 = vcmask 130048
      %v301 = vsel %vm299, %v291, 0
      %v304 = vsel %vm299, %v292, 0
      %306 = vmatpush.bf16.msra.mxu0 0
      %307 = vmatpush.bf16.msra.mxu0 0
      %308 = vmatpush.bf16.msra.mxu0 0
      %309 = vmatpush.bf16.msra.mxu0 0
      %310 = vmatpush.bf16.msra.mxu0 0
      %311 = vmatpush.bf16.msra.mxu0 0
      %312 = vmatpush.bf16.msra.mxu0 0
      %313 = vmatpush.bf16.msra.mxu0 %v297
      %314 = vmatmul.bf16.gmra.mxu0 %v301
      %v315 = vpop.f32.mrf.mxu0
      %v316 = vadd.f32 %v266, %v315
      %v317 = vpop.f32.mrf.mxu0
      %v318 = vadd.f32 %v271, %v317
      %319 = vmatmul.bf16.gmra.mxu0 %v304
      %v320 = vpop.f32.mrf.mxu0
      %v321 = vadd.f32 %v276, %v320
      %v322 = vpop.f32.mrf.mxu0
      %v323 = vadd.f32 %v281, %v322
      %324 = vdwg.mxu0
      %vm325 = vcmask 523264
      %v326 = vsel %vm325, %v316, 0.0
      %327 = vadd.xlane.f32.xlu0 %v326
      %v328 = vpop.xlane.xlu0 %327
      %v329 = vsel %vm325, %v318, 0.0
      %330 = vadd.xlane.f32.xlu0 %v329
      %v331 = vpop.xlane.xlu0 %330
      %v332 = vsel %vm325, %v321, 0.0
      %333 = vadd.xlane.f32.xlu0 %v332
      %v334 = vpop.xlane.xlu0 %333
      %v335 = vsel %vm325, %v323, 0.0
      %336 = vadd.xlane.f32.xlu0 %v335
      %v337 = vpop.xlane.xlu0 %336
      %v338 = vmul.f32 %v316, %v316
      %v339 = vmul.f32 %v318, %v318
      %v340 = vmul.f32 %v321, %v321
      %v341 = vmul.f32 %v323, %v323
      %v342 = vsel %vm325, %v338, 0.0
      %343 = vadd.xlane.f32.xlu0 %v342
      %v344 = vpop.xlane.xlu0 %343
      %v345 = vsel %vm325, %v339, 0.0
      %346 = vadd.xlane.f32.xlu0 %v345
      %v347 = vpop.xlane.xlu0 %346
      %v348 = vsel %vm325, %v340, 0.0
      %349 = vadd.xlane.f32.xlu0 %v348
      %v350 = vpop.xlane.xlu0 %349
      %v351 = vsel %vm325, %v341, 0.0
      %352 = vadd.xlane.f32.xlu0 %v351
      %v353 = vpop.xlane.xlu0 %352
      %v354 = vld [vmem:[%s3] sm:$0xff]
      %v355 = vld [vmem:[%s3 + $0x8] sm:$0xff]
      %v356 = vld [vmem:[%s3 + $0x10] sm:$0xff]
      %v357 = vld [vmem:[%s3 + $0x18] sm:$0xff]
      %vm358 = vcmask 7168
      %v359 = vsel %vm358, %v328, %v344
      %v360 = vsel %vm358, %v331, %v347
      %v361 = vsel %vm358, %v334, %v350
      %v362 = vsel %vm358, %v337, %v353
      %vm363 = vcmask 261120
      %v365 = vsel %vm363, %v354, 0
      %v368 = vsel %vm363, %v355, 0
      %v371 = vsel %vm363, %v356, 0
      %v374 = vsel %vm363, %v357, 0
      %376 = vmatpush.msra.mxu0 0.0
      %377 = vmatpush.msra.mxu0 0.0
      %378 = vmatpush.msra.mxu0 0.0
      %379 = vmatpush.msra.mxu0 0.0
      %380 = vmatpush.msra.mxu0 0.0
      %381 = vmatpush.msra.mxu0 0.0
      %382 = vmatpush.msra.mxu0 0.0
      %383 = vmatpush.msra.mxu0 0.0
      %384 = vmatpush.msra.mxu0 0.0
      %385 = vmatpush.msra.mxu0 0.0
      %386 = vmatpush.msra.mxu0 0.0
      %387 = vmatpush.msra.mxu0 0.0
      %388 = vmatpush.msra.mxu0 %v362
      %389 = vmatpush.msra.mxu0 %v361
      %390 = vmatpush.msra.mxu0 %v360
      %391 = vmatpush.msra.mxu0 %v359
      %392 = vmatmul.f32.gmra.mxu0 %v365
      %v393 = vpop.f32.mrf.mxu0
      %v394 = vadd.f32 0.0, %v393
      %395 = vmatmul.f32.gmra.mxu0 %v368
      %v396 = vpop.f32.mrf.mxu0
      %v397 = vadd.f32 0.0, %v396
      %398 = vmatmul.f32.gmra.mxu0 %v371
      %v399 = vpop.f32.mrf.mxu0
      %v400 = vadd.f32 0.0, %v399
      %401 = vmatmul.f32.gmra.mxu0 %v374
      %v402 = vpop.f32.mrf.mxu0
      %v403 = vadd.f32 0.0, %v402
      %404 = vdwg.mxu0
      %v405 = vmul.f32 %v394, %v394
      %v406 = vmul.f32 %v397, %v397
      %v407 = vmul.f32 %v400, %v400
      %v408 = vmul.f32 %v403, %v403
      %413 = vrot.lane.b32.xlu0 %v405, 1
      %v414 = vpop.permute.xlu0 %413
      %415 = vrot.lane.b32.xlu0 %v406, 1
      %v416 = vpop.permute.xlu0 %415
      %417 = vrot.lane.b32.xlu0 %v407, 1
      %v418 = vpop.permute.xlu0 %417
      %419 = vrot.lane.b32.xlu0 %v408, 1
      %v420 = vpop.permute.xlu0 %419
      %v425 = vsub.f32 %v394, %v414
      %v426 = vsub.f32 %v397, %v416
      %v427 = vsub.f32 %v400, %v418
      %v428 = vsub.f32 %v403, %v420
      %v429 = vmax.f32 %v425, 0.0
      %v430 = vmax.f32 %v426, 0.0
      %v431 = vmax.f32 %v427, 0.0
      %v432 = vmax.f32 %v428, 0.0
      %434 = vset.pattern.permute.xlu0 0
      %435 = vperm.xlu0 %434, %v394
      %v436 = vpop.permute.xlu0 %435
      %439 = vset.pattern.permute.xlu0 0
      %440 = vperm.xlu0 %439, %v397
      %v441 = vpop.permute.xlu0 %440
      %444 = vset.pattern.permute.xlu0 0
      %445 = vperm.xlu0 %444, %v400
      %v446 = vpop.permute.xlu0 %445
      %449 = vset.pattern.permute.xlu0 0
      %450 = vperm.xlu0 %449, %v403
      %v451 = vpop.permute.xlu0 %450
      %v453 = vsub.f32 %v316, %v436
      %v454 = vsub.f32 %v318, %v441
      %v455 = vsub.f32 %v321, %v446
      %v456 = vsub.f32 %v323, %v451
      %v457 = vadd.f32 %v429, 1e-05
      %v458 = vadd.f32 %v430, 1e-05
      %v459 = vadd.f32 %v431, 1e-05
      %v460 = vadd.f32 %v432, 1e-05
      %v461 = vrsqrt.pop %v457
      %v462 = vmul.f32 %v461, %v457
      %v463 = vmul.f32 %v462, %v461
      %v464 = vmul.f32 0.5, %v463
      %v465 = vsub.f32 1.5, %v464
      %v466 = vmul.f32 %v461, %v465
      %vm467 = vweird.f32 %v457
      %vm468 = vweird.f32 %v461
      %vm469 = vmor %vm467, %vm468
      %v470 = vsel %vm469, %v461, %v466
      %v471 = vrsqrt.pop %v458
      %v472 = vmul.f32 %v471, %v458
      %v473 = vmul.f32 %v472, %v471
      %v474 = vmul.f32 0.5, %v473
      %v475 = vsub.f32 1.5, %v474
      %v476 = vmul.f32 %v471, %v475
      %vm477 = vweird.f32 %v458
      %vm478 = vweird.f32 %v471
      %vm479 = vmor %vm477, %vm478
      %v480 = vsel %vm479, %v471, %v476
      %v481 = vrsqrt.pop %v459
      %v482 = vmul.f32 %v481, %v459
      %v483 = vmul.f32 %v482, %v481
      %v484 = vmul.f32 0.5, %v483
      %v485 = vsub.f32 1.5, %v484
      %v486 = vmul.f32 %v481, %v485
      %vm487 = vweird.f32 %v459
      %vm488 = vweird.f32 %v481
      %vm489 = vmor %vm487, %vm488
      %v490 = vsel %vm489, %v481, %v486
      %v491 = vrsqrt.pop %v460
      %v492 = vmul.f32 %v491, %v460
      %v493 = vmul.f32 %v492, %v491
      %v494 = vmul.f32 0.5, %v493
      %v495 = vsub.f32 1.5, %v494
      %v496 = vmul.f32 %v491, %v495
      %vm497 = vweird.f32 %v460
      %vm498 = vweird.f32 %v491
      %vm499 = vmor %vm497, %vm498
      %v500 = vsel %vm499, %v491, %v496
      %502 = vset.pattern.permute.xlu0 1
      %503 = vperm.xlu0 %502, %v470
      %v504 = vpop.permute.xlu0 %503
      %507 = vset.pattern.permute.xlu0 1
      %508 = vperm.xlu0 %507, %v480
      %v509 = vpop.permute.xlu0 %508
      %512 = vset.pattern.permute.xlu0 1
      %513 = vperm.xlu0 %512, %v490
      %v514 = vpop.permute.xlu0 %513
      %517 = vset.pattern.permute.xlu0 1
      %518 = vperm.xlu0 %517, %v500
      %v519 = vpop.permute.xlu0 %518
      %v521 = vmul.f32 %v453, %v504
      %v522 = vmul.f32 %v454, %v509
      %v523 = vmul.f32 %v455, %v514
      %v524 = vmul.f32 %v456, %v519
      %v525 = vld [vmem:[%s4] sm:$0xff]
      %v526 = vld [vmem:[%s4 + $0x8] sm:$0xff]
      %v527 = vld [vmem:[%s4 + $0x10] sm:$0xff]
      %v528 = vld [vmem:[%s4 + $0x18] sm:$0xff]
      %530 = vset.pattern.permute.xlu0 0
      %531 = vperm.xlu0 %530, %v525
      %v532 = vpop.permute.xlu0 %531
      %535 = vset.pattern.permute.xlu0 0
      %536 = vperm.xlu0 %535, %v526
      %v537 = vpop.permute.xlu0 %536
      %540 = vset.pattern.permute.xlu0 0
      %541 = vperm.xlu0 %540, %v527
      %v542 = vpop.permute.xlu0 %541
      %545 = vset.pattern.permute.xlu0 0
      %546 = vperm.xlu0 %545, %v528
      %v547 = vpop.permute.xlu0 %546
      %v549 = vmul.f32 %v521, %v532
      %v550 = vmul.f32 %v522, %v537
      %v551 = vmul.f32 %v523, %v542
      %v552 = vmul.f32 %v524, %v547
      %v553 = vld [vmem:[%s5] sm:$0xff]
      %v554 = vld [vmem:[%s5 + $0x8] sm:$0xff]
      %v555 = vld [vmem:[%s5 + $0x10] sm:$0xff]
      %v556 = vld [vmem:[%s5 + $0x18] sm:$0xff]
      %558 = vset.pattern.permute.xlu0 0
      %559 = vperm.xlu0 %558, %v553
      %v560 = vpop.permute.xlu0 %559
      %563 = vset.pattern.permute.xlu0 0
      %564 = vperm.xlu0 %563, %v554
      %v565 = vpop.permute.xlu0 %564
      %568 = vset.pattern.permute.xlu0 0
      %569 = vperm.xlu0 %568, %v555
      %v570 = vpop.permute.xlu0 %569
      %573 = vset.pattern.permute.xlu0 0
      %574 = vperm.xlu0 %573, %v556
      %v575 = vpop.permute.xlu0 %574
      %v577 = vadd.f32 %v549, %v560
      %v578 = vadd.f32 %v550, %v565
      %v579 = vadd.f32 %v551, %v570
      %v580 = vadd.f32 %v552, %v575
      %v581 = vpack.c.bf16 %v577, %v577
      %v582 = vpack.c.bf16 %v578, %v578
      %v583 = vpack.c.bf16 %v579, %v579
      %v584 = vpack.c.bf16 %v580, %v580
      %vm585 = vcmask 519168
      %586 = vst.msk [vmem:[%s251] sm:$0xf] %vm585, %v581
      %587 = vst.msk [vmem:[%s251 + $0x4] sm:$0xf] %vm585, %v582
      %588 = vst.msk [vmem:[%s251 + $0x8] sm:$0xf] %vm585, %v583
      %589 = vst.msk [vmem:[%s251 + $0xc] sm:$0xf] %vm585, %v584
      %p590 = scmp.lt.s32.totalorder %s17, 1
      %s591 = scalar_select %p590, %s17, 1
      %s592 = smul.addr %s591, 4
      %s593 = smul.addr %s592, 4
      %s594 = scalar_lea.vmem %s6, %s593
      // Predicated region
      $region45: #{_lambda_.8} parent=43 // pred_check
        %p595 = pneg %p166
      $region46: #{_lambda_.8} parent=43 // pred_check_branch
        %597 = sbr.rel (%p595) target = $region48
      $region47: #{_lambda_.8} parent=43 // pred_region
        _
      $region48: #{_lambda_.8} parent=43 // pred_fallthru
        _
    $region44: #{_lambda_.8} parent=5 // pred_fallthru
      _
    %p598 = scmp.le.s32.totalorder 2, %s12
    // Predicated region
    $region49: #{_lambda_.8} parent=5 // pred_check
      %p599 = pneg %p598
    $region50: #{_lambda_.8} parent=5 // pred_check_branch
      %601 = sbr.rel (%p599) target = $region52
    $region51: #{_lambda_.8} parent=5 // pred_region
      %s602 = ssub.s32 %s12, 2
      // Predicated region
      $region53: #{_lambda_.8} parent=51 // pred_check
        %p603 = pneg %p172
      $region54: #{_lambda_.8} parent=51 // pred_check_branch
        %605 = sbr.rel (%p603) target = $region56
      $region55: #{_lambda_.8} parent=51 // pred_region
        %p606 = scmp.lt.s32.totalorder %s18, 1
        %s607 = scalar_select %p606, %s18, 1
        %s608 = smul.addr %s607, 4
        %s609 = smul.addr %s608, 4
        %s610 = scalar_lea.vmem %s6, %s609
      $region56: #{_lambda_.8} parent=51 // pred_fallthru
        _
    $region52: #{_lambda_.8} parent=5 // pred_fallthru
      _
  $region6: #{_lambda_.8} parent=0 // loop_footer
    %s16 = sadd.s32 1, %s12
  $region7: #{_lambda_.8} parent=0 // loop_footer_branch
    %11 = sbr.rel target = $region3
  $region8: #{_lambda_.8} parent=0 // loop_exit
    _

// kernel: _lambda_.10
$region0: #{_lambda_.10}
  #allocation0 [shape = 'u32[]', space=smem, size = 0x4, offset = 0x4, fixed_abs, tag = 'smem constant byte address 0x4 - core index']
  #allocation1 [shape = 'u32[72,128]{1,0:T(1,128)}', space=vmem, size = 0x9000, scoped, tag = 'internal scratch']
  %s0 = inlined_call_operand.vmem [shape: bf16[16,64], index: 0, kind: input, shape index: {}]
  %s1 = inlined_call_operand.vmem [shape: bf16[64,32], index: 1, kind: input, shape index: {}]
  %s2 = inlined_call_operand.vmem [shape: f32[1,32], index: 2, kind: input, shape index: {}]
  %s3 = inlined_call_operand.vmem [shape: f32[16,32], index: 3, kind: output, shape index: {}]
  %s4 = sld [smem:[#allocation0]]
  $region45: #{_lambda_.10} parent=0
    _
  %s6 = ssub.s32 1, %s4
  %s7 = scalar_select 0, %s6, %s4
  loop: start=0, step=1, limit=4
  $region2: #{_lambda_.10} parent=0 // loop_pre_header
    _
  $region3: #{_lambda_.10} parent=0 // loop_header
    %s9 = sphi 0, %s13
    %p10 = scmp.ge.s32.totalorder %s9, 4
    %s19 = sphi 0, %s21
    %s22 = sphi 0, %s19
    %s23 = sphi 0, %s22
    %s39 = sphi 0, %s23
    %s43 = sphi 0, %s43
    %s45 = sphi 0, %s43
    %s46 = sphi 0, %s45
    %s60 = sphi 0, %s46
    %s64 = sphi 0, %s64
    %s66 = sphi 0, %s64
    %s67 = sphi 0, %s66
    %s81 = sphi 0, %s67
    %s87 = sphi 0, %s89
    %s90 = sphi 0, %s87
    %s91 = sphi 0, %s90
    %s107 = sphi 0, %s91
  $region4: #{_lambda_.10} parent=0 // loop_header_branch
    %12 = sbr.rel (%p10) target = $region8
  $region5: #{_lambda_.10} parent=0 // loop_body
    %s14 = ssub.s32 %s9, 1
    %s15 = ssub.s32 %s9, 2
    %s16 = sadd.s32 %s9, 1
    %s17 = ssub.s32 %s9, %s16
    %p18 = scmp.eq.s32.totalorder %s17, 0
    %s20 = sadd.s32 %s19, 1
    %s21 = scalar_select %p18, %s19, %s20
    %p24 = pneg %p18
    %p25 = scmp.eq.s32.totalorder %s9, 1
    %p26 = por %p24, %p25
    %p27 = scmp.ne.s32.totalorder %s19, %s22
    %p28 = scmp.eq.s32.totalorder %s9, 0
    %p29 = por %p27, %p28
    %p30 = scmp.ne.s32.totalorder %s19, %s22
    %p31 = scmp.eq.s32.totalorder %s14, 1
    %p32 = por %p30, %p31
    %p33 = scmp.ne.s32.totalorder %s22, %s23
    %p34 = scmp.eq.s32.totalorder %s14, 0
    %p35 = por %p33, %p34
    %p36 = scmp.ne.s32.totalorder %s22, %s23
    %p37 = scmp.eq.s32.totalorder %s15, 1
    %p38 = por %p36, %p37
    %p40 = scmp.ne.s32.totalorder %s23, %s39
    %p41 = scmp.eq.s32.totalorder %s15, 0
    %p42 = por %p40, %p41
    %s44 = sadd.s32 %s43, 1
    %p47 = scmp.eq.s32.totalorder %s9, 1
    %p48 = scmp.ne.s32.totalorder %s43, %s45
    %p49 = scmp.eq.s32.totalorder %s9, 0
    %p50 = por %p48, %p49
    %p51 = scmp.ne.s32.totalorder %s43, %s45
    %p52 = scmp.eq.s32.totalorder %s14, 1
    %p53 = por %p51, %p52
    %p54 = scmp.ne.s32.totalorder %s45, %s46
    %p55 = scmp.eq.s32.totalorder %s14, 0
    %p56 = por %p54, %p55
    %p57 = scmp.ne.s32.totalorder %s45, %s46
    %p58 = scmp.eq.s32.totalorder %s15, 1
    %p59 = por %p57, %p58
    %p61 = scmp.ne.s32.totalorder %s46, %s60
    %p62 = scmp.eq.s32.totalorder %s15, 0
    %p63 = por %p61, %p62
    %s65 = sadd.s32 %s64, 1
    %p68 = scmp.eq.s32.totalorder %s9, 1
    %p69 = scmp.ne.s32.totalorder %s64, %s66
    %p70 = scmp.eq.s32.totalorder %s9, 0
    %p71 = por %p69, %p70
    %p72 = scmp.ne.s32.totalorder %s64, %s66
    %p73 = scmp.eq.s32.totalorder %s14, 1
    %p74 = por %p72, %p73
    %p75 = scmp.ne.s32.totalorder %s66, %s67
    %p76 = scmp.eq.s32.totalorder %s14, 0
    %p77 = por %p75, %p76
    %p78 = scmp.ne.s32.totalorder %s66, %s67
    %p79 = scmp.eq.s32.totalorder %s15, 1
    %p80 = por %p78, %p79
    %p82 = scmp.ne.s32.totalorder %s67, %s81
    %p83 = scmp.eq.s32.totalorder %s15, 0
    %p84 = por %p82, %p83
    %s85 = ssub.s32 %s9, %s16
    %p86 = scmp.eq.s32.totalorder %s85, 0
    %s88 = sadd.s32 %s87, 1
    %s89 = scalar_select %p86, %s87, %s88
    %p92 = pneg %p86
    %p93 = scmp.eq.s32.totalorder %s9, 1
    %p94 = por %p92, %p93
    %p95 = scmp.ne.s32.totalorder %s87, %s90
    %p96 = scmp.eq.s32.totalorder %s9, 0
    %p97 = por %p95, %p96
    %p98 = scmp.ne.s32.totalorder %s87, %s90
    %p99 = scmp.eq.s32.totalorder %s14, 1
    %p100 = por %p98, %p99
    %p101 = scmp.ne.s32.totalorder %s90, %s91
    %p102 = scmp.eq.s32.totalorder %s14, 0
    %p103 = por %p101, %p102
    %p104 = scmp.ne.s32.totalorder %s90, %s91
    %p105 = scmp.eq.s32.totalorder %s15, 1
    %p106 = por %p104, %p105
    %p108 = scmp.ne.s32.totalorder %s91, %s107
    %p109 = scmp.eq.s32.totalorder %s15, 0
    %p110 = por %p108, %p109
    %p111 = scmp.le.s32.totalorder 1, %s9
    %p112 = scmp.lt.s32.totalorder %s9, 3
    %p113 = pnand %p111, %p112
    %p114 = pneg %p113
    // Predicated region
    $region9: #{_lambda_.10} parent=5 // pred_check
      _
    $region10: #{_lambda_.10} parent=5 // pred_check_branch
      %116 = sbr.rel (%p113) target = $region12
    $region11: #{_lambda_.10} parent=5 // pred_region
      %s117 = ssub.s32 %s9, 1
      // Predicated region
      $region13: #{_lambda_.10} parent=11 // pred_check
        %p118 = pneg %p56
      $region14: #{_lambda_.10} parent=11 // pred_check_branch
        %120 = sbr.rel (%p118) target = $region16
      $region15: #{_lambda_.10} parent=11 // pred_region
        _
      $region16: #{_lambda_.10} parent=11 // pred_fallthru
        _
      // Predicated region
      $region17: #{_lambda_.10} parent=11 // pred_check
        %p121 = pneg %p77
      $region18: #{_lambda_.10} parent=11 // pred_check_branch
        %123 = sbr.rel (%p121) target = $region20
      $region19: #{_lambda_.10} parent=11 // pred_region
        _
      $region20: #{_lambda_.10} parent=11 // pred_fallthru
        _
    $region12: #{_lambda_.10} parent=5 // pred_fallthru
      _
    %p124 = scmp.lt.s32.totalorder %s9, 2
    // Predicated region
    $region21: #{_lambda_.10} parent=5 // pred_check
      %p125 = pneg %p124
    $region22: #{_lambda_.10} parent=5 // pred_check_branch
      %127 = sbr.rel (%p125) target = $region24
    $region23: #{_lambda_.10} parent=5 // pred_region
      // Predicated region
      $region25: #{_lambda_.10} parent=23 // pred_check
        %p128 = pneg %p29
      $region26: #{_lambda_.10} parent=23 // pred_check_branch
        %130 = sbr.rel (%p128) target = $region28
      $region27: #{_lambda_.10} parent=23 // pred_region
        %p131 = scmp.lt.s32.totalorder %s9, 1
        %s132 = scalar_select %p131, %s9, 1
        %s133 = smul.addr %s132, 4
        %s134 = scalar_lea.vmem %s0, %s133
      $region28: #{_lambda_.10} parent=23 // pred_fallthru
        _
    $region24: #{_lambda_.10} parent=5 // pred_fallthru
      _
    %p135 = scmp.le.s32.totalorder 1, %s9
    %p136 = scmp.lt.s32.totalorder %s9, 3
    %p137 = pnand %p135, %p136
    %p138 = pneg %p137
    // Predicated region
    $region29: #{_lambda_.10} parent=5 // pred_check
      _
    $region30: #{_lambda_.10} parent=5 // pred_check_branch
      %140 = sbr.rel (%p137) target = $region32
    $region31: #{_lambda_.10} parent=5 // pred_region
      %s141 = ssub.s32 %s9, 1
      %p142 = scmp.lt.s32.totalorder %s14, 1
      %s143 = scalar_select %p142, %s14, 1
      %s144 = smul.addr %s143, 4
      %s145 = scalar_lea.vmem %s0, %s144
      %p146 = pneg %p35
      %p147 = pneg %p32
      %p148 = pneg %p56
      %p149 = pneg %p53
      %p150 = pneg %p77
      %p151 = pneg %p74
      %p152 = pneg %p103
      %p153 = pneg %p100
      %p154 = scmp.lt.s32.totalorder %s14, 1
      %s155 = scalar_select %p154, %s14, 1
      %s156 = smul.addr %s155, 8
      %s157 = scalar_lea.vmem %s3, %s156
      %p158 = scmp.lt.s32.totalorder %s14, 1
      %s159 = scalar_select %p158, %s14, 1
      %s160 = smul.addr %s159, 4
      %s161 = scalar_lea.vmem %s0, %s160
      %p162 = scmp.lt.s32.totalorder %s14, 1
      %s163 = scalar_select %p162, %s14, 1
      %s164 = smul.addr %s163, 8
      %s165 = scalar_lea.vmem %s3, %s164
      %v167 = vld [vmem:[%s161] sm:$0xf]
      %v168 = vld [vmem:[%s1] sm:$0xf]
      %v169 = vld [vmem:[%s1 + $0x4] sm:$0xf]
      %v170 = vld [vmem:[%s1 + $0x8] sm:$0xf]
      %v171 = vld [vmem:[%s1 + $0xc] sm:$0xf]
      %v172 = vld [vmem:[%s1 + $0x10] sm:$0xf]
      %v173 = vld [vmem:[%s1 + $0x14] sm:$0xf]
      %v174 = vld [vmem:[%s1 + $0x18] sm:$0xf]
      %v175 = vld [vmem:[%s1 + $0x1c] sm:$0xf]
      %v176 = vld [vmem:[%s2] sm:$0x1]
      %v178 = vperm.slane %v176, 0
      %v188 = vunpack.c.l.b16 %v168
      %v189 = vunpack.c.l.b16 %v169
      %v190 = vunpack.c.l.b16 %v170
      %v191 = vunpack.c.l.b16 %v171
      %v192 = vunpack.c.l.b16 %v172
      %v193 = vunpack.c.l.b16 %v173
      %v194 = vunpack.c.l.b16 %v174
      %v195 = vunpack.c.l.b16 %v175
      %v196 = vpack.c.b16 %v189, %v188
      %v197 = vpack.c.b16 %v191, %v190
      %v198 = vpack.c.b16 %v193, %v192
      %v199 = vpack.c.b16 %v195, %v194
      %vm204 = vcmask 523264
      %v206 = vsel %vm204, %v167, 0
      %208 = vmatpush.bf16.msra.mxu0 0
      %209 = vmatpush.bf16.msra.mxu0 0
      %210 = vmatpush.bf16.msra.mxu0 0
      %211 = vmatpush.bf16.msra.mxu0 0
      %212 = vmatpush.bf16.msra.mxu0 %v199
      %213 = vmatpush.bf16.msra.mxu0 %v198
      %214 = vmatpush.bf16.msra.mxu0 %v197
      %215 = vmatpush.bf16.msra.mxu0 %v196
      %216 = vmatmul.bf16.gmra.mxu0 %v206
      %v217 = vpop.f32.mrf.mxu0
      %v218 = vadd.f32 %v178, %v217
      %v219 = vpop.f32.mrf.mxu0
      %220 = vdwg.mxu0
      %vm221 = vcmask 261120
      %222 = vst.msk [vmem:[%s165] sm:$0xff] %vm221, %v218
      %p223 = scmp.lt.s32.totalorder %s14, 1
      %s224 = scalar_select %p223, %s14, 1
      %s225 = smul.addr %s224, 8
      %s226 = scalar_lea.vmem %s3, %s225
      // Predicated region
      $region33: #{_lambda_.10} parent=31 // pred_check
        %p227 = pneg %p100
      $region34: #{_lambda_.10} parent=31 // pred_check_branch
        %229 = sbr.rel (%p227) target = $region36
      $region35: #{_lambda_.10} parent=31 // pred_region
        _
      $region36: #{_lambda_.10} parent=31 // pred_fallthru
        _
    $region32: #{_lambda_.10} parent=5 // pred_fallthru
      _
    %p230 = scmp.le.s32.totalorder 2, %s9
    // Predicated region
    $region37: #{_lambda_.10} parent=5 // pred_check
      %p231 = pneg %p230
    $region38: #{_lambda_.10} parent=5 // pred_check_branch
      %233 = sbr.rel (%p231) target = $region40
    $region39: #{_lambda_.10} parent=5 // pred_region
      %s234 = ssub.s32 %s9, 2
      // Predicated region
      $region41: #{_lambda_.10} parent=39 // pred_check
        %p235 = pneg %p106
      $region42: #{_lambda_.10} parent=39 // pred_check_branch
        %237 = sbr.rel (%p235) target = $region44
      $region43: #{_lambda_.10} parent=39 // pred_region
        %p238 = scmp.lt.s32.totalorder %s15, 1
        %s239 = scalar_select %p238, %s15, 1
        %s240 = smul.addr %s239, 8
        %s241 = scalar_lea.vmem %s3, %s240
      $region44: #{_lambda_.10} parent=39 // pred_fallthru
        _
    $region40: #{_lambda_.10} parent=5 // pred_fallthru
      _
  $region6: #{_lambda_.10} parent=0 // loop_footer
    %s13 = sadd.s32 1, %s9
  $region7: #{_lambda_.10} parent=0 // loop_footer_branch
    %8 = sbr.rel target = $region3
  $region8: #{_lambda_.10} parent=0 // loop_exit
    _

// kernel: _lambda_.11
$region0: #{_lambda_.11}
  #allocation0 [shape = 'u32[]', space=smem, size = 0x4, offset = 0x4, fixed_abs, tag = 'smem constant byte address 0x4 - core index']
  #allocation1 [shape = 'u32[72,128]{1,0:T(1,128)}', space=vmem, size = 0x9000, scoped, tag = 'internal scratch']
  %s0 = inlined_call_operand.vmem [shape: bf16[48,32], index: 0, kind: input, shape index: {}]
  %s1 = inlined_call_operand.vmem [shape: bf16[32,69], index: 1, kind: input, shape index: {}]
  %s2 = inlined_call_operand.vmem [shape: f32[1,69], index: 2, kind: input, shape index: {}]
  %s3 = inlined_call_operand.vmem [shape: bf16[32,32], index: 3, kind: input, shape index: {}]
  %s4 = inlined_call_operand.vmem [shape: f32[1,32], index: 4, kind: input, shape index: {}]
  %s5 = inlined_call_operand.vmem [shape: bf16[32,4], index: 5, kind: input, shape index: {}]
  %s6 = inlined_call_operand.vmem [shape: f32[1,4], index: 6, kind: input, shape index: {}]
  %s7 = inlined_call_operand.vmem [shape: bf16[32,32], index: 7, kind: input, shape index: {}]
  %s8 = inlined_call_operand.vmem [shape: f32[1,32], index: 8, kind: input, shape index: {}]
  %s9 = inlined_call_operand.vmem [shape: bf16[32,16], index: 9, kind: input, shape index: {}]
  %s10 = inlined_call_operand.vmem [shape: f32[1,16], index: 10, kind: input, shape index: {}]
  %s11 = inlined_call_operand.vmem [shape: f32[48,128], index: 11, kind: output, shape index: {}]
  %s12 = sld [smem:[#allocation0]]
  $region77: #{_lambda_.11} parent=0
    _
  %s14 = ssub.s32 1, %s12
  %s15 = scalar_select 0, %s14, %s12
  loop: start=0, step=1, limit=4
  $region2: #{_lambda_.11} parent=0 // loop_pre_header
    _
  $region3: #{_lambda_.11} parent=0 // loop_header
    %s17 = sphi 0, %s21
    %p18 = scmp.ge.s32.totalorder %s17, 4
    %s27 = sphi 0, %s29
    %s30 = sphi 0, %s27
    %s31 = sphi 0, %s30
    %s47 = sphi 0, %s31
    %s51 = sphi 0, %s51
    %s53 = sphi 0, %s51
    %s54 = sphi 0, %s53
    %s68 = sphi 0, %s54
    %s72 = sphi 0, %s72
    %s74 = sphi 0, %s72
    %s75 = sphi 0, %s74
    %s89 = sphi 0, %s75
    %s93 = sphi 0, %s93
    %s95 = sphi 0, %s93
    %s96 = sphi 0, %s95
    %s110 = sphi 0, %s96
    %s114 = sphi 0, %s114
    %s116 = sphi 0, %s114
    %s117 = sphi 0, %s116
    %s131 = sphi 0, %s117
    %s135 = sphi 0, %s135
    %s137 = sphi 0, %s135
    %s138 = sphi 0, %s137
    %s152 = sphi 0, %s138
    %s156 = sphi 0, %s156
    %s158 = sphi 0, %s156
    %s159 = sphi 0, %s158
    %s173 = sphi 0, %s159
    %s177 = sphi 0, %s177
    %s179 = sphi 0, %s177
    %s180 = sphi 0, %s179
    %s194 = sphi 0, %s180
    %s198 = sphi 0, %s198
    %s200 = sphi 0, %s198
    %s201 = sphi 0, %s200
    %s215 = sphi 0, %s201
    %s219 = sphi 0, %s219
    %s221 = sphi 0, %s219
    %s222 = sphi 0, %s221
    %s236 = sphi 0, %s222
    %s240 = sphi 0, %s240
    %s242 = sphi 0, %s240
    %s243 = sphi 0, %s242
    %s257 = sphi 0, %s243
    %s263 = sphi 0, %s265
    %s266 = sphi 0, %s263
    %s267 = sphi 0, %s266
    %s283 = sphi 0, %s267
  $region4: #{_lambda_.11} parent=0 // loop_header_branch
    %20 = sbr.rel (%p18) target = $region8
  $region5: #{_lambda_.11} parent=0 // loop_body
    %s22 = ssub.s32 %s17, 1
    %s23 = ssub.s32 %s17, 2
    %s24 = sadd.s32 %s17, 1
    %s25 = ssub.s32 %s17, %s24
    %p26 = scmp.eq.s32.totalorder %s25, 0
    %s28 = sadd.s32 %s27, 1
    %s29 = scalar_select %p26, %s27, %s28
    %p32 = pneg %p26
    %p33 = scmp.eq.s32.totalorder %s17, 1
    %p34 = por %p32, %p33
    %p35 = scmp.ne.s32.totalorder %s27, %s30
    %p36 = scmp.eq.s32.totalorder %s17, 0
    %p37 = por %p35, %p36
    %p38 = scmp.ne.s32.totalorder %s27, %s30
    %p39 = scmp.eq.s32.totalorder %s22, 1
    %p40 = por %p38, %p39
    %p41 = scmp.ne.s32.totalorder %s30, %s31
    %p42 = scmp.eq.s32.totalorder %s22, 0
    %p43 = por %p41, %p42
    %p44 = scmp.ne.s32.totalorder %s30, %s31
    %p45 = scmp.eq.s32.totalorder %s23, 1
    %p46 = por %p44, %p45
    %p48 = scmp.ne.s32.totalorder %s31, %s47
    %p49 = scmp.eq.s32.totalorder %s23, 0
    %p50 = por %p48, %p49
    %s52 = sadd.s32 %s51, 1
    %p55 = scmp.eq.s32.totalorder %s17, 1
    %p56 = scmp.ne.s32.totalorder %s51, %s53
    %p57 = scmp.eq.s32.totalorder %s17, 0
    %p58 = por %p56, %p57
    %p59 = scmp.ne.s32.totalorder %s51, %s53
    %p60 = scmp.eq.s32.totalorder %s22, 1
    %p61 = por %p59, %p60
    %p62 = scmp.ne.s32.totalorder %s53, %s54
    %p63 = scmp.eq.s32.totalorder %s22, 0
    %p64 = por %p62, %p63
    %p65 = scmp.ne.s32.totalorder %s53, %s54
    %p66 = scmp.eq.s32.totalorder %s23, 1
    %p67 = por %p65, %p66
    %p69 = scmp.ne.s32.totalorder %s54, %s68
    %p70 = scmp.eq.s32.totalorder %s23, 0
    %p71 = por %p69, %p70
    %s73 = sadd.s32 %s72, 1
    %p76 = scmp.eq.s32.totalorder %s17, 1
    %p77 = scmp.ne.s32.totalorder %s72, %s74
    %p78 = scmp.eq.s32.totalorder %s17, 0
    %p79 = por %p77, %p78
    %p80 = scmp.ne.s32.totalorder %s72, %s74
    %p81 = scmp.eq.s32.totalorder %s22, 1
    %p82 = por %p80, %p81
    %p83 = scmp.ne.s32.totalorder %s74, %s75
    %p84 = scmp.eq.s32.totalorder %s22, 0
    %p85 = por %p83, %p84
    %p86 = scmp.ne.s32.totalorder %s74, %s75
    %p87 = scmp.eq.s32.totalorder %s23, 1
    %p88 = por %p86, %p87
    %p90 = scmp.ne.s32.totalorder %s75, %s89
    %p91 = scmp.eq.s32.totalorder %s23, 0
    %p92 = por %p90, %p91
    %s94 = sadd.s32 %s93, 1
    %p97 = scmp.eq.s32.totalorder %s17, 1
    %p98 = scmp.ne.s32.totalorder %s93, %s95
    %p99 = scmp.eq.s32.totalorder %s17, 0
    %p100 = por %p98, %p99
    %p101 = scmp.ne.s32.totalorder %s93, %s95
    %p102 = scmp.eq.s32.totalorder %s22, 1
    %p103 = por %p101, %p102
    %p104 = scmp.ne.s32.totalorder %s95, %s96
    %p105 = scmp.eq.s32.totalorder %s22, 0
    %p106 = por %p104, %p105
    %p107 = scmp.ne.s32.totalorder %s95, %s96
    %p108 = scmp.eq.s32.totalorder %s23, 1
    %p109 = por %p107, %p108
    %p111 = scmp.ne.s32.totalorder %s96, %s110
    %p112 = scmp.eq.s32.totalorder %s23, 0
    %p113 = por %p111, %p112
    %s115 = sadd.s32 %s114, 1
    %p118 = scmp.eq.s32.totalorder %s17, 1
    %p119 = scmp.ne.s32.totalorder %s114, %s116
    %p120 = scmp.eq.s32.totalorder %s17, 0
    %p121 = por %p119, %p120
    %p122 = scmp.ne.s32.totalorder %s114, %s116
    %p123 = scmp.eq.s32.totalorder %s22, 1
    %p124 = por %p122, %p123
    %p125 = scmp.ne.s32.totalorder %s116, %s117
    %p126 = scmp.eq.s32.totalorder %s22, 0
    %p127 = por %p125, %p126
    %p128 = scmp.ne.s32.totalorder %s116, %s117
    %p129 = scmp.eq.s32.totalorder %s23, 1
    %p130 = por %p128, %p129
    %p132 = scmp.ne.s32.totalorder %s117, %s131
    %p133 = scmp.eq.s32.totalorder %s23, 0
    %p134 = por %p132, %p133
    %s136 = sadd.s32 %s135, 1
    %p139 = scmp.eq.s32.totalorder %s17, 1
    %p140 = scmp.ne.s32.totalorder %s135, %s137
    %p141 = scmp.eq.s32.totalorder %s17, 0
    %p142 = por %p140, %p141
    %p143 = scmp.ne.s32.totalorder %s135, %s137
    %p144 = scmp.eq.s32.totalorder %s22, 1
    %p145 = por %p143, %p144
    %p146 = scmp.ne.s32.totalorder %s137, %s138
    %p147 = scmp.eq.s32.totalorder %s22, 0
    %p148 = por %p146, %p147
    %p149 = scmp.ne.s32.totalorder %s137, %s138
    %p150 = scmp.eq.s32.totalorder %s23, 1
    %p151 = por %p149, %p150
    %p153 = scmp.ne.s32.totalorder %s138, %s152
    %p154 = scmp.eq.s32.totalorder %s23, 0
    %p155 = por %p153, %p154
    %s157 = sadd.s32 %s156, 1
    %p160 = scmp.eq.s32.totalorder %s17, 1
    %p161 = scmp.ne.s32.totalorder %s156, %s158
    %p162 = scmp.eq.s32.totalorder %s17, 0
    %p163 = por %p161, %p162
    %p164 = scmp.ne.s32.totalorder %s156, %s158
    %p165 = scmp.eq.s32.totalorder %s22, 1
    %p166 = por %p164, %p165
    %p167 = scmp.ne.s32.totalorder %s158, %s159
    %p168 = scmp.eq.s32.totalorder %s22, 0
    %p169 = por %p167, %p168
    %p170 = scmp.ne.s32.totalorder %s158, %s159
    %p171 = scmp.eq.s32.totalorder %s23, 1
    %p172 = por %p170, %p171
    %p174 = scmp.ne.s32.totalorder %s159, %s173
    %p175 = scmp.eq.s32.totalorder %s23, 0
    %p176 = por %p174, %p175
    %s178 = sadd.s32 %s177, 1
    %p181 = scmp.eq.s32.totalorder %s17, 1
    %p182 = scmp.ne.s32.totalorder %s177, %s179
    %p183 = scmp.eq.s32.totalorder %s17, 0
    %p184 = por %p182, %p183
    %p185 = scmp.ne.s32.totalorder %s177, %s179
    %p186 = scmp.eq.s32.totalorder %s22, 1
    %p187 = por %p185, %p186
    %p188 = scmp.ne.s32.totalorder %s179, %s180
    %p189 = scmp.eq.s32.totalorder %s22, 0
    %p190 = por %p188, %p189
    %p191 = scmp.ne.s32.totalorder %s179, %s180
    %p192 = scmp.eq.s32.totalorder %s23, 1
    %p193 = por %p191, %p192
    %p195 = scmp.ne.s32.totalorder %s180, %s194
    %p196 = scmp.eq.s32.totalorder %s23, 0
    %p197 = por %p195, %p196
    %s199 = sadd.s32 %s198, 1
    %p202 = scmp.eq.s32.totalorder %s17, 1
    %p203 = scmp.ne.s32.totalorder %s198, %s200
    %p204 = scmp.eq.s32.totalorder %s17, 0
    %p205 = por %p203, %p204
    %p206 = scmp.ne.s32.totalorder %s198, %s200
    %p207 = scmp.eq.s32.totalorder %s22, 1
    %p208 = por %p206, %p207
    %p209 = scmp.ne.s32.totalorder %s200, %s201
    %p210 = scmp.eq.s32.totalorder %s22, 0
    %p211 = por %p209, %p210
    %p212 = scmp.ne.s32.totalorder %s200, %s201
    %p213 = scmp.eq.s32.totalorder %s23, 1
    %p214 = por %p212, %p213
    %p216 = scmp.ne.s32.totalorder %s201, %s215
    %p217 = scmp.eq.s32.totalorder %s23, 0
    %p218 = por %p216, %p217
    %s220 = sadd.s32 %s219, 1
    %p223 = scmp.eq.s32.totalorder %s17, 1
    %p224 = scmp.ne.s32.totalorder %s219, %s221
    %p225 = scmp.eq.s32.totalorder %s17, 0
    %p226 = por %p224, %p225
    %p227 = scmp.ne.s32.totalorder %s219, %s221
    %p228 = scmp.eq.s32.totalorder %s22, 1
    %p229 = por %p227, %p228
    %p230 = scmp.ne.s32.totalorder %s221, %s222
    %p231 = scmp.eq.s32.totalorder %s22, 0
    %p232 = por %p230, %p231
    %p233 = scmp.ne.s32.totalorder %s221, %s222
    %p234 = scmp.eq.s32.totalorder %s23, 1
    %p235 = por %p233, %p234
    %p237 = scmp.ne.s32.totalorder %s222, %s236
    %p238 = scmp.eq.s32.totalorder %s23, 0
    %p239 = por %p237, %p238
    %s241 = sadd.s32 %s240, 1
    %p244 = scmp.eq.s32.totalorder %s17, 1
    %p245 = scmp.ne.s32.totalorder %s240, %s242
    %p246 = scmp.eq.s32.totalorder %s17, 0
    %p247 = por %p245, %p246
    %p248 = scmp.ne.s32.totalorder %s240, %s242
    %p249 = scmp.eq.s32.totalorder %s22, 1
    %p250 = por %p248, %p249
    %p251 = scmp.ne.s32.totalorder %s242, %s243
    %p252 = scmp.eq.s32.totalorder %s22, 0
    %p253 = por %p251, %p252
    %p254 = scmp.ne.s32.totalorder %s242, %s243
    %p255 = scmp.eq.s32.totalorder %s23, 1
    %p256 = por %p254, %p255
    %p258 = scmp.ne.s32.totalorder %s243, %s257
    %p259 = scmp.eq.s32.totalorder %s23, 0
    %p260 = por %p258, %p259
    %s261 = ssub.s32 %s17, %s24
    %p262 = scmp.eq.s32.totalorder %s261, 0
    %s264 = sadd.s32 %s263, 1
    %s265 = scalar_select %p262, %s263, %s264
    %p268 = pneg %p262
    %p269 = scmp.eq.s32.totalorder %s17, 1
    %p270 = por %p268, %p269
    %p271 = scmp.ne.s32.totalorder %s263, %s266
    %p272 = scmp.eq.s32.totalorder %s17, 0
    %p273 = por %p271, %p272
    %p274 = scmp.ne.s32.totalorder %s263, %s266
    %p275 = scmp.eq.s32.totalorder %s22, 1
    %p276 = por %p274, %p275
    %p277 = scmp.ne.s32.totalorder %s266, %s267
    %p278 = scmp.eq.s32.totalorder %s22, 0
    %p279 = por %p277, %p278
    %p280 = scmp.ne.s32.totalorder %s266, %s267
    %p281 = scmp.eq.s32.totalorder %s23, 1
    %p282 = por %p280, %p281
    %p284 = scmp.ne.s32.totalorder %s267, %s283
    %p285 = scmp.eq.s32.totalorder %s23, 0
    %p286 = por %p284, %p285
    %p287 = scmp.le.s32.totalorder 1, %s17
    %p288 = scmp.lt.s32.totalorder %s17, 3
    %p289 = pnand %p287, %p288
    %p290 = pneg %p289
    // Predicated region
    $region9: #{_lambda_.11} parent=5 // pred_check
      _
    $region10: #{_lambda_.11} parent=5 // pred_check_branch
      %292 = sbr.rel (%p289) target = $region12
    $region11: #{_lambda_.11} parent=5 // pred_region
      %s293 = ssub.s32 %s17, 1
      // Predicated region
      $region13: #{_lambda_.11} parent=11 // pred_check
        %p294 = pneg %p64
      $region14: #{_lambda_.11} parent=11 // pred_check_branch
        %296 = sbr.rel (%p294) target = $region16
      $region15: #{_lambda_.11} parent=11 // pred_region
        _
      $region16: #{_lambda_.11} parent=11 // pred_fallthru
        _
      // Predicated region
      $region17: #{_lambda_.11} parent=11 // pred_check
        %p297 = pneg %p85
      $region18: #{_lambda_.11} parent=11 // pred_check_branch
        %299 = sbr.rel (%p297) target = $region20
      $region19: #{_lambda_.11} parent=11 // pred_region
        _
      $region20: #{_lambda_.11} parent=11 // pred_fallthru
        _
      // Predicated region
      $region21: #{_lambda_.11} parent=11 // pred_check
        %p300 = pneg %p106
      $region22: #{_lambda_.11} parent=11 // pred_check_branch
        %302 = sbr.rel (%p300) target = $region24
      $region23: #{_lambda_.11} parent=11 // pred_region
        _
      $region24: #{_lambda_.11} parent=11 // pred_fallthru
        _
      // Predicated region
      $region25: #{_lambda_.11} parent=11 // pred_check
        %p303 = pneg %p127
      $region26: #{_lambda_.11} parent=11 // pred_check_branch
        %305 = sbr.rel (%p303) target = $region28
      $region27: #{_lambda_.11} parent=11 // pred_region
        _
      $region28: #{_lambda_.11} parent=11 // pred_fallthru
        _
      // Predicated region
      $region29: #{_lambda_.11} parent=11 // pred_check
        %p306 = pneg %p148
      $region30: #{_lambda_.11} parent=11 // pred_check_branch
        %308 = sbr.rel (%p306) target = $region32
      $region31: #{_lambda_.11} parent=11 // pred_region
        _
      $region32: #{_lambda_.11} parent=11 // pred_fallthru
        _
      // Predicated region
      $region33: #{_lambda_.11} parent=11 // pred_check
        %p309 = pneg %p169
      $region34: #{_lambda_.11} parent=11 // pred_check_branch
        %311 = sbr.rel (%p309) target = $region36
      $region35: #{_lambda_.11} parent=11 // pred_region
        _
      $region36: #{_lambda_.11} parent=11 // pred_fallthru
        _
      // Predicated region
      $region37: #{_lambda_.11} parent=11 // pred_check
        %p312 = pneg %p190
      $region38: #{_lambda_.11} parent=11 // pred_check_branch
        %314 = sbr.rel (%p312) target = $region40
      $region39: #{_lambda_.11} parent=11 // pred_region
        _
      $region40: #{_lambda_.11} parent=11 // pred_fallthru
        _
      // Predicated region
      $region41: #{_lambda_.11} parent=11 // pred_check
        %p315 = pneg %p211
      $region42: #{_lambda_.11} parent=11 // pred_check_branch
        %317 = sbr.rel (%p315) target = $region44
      $region43: #{_lambda_.11} parent=11 // pred_region
        _
      $region44: #{_lambda_.11} parent=11 // pred_fallthru
        _
      // Predicated region
      $region45: #{_lambda_.11} parent=11 // pred_check
        %p318 = pneg %p232
      $region46: #{_lambda_.11} parent=11 // pred_check_branch
        %320 = sbr.rel (%p318) target = $region48
      $region47: #{_lambda_.11} parent=11 // pred_region
        _
      $region48: #{_lambda_.11} parent=11 // pred_fallthru
        _
      // Predicated region
      $region49: #{_lambda_.11} parent=11 // pred_check
        %p321 = pneg %p253
      $region50: #{_lambda_.11} parent=11 // pred_check_branch
        %323 = sbr.rel (%p321) target = $region52
      $region51: #{_lambda_.11} parent=11 // pred_region
        _
      $region52: #{_lambda_.11} parent=11 // pred_fallthru
        _
    $region12: #{_lambda_.11} parent=5 // pred_fallthru
      _
    %p324 = scmp.lt.s32.totalorder %s17, 2
    // Predicated region
    $region53: #{_lambda_.11} parent=5 // pred_check
      %p325 = pneg %p324
    $region54: #{_lambda_.11} parent=5 // pred_check_branch
      %327 = sbr.rel (%p325) target = $region56
    $region55: #{_lambda_.11} parent=5 // pred_region
      // Predicated region
      $region57: #{_lambda_.11} parent=55 // pred_check
        %p328 = pneg %p37
      $region58: #{_lambda_.11} parent=55 // pred_check_branch
        %330 = sbr.rel (%p328) target = $region60
      $region59: #{_lambda_.11} parent=55 // pred_region
        %s331 = smul.u32 3, %s17
        %p332 = scmp.lt.s32.totalorder %s331, 5
        %s333 = scalar_select %p332, %s331, 5
        %s334 = smul.addr %s333, 4
        %s335 = scalar_lea.vmem %s0, %s334
        %s336 = smul.u32 3, %s17
      $region60: #{_lambda_.11} parent=55 // pred_fallthru
        _
    $region56: #{_lambda_.11} parent=5 // pred_fallthru
      _
    %p337 = scmp.le.s32.totalorder 1, %s17
    %p338 = scmp.lt.s32.totalorder %s17, 3
    %p339 = pnand %p337, %p338
    %p340 = pneg %p339
    // Predicated region
    $region61: #{_lambda_.11} parent=5 // pred_check
      _
    $region62: #{_lambda_.11} parent=5 // pred_check_branch
      %342 = sbr.rel (%p339) target = $region64
    $region63: #{_lambda_.11} parent=5 // pred_region
      %s343 = ssub.s32 %s17, 1
      %s344 = smul.u32 3, %s22
      %p345 = scmp.lt.s32.totalorder %s344, 5
      %s346 = scalar_select %p345, %s344, 5
      %s347 = smul.addr %s346, 4
      %s348 = scalar_lea.vmem %s0, %s347
      %p349 = pneg %p43
      %p350 = pneg %p40
      %p351 = pneg %p64
      %p352 = pneg %p61
      %p353 = pneg %p85
      %p354 = pneg %p82
      %p355 = pneg %p106
      %p356 = pneg %p103
      %p357 = pneg %p127
      %p358 = pneg %p124
      %p359 = pneg %p148
      %p360 = pneg %p145
      %p361 = pneg %p169
      %p362 = pneg %p166
      %p363 = pneg %p190
      %p364 = pneg %p187
      %p365 = pneg %p211
      %p366 = pneg %p208
      %p367 = pneg %p232
      %p368 = pneg %p229
      %p369 = pneg %p253
      %p370 = pneg %p250
      %p371 = pneg %p279
      %p372 = pneg %p276
      %s373 = smul.u32 3, %s22
      %p374 = scmp.lt.s32.totalorder %s373, 5
      %s375 = scalar_select %p374, %s373, 5
      %s376 = smul.addr %s375, 8
      %s377 = scalar_lea.vmem %s11, %s376
      %s378 = smul.u32 3, %s22
      %p379 = scmp.lt.s32.totalorder %s378, 5
      %s380 = scalar_select %p379, %s378, 5
      %s381 = smul.addr %s380, 4
      %s382 = scalar_lea.vmem %s0, %s381
      %s383 = smul.u32 3, %s22
      %s384 = smul.u32 3, %s22
      %p385 = scmp.lt.s32.totalorder %s384, 5
      %s386 = scalar_select %p385, %s384, 5
      %s387 = smul.addr %s386, 8
      %s388 = scalar_lea.vmem %s11, %s387
      %s389 = smul.u32 3, %s22
      %v391 = vld [vmem:[%s382] sm:$0xf]
      %v392 = vld [vmem:[%s382 + $0x4] sm:$0xf]
      %v393 = vld [vmem:[%s382 + $0x8] sm:$0xf]
      %v394 = vld [vmem:[%s1] sm:$0xf]
      %v395 = vld [vmem:[%s1 + $0x4] sm:$0xf]
      %v396 = vld [vmem:[%s1 + $0x8] sm:$0xf]
      %v397 = vld [vmem:[%s1 + $0xc] sm:$0xf]
      %v398 = vld [vmem:[%s2] sm:$0x1]
      %v400 = vperm.slane %v398, 0
      %v405 = vunpack.c.l.b16 %v391
      %v406 = vunpack.c.l.b16 %v392
      %v407 = vunpack.c.l.b16 %v393
      %v408 = vpack.c.b16 %v406, %v405
      %v409 = vpack.c.b16 %v407, %v407
      %v414 = vunpack.c.l.b16 %v394
      %v415 = vunpack.c.l.b16 %v395
      %v416 = vunpack.c.l.b16 %v396
      %v417 = vunpack.c.l.b16 %v397
      %v418 = vpack.c.b16 %v415, %v414
      %v419 = vpack.c.b16 %v417, %v416
      %vm422 = vcmask 261120
      %v424 = vsel %vm422, %v408, 0
      %v427 = vsel %vm422, %v409, 0
      %429 = vmatpush.bf16.msra.mxu0 0
      %430 = vmatpush.bf16.msra.mxu0 0
      %431 = vmatpush.bf16.msra.mxu0 0
      %432 = vmatpush.bf16.msra.mxu0 0
      %433 = vmatpush.bf16.msra.mxu0 0
      %434 = vmatpush.bf16.msra.mxu0 0
      %435 = vmatpush.bf16.msra.mxu0 %v419
      %436 = vmatpush.bf16.msra.mxu0 %v418
      %437 = vmatmul.bf16.gmra.mxu0 %v424
      %v438 = vpop.f32.mrf.mxu0
      %v439 = vadd.f32 %v400, %v438
      %v440 = vpop.f32.mrf.mxu0
      %v441 = vadd.f32 %v400, %v440
      %442 = vmatmul.bf16.gmra.mxu0 %v427
      %v443 = vpop.f32.mrf.mxu0
      %v444 = vadd.f32 %v400, %v443
      %v445 = vpop.f32.mrf.mxu0
      %446 = vdwg.mxu0
      %v447 = vmax.f32 %v439, 0.0
      %v448 = vmax.f32 %v441, 0.0
      %v449 = vmax.f32 %v444, 0.0
      %v450 = vpack.c.bf16 %v448, %v447
      %v451 = vpack.c.bf16 %v449, %v449
      %v452 = vld [vmem:[%s3] sm:$0xf]
      %v453 = vld [vmem:[%s3 + $0x4] sm:$0xf]
      %v454 = vld [vmem:[%s3 + $0x8] sm:$0xf]
      %v455 = vld [vmem:[%s3 + $0xc] sm:$0xf]
      %v456 = vld [vmem:[%s4] sm:$0x1]
      %v458 = vperm.slane %v456, 0
      %v464 = vunpack.c.l.b16 %v452
      %v465 = vunpack.c.l.b16 %v453
      %v466 = vunpack.c.l.b16 %v454
      %v467 = vunpack.c.l.b16 %v455
      %v468 = vpack.c.b16 %v465, %v464
      %v469 = vpack.c.b16 %v467, %v466
      %v473 = vsel %vm422, %v450, 0
      %v476 = vsel %vm422, %v451, 0
      %478 = vmatpush.bf16.msra.mxu0 0
      %479 = vmatpush.bf16.msra.mxu0 0
      %480 = vmatpush.bf16.msra.mxu0 0
      %481 = vmatpush.bf16.msra.mxu0 0
      %482 = vmatpush.bf16.msra.mxu0 0
      %483 = vmatpush.bf16.msra.mxu0 0
      %484 = vmatpush.bf16.msra.mxu0 %v469
      %485 = vmatpush.bf16.msra.mxu0 %v468
      %486 = vmatmul.bf16.gmra.mxu0 %v473
      %v487 = vpop.f32.mrf.mxu0
      %v488 = vadd.f32 %v458, %v487
      %v489 = vpop.f32.mrf.mxu0
      %v490 = vadd.f32 %v458, %v489
      %491 = vmatmul.bf16.gmra.mxu0 %v476
      %v492 = vpop.f32.mrf.mxu0
      %v493 = vadd.f32 %v458, %v492
      %v494 = vpop.f32.mrf.mxu0
      %495 = vdwg.mxu0
      %v496 = vmax.f32 %v488, 0.0
      %v497 = vmax.f32 %v490, 0.0
      %v498 = vmax.f32 %v493, 0.0
      %v499 = vpack.c.bf16 %v497, %v496
      %v500 = vpack.c.bf16 %v498, %v498
      %v501 = vld [vmem:[%s5] sm:$0xf]
      %v502 = vld [vmem:[%s5 + $0x4] sm:$0xf]
      %v503 = vld [vmem:[%s5 + $0x8] sm:$0xf]
      %v504 = vld [vmem:[%s5 + $0xc] sm:$0xf]
      %v505 = vld [vmem:[%s6] sm:$0x1]
      %v507 = vperm.slane %v505, 0
      %v513 = vunpack.c.l.b16 %v501
      %v514 = vunpack.c.l.b16 %v502
      %v515 = vunpack.c.l.b16 %v503
      %v516 = vunpack.c.l.b16 %v504
      %v517 = vpack.c.b16 %v514, %v513
      %v518 = vpack.c.b16 %v516, %v515
      %v522 = vsel %vm422, %v499, 0
      %v525 = vsel %vm422, %v500, 0
      %527 = vmatpush.bf16.msra.mxu0 0
      %528 = vmatpush.bf16.msra.mxu0 0
      %529 = vmatpush.bf16.msra.mxu0 0
      %530 = vmatpush.bf16.msra.mxu0 0
      %531 = vmatpush.bf16.msra.mxu0 0
      %532 = vmatpush.bf16.msra.mxu0 0
      %533 = vmatpush.bf16.msra.mxu0 %v518
      %534 = vmatpush.bf16.msra.mxu0 %v517
      %535 = vmatmul.bf16.gmra.mxu0 %v522
      %v536 = vpop.f32.mrf.mxu0
      %v537 = vadd.f32 %v507, %v536
      %v538 = vpop.f32.mrf.mxu0
      %v539 = vadd.f32 %v507, %v538
      %540 = vmatmul.bf16.gmra.mxu0 %v525
      %v541 = vpop.f32.mrf.mxu0
      %v542 = vadd.f32 %v507, %v541
      %v543 = vpop.f32.mrf.mxu0
      %544 = vdwg.mxu0
      %v545 = vxor.u32 %v537, 2147483648
      %v546 = vxor.u32 %v539, 2147483648
      %v547 = vxor.u32 %v542, 2147483648
      %v548 = vmul.f32 %v545, 1.442695
      %v549 = vpow.pop %v548
      %v550 = vmul.f32 %v546, 1.442695
      %v551 = vpow.pop %v550
      %v552 = vmul.f32 %v547, 1.442695
      %v553 = vpow.pop %v552
      %v554 = vadd.f32 %v549, 1.0
      %v555 = vadd.f32 %v551, 1.0
      %v556 = vadd.f32 %v553, 1.0
      %v557 = vrcp.pop %v554
      %v558 = vmul.f32 %v554, %v557
      %v559 = vsub.f32 1.0, %v558
      %v560 = vmul.f32 %v557, %v559
      %v561 = vadd.f32 %v557, %v560
      %vm562 = vweird.f32 %v554
      %vm563 = vweird.f32 %v557
      %vm564 = vmor %vm562, %vm563
      %v565 = vsel %vm564, %v557, %v561
      %v566 = vand.u32 2147483647, %v554
      %vm567 = vcmp.eq.f32.partialorder %v566, 8.507059e+37
      %v568 = vand.u32 %v554, 2147483648
      %v569 = vor.u32 1.1754944e-38, %v568
      %v570 = vsel %vm567, %v569, %v565
      %v571 = vmul.f32 1.0, %v570
      %v572 = vrcp.pop %v555
      %v573 = vmul.f32 %v555, %v572
      %v574 = vsub.f32 1.0, %v573
      %v575 = vmul.f32 %v572, %v574
      %v576 = vadd.f32 %v572, %v575
      %vm577 = vweird.f32 %v555
      %vm578 = vweird.f32 %v572
      %vm579 = vmor %vm577, %vm578
      %v580 = vsel %vm579, %v572, %v576
      %v581 = vand.u32 2147483647, %v555
      %vm582 = vcmp.eq.f32.partialorder %v581, 8.507059e+37
      %v583 = vand.u32 %v555, 2147483648
      %v584 = vor.u32 1.1754944e-38, %v583
      %v585 = vsel %vm582, %v584, %v580
      %v586 = vmul.f32 1.0, %v585
      %v587 = vrcp.pop %v556
      %v588 = vmul.f32 %v556, %v587
      %v589 = vsub.f32 1.0, %v588
      %v590 = vmul.f32 %v587, %v589
      %v591 = vadd.f32 %v587, %v590
      %vm592 = vweird.f32 %v556
      %vm593 = vweird.f32 %v587
      %vm594 = vmor %vm592, %vm593
      %v595 = vsel %vm594, %v587, %v591
      %v596 = vand.u32 2147483647, %v556
      %vm597 = vcmp.eq.f32.partialorder %v596, 8.507059e+37
      %v598 = vand.u32 %v556, 2147483648
      %v599 = vor.u32 1.1754944e-38, %v598
      %v600 = vsel %vm597, %v599, %v595
      %v601 = vmul.f32 1.0, %v600
      %v602 = vld [vmem:[%s7] sm:$0xf]
      %v603 = vld [vmem:[%s7 + $0x4] sm:$0xf]
      %v604 = vld [vmem:[%s7 + $0x8] sm:$0xf]
      %v605 = vld [vmem:[%s7 + $0xc] sm:$0xf]
      %v606 = vld [vmem:[%s8] sm:$0x1]
      %v608 = vperm.slane %v606, 0
      %612 = vrot.lane.b32.xlu0 %v450, 96
      %v613 = vpop.permute.xlu0 %612
      %614 = vrot.lane.b32.xlu0 %v451, 96
      %v615 = vpop.permute.xlu0 %614
      %v620 = vunpack.c.l.b16 %v602
      %v621 = vunpack.c.l.b16 %v603
      %v622 = vunpack.c.l.b16 %v604
      %v623 = vunpack.c.l.b16 %v605
      %v624 = vpack.c.b16 %v621, %v620
      %v625 = vpack.c.b16 %v623, %v622
      %v629 = vsel %vm422, %v613, 0
      %v632 = vsel %vm422, %v615, 0
      %634 = vmatpush.bf16.msra.mxu0 0
      %635 = vmatpush.bf16.msra.mxu0 0
      %636 = vmatpush.bf16.msra.mxu0 0
      %637 = vmatpush.bf16.msra.mxu0 0
      %638 = vmatpush.bf16.msra.mxu0 0
      %639 = vmatpush.bf16.msra.mxu0 0
      %640 = vmatpush.bf16.msra.mxu0 %v625
      %641 = vmatpush.bf16.msra.mxu0 %v624
      %642 = vmatmul.bf16.gmra.mxu0 %v629
      %v643 = vpop.f32.mrf.mxu0
      %v644 = vadd.f32 %v608, %v643
      %v645 = vpop.f32.mrf.mxu0
      %v646 = vadd.f32 %v608, %v645
      %647 = vmatmul.bf16.gmra.mxu0 %v632
      %v648 = vpop.f32.mrf.mxu0
      %v649 = vadd.f32 %v608, %v648
      %v650 = vpop.f32.mrf.mxu0
      %651 = vdwg.mxu0
      %v652 = vmax.f32 %v644, 0.0
      %v653 = vmax.f32 %v646, 0.0
      %v654 = vmax.f32 %v649, 0.0
      %v655 = vpack.c.bf16 %v653, %v652
      %v656 = vpack.c.bf16 %v654, %v654
      %v657 = vld [vmem:[%s9] sm:$0xf]
      %v658 = vld [vmem:[%s9 + $0x4] sm:$0xf]
      %v659 = vld [vmem:[%s9 + $0x8] sm:$0xf]
      %v660 = vld [vmem:[%s9 + $0xc] sm:$0xf]
      %v661 = vld [vmem:[%s10] sm:$0x1]
      %v663 = vperm.slane %v661, 0
      %v669 = vunpack.c.l.b16 %v657
      %v670 = vunpack.c.l.b16 %v658
      %v671 = vunpack.c.l.b16 %v659
      %v672 = vunpack.c.l.b16 %v660
      %v673 = vpack.c.b16 %v670, %v669
      %v674 = vpack.c.b16 %v672, %v671
      %v678 = vsel %vm422, %v655, 0
      %v681 = vsel %vm422, %v656, 0
      %683 = vmatpush.bf16.msra.mxu0 0
      %684 = vmatpush.bf16.msra.mxu0 0
      %685 = vmatpush.bf16.msra.mxu0 0
      %686 = vmatpush.bf16.msra.mxu0 0
      %687 = vmatpush.bf16.msra.mxu0 0
      %688 = vmatpush.bf16.msra.mxu0 0
      %689 = vmatpush.bf16.msra.mxu0 %v674
      %690 = vmatpush.bf16.msra.mxu0 %v673
      %691 = vmatmul.bf16.gmra.mxu0 %v678
      %v692 = vpop.f32.mrf.mxu0
      %v693 = vadd.f32 %v663, %v692
      %v694 = vpop.f32.mrf.mxu0
      %v695 = vadd.f32 %v663, %v694
      %696 = vmatmul.bf16.gmra.mxu0 %v681
      %v697 = vpop.f32.mrf.mxu0
      %v698 = vadd.f32 %v663, %v697
      %v699 = vpop.f32.mrf.mxu0
      %700 = vdwg.mxu0
      %704 = vrot.lane.b32.xlu0 %v439, 64
      %v705 = vpop.permute.xlu0 %704
      %706 = vrot.lane.b32.xlu0 %v441, 64
      %v707 = vpop.permute.xlu0 %706
      %708 = vrot.lane.b32.xlu0 %v444, 64
      %v709 = vpop.permute.xlu0 %708
      %716 = vrot.lane.b32.xlu0 %v571, 5
      %v717 = vpop.permute.xlu0 %716
      %718 = vrot.lane.b32.xlu0 %v586, 5
      %v719 = vpop.permute.xlu0 %718
      %720 = vrot.lane.b32.xlu0 %v601, 5
      %v721 = vpop.permute.xlu0 %720
      %728 = vrot.lane.b32.xlu0 %v693, 9
      %v729 = vpop.permute.xlu0 %728
      %730 = vrot.lane.b32.xlu0 %v695, 9
      %v731 = vpop.permute.xlu0 %730
      %732 = vrot.lane.b32.xlu0 %v698, 9
      %v733 = vpop.permute.xlu0 %732
      %vm737 = vcmask 39936
      %v738 = vsel %vm737, %v705, %v717
      %v739 = vsel %vm737, %v707, %v719
      %v740 = vsel %vm737, %v709, %v721
      %vm741 = vcmask 72704
      %v742 = vsel %vm741, %v738, %v729
      %v743 = vsel %vm741, %v739, %v731
      %v744 = vsel %vm741, %v740, %v733
      %vm745 = vcmask 203776
      %v746 = vsel %vm745, %v742, 0.0
      %v747 = vsel %vm745, %v743, 0.0
      %v748 = vsel %vm745, %v744, 0.0
      %749 = vst [vmem:[%s388] sm:$0xff] %v746
      %750 = vst [vmem:[%s388 + $0x8] sm:$0xff] %v747
      %751 = vst [vmem:[%s388 + $0x10] sm:$0xff] %v748
      %s752 = smul.u32 3, %s22
      %p753 = scmp.lt.s32.totalorder %s752, 5
      %s754 = scalar_select %p753, %s752, 5
      %s755 = smul.addr %s754, 8
      %s756 = scalar_lea.vmem %s11, %s755
      // Predicated region
      $region65: #{_lambda_.11} parent=63 // pred_check
        %p757 = pneg %p276
      $region66: #{_lambda_.11} parent=63 // pred_check_branch
        %759 = sbr.rel (%p757) target = $region68
      $region67: #{_lambda_.11} parent=63 // pred_region
        %s760 = smul.u32 3, %s22
      $region68: #{_lambda_.11} parent=63 // pred_fallthru
        _
    $region64: #{_lambda_.11} parent=5 // pred_fallthru
      _
    %p761 = scmp.le.s32.totalorder 2, %s17
    // Predicated region
    $region69: #{_lambda_.11} parent=5 // pred_check
      %p762 = pneg %p761
    $region70: #{_lambda_.11} parent=5 // pred_check_branch
      %764 = sbr.rel (%p762) target = $region72
    $region71: #{_lambda_.11} parent=5 // pred_region
      %s765 = ssub.s32 %s17, 2
      // Predicated region
      $region73: #{_lambda_.11} parent=71 // pred_check
        %p766 = pneg %p282
      $region74: #{_lambda_.11} parent=71 // pred_check_branch
        %768 = sbr.rel (%p766) target = $region76
      $region75: #{_lambda_.11} parent=71 // pred_region
        %s769 = smul.u32 3, %s23
        %p770 = scmp.lt.s32.totalorder %s769, 5
        %s771 = scalar_select %p770, %s769, 5
        %s772 = smul.addr %s771, 8
        %s773 = scalar_lea.vmem %s11, %s772
      $region76: #{_lambda_.11} parent=71 // pred_fallthru
        _
    $region72: #{_lambda_.11} parent=5 // pred_fallthru
      _
  $region6: #{_lambda_.11} parent=0 // loop_footer
    %s21 = sadd.s32 1, %s17
  $region7: #{_lambda_.11} parent=0 // loop_footer_branch
    %16 = sbr.rel target = $region3
  $region8: #{_lambda_.11} parent=0 // loop_exit
    _

</llo_original>
